<compile_context>
chip_gen: v6e
topology: v6e:2x2x1
jax: 0.10.0
libtpu: 0.0.40
codegen_flags: <defaults>
</compile_context>

<pallas_src>
import jax
import jax.numpy as jnp
from jax.experimental import pallas as pl
from jax.experimental.pallas import tpu as pltpu

GROWTH = 30
BN_SIZE = 3
NUM_INIT = 39
MID = BN_SIZE * GROWTH           # 90
LANES = 128                      # padded feature width (one vreg lane row)

# Packed-vector row indices (each row is a length-128 zero-padded vector).
# Per dense layer (6 rows): [bn1_scale, bn1_shift, fc1_bias, bn2_scale, bn2_shift, fc2_bias]
L11_V, L12_V, T1_V, L21_V = 0, 6, 12, 15   # T1 uses 3 rows: [bn_s, bn_b, fc_bias]
N5_S, N5_B = 21, 22
CLS_W0 = 24                       # rows 24..31; row 24 = classifier weights (+bias at lane 79)
NUM_VEC_ROWS = 32

# Packed-matrix indices (each is 128x128, zero-padded / lane-placed).
L11_W1, L11_W2, L12_W1, L12_W2, T1_W, L21_W1, L21_W2 = range(7)
NUM_MATS = 7


# --------------------------------------------------------------------------
# Kernel
# --------------------------------------------------------------------------
def densenet_kernel(x_ref, vecs_ref, mats_ref, o_ref):
    f32 = jnp.float32
    bank = x_ref[...]                      # (tile_n, 128) f32; lanes >= 39 are zero

    def vec(i):                            # (1, 128) packed per-feature row
        return vecs_ref[i:i + 1, :]

    def dense_layer(bank, v, m):
        # norm1 -> tanh -> fc1 -> norm2 -> tanh -> fc2 ; fc2 columns are
        # pre-placed on the new-feature lanes, so "concat" is a plain add.
        u = jnp.tanh(bank * vec(v) + vec(v + 1))
        h = jnp.dot(u, mats_ref[m], preferred_element_type=f32) + vec(v + 2)
        h = jnp.tanh(h * vec(v + 3) + vec(v + 4))
        h = jnp.dot(h, mats_ref[m + 1], preferred_element_type=f32) + vec(v + 5)
        # TODO(synk): Dropout(p=0.5) is eval-mode identity here; training-mode RNG dropout not implemented.
        return bank + h                    # new features land on lanes that are exactly zero

    bank = dense_layer(bank, L11_V, L11_W1)    # 39 -> 69 active lanes
    bank = dense_layer(bank, L12_V, L12_W1)    # 69 -> 99

    # transition1: BN -> tanh -> Linear (99 -> 49); replaces the bank.
    u = jnp.tanh(bank * vec(T1_V) + vec(T1_V + 1))
    bank = jnp.dot(u, mats_ref[T1_W], preferred_element_type=f32) + vec(T1_V + 2)

    bank = dense_layer(bank, L21_V, L21_W1)    # 49 -> 79

    # norm5 affine; lane 79 becomes a constant 1.0 so the classifier bias folds
    # into the dot product below.
    z = bank * vec(N5_S) + vec(N5_B)
    w8 = vecs_ref[CLS_W0:CLS_W0 + 8, :]        # (8, 128); row 0 real, rows 1..7 zero
    # (8,128) . (tile_n,128)^T -> (8, tile_n): lane-dense output row, no masked stores.
    out8 = jax.lax.dot_general(w8, z, (((1,), (1,)), ((), ())),
                               preferred_element_type=f32)
    o_ref[...] = out8.astype(o_ref.dtype)


# --------------------------------------------------------------------------
# Host wrapper
# --------------------------------------------------------------------------
def densenet_forward(x, vecs, mats, *, tile_n=512):
    n, c = x.shape
    assert c == NUM_INIT
    assert tile_n % 128 == 0
    n_pad = pl.cdiv(n, tile_n) * tile_n

    # Zero-pad rows (ragged batch) and features (39 -> 128) on the host.
    x_pad = jnp.zeros((n_pad, LANES), jnp.float32).at[:n, :c].set(
        x.astype(jnp.float32))

    flops_per_row = 2 * (39 * 90 + 90 * 30 + 69 * 90 + 90 * 30 +
                         99 * 49 + 49 * 90 + 90 * 30 + 79)
    cost = pl.CostEstimate(
        flops=int(n_pad) * flops_per_row,
        transcendentals=int(n_pad) * (129 + 159 + 99 + 139),
        bytes_accessed=int(n_pad) * (LANES * 4 + 8 * 4) +
                       int(vecs.size + mats.size) * 4,
    )

    out = pl.pallas_call(
        densenet_kernel,
        out_shape=jax.ShapeDtypeStruct((8, n_pad), jnp.float32),
        grid_spec=pltpu.PrefetchScalarGridSpec(
            num_scalar_prefetch=0,
            grid=(n_pad // tile_n,),
            in_specs=[
                pl.BlockSpec((tile_n, LANES), lambda i: (i, 0)),
                pl.BlockSpec(vecs.shape, lambda i: (0, 0)),        # constant block
                pl.BlockSpec(mats.shape, lambda i: (0, 0, 0)),     # constant block
            ],
            out_specs=pl.BlockSpec((8, tile_n), lambda i: (0, i)),
        ),
        compiler_params=pltpu.CompilerParams(
            dimension_semantics=("parallel",)),
        cost_estimate=cost,
    )(x_pad, vecs, mats)

    return out[0, :n].reshape(n, 1)


# --------------------------------------------------------------------------
# Parameters: natural shapes (for the reference) + packed/padded (for kernel)
# --------------------------------------------------------------------------
def make_params(key):
    """Deterministic synthetic parameters.  BN is folded to (scale, shift)."""
    def bn_fold(k, c):
        k1, k2, k3, k4 = jax.random.split(k, 4)
        gamma = jax.random.uniform(k1, (c,), jnp.float32, 0.5, 1.5)
        beta = jax.random.normal(k2, (c,), jnp.float32) * 0.1
        mean = jax.random.normal(k3, (c,), jnp.float32) * 0.1
        var = jax.random.uniform(k4, (c,), jnp.float32, 0.5, 1.5)
        scale = gamma / jnp.sqrt(var + 1e-5)
        shift = beta - mean * scale
        return scale.reshape(1, c), shift.reshape(1, c)

    def linear(k, cin, cout):
        k1, k2 = jax.random.split(k)
        w = jax.random.normal(k1, (cin, cout), jnp.float32) / jnp.sqrt(cin)
        b = jax.random.normal(k2, (1, cout), jnp.float32) * 0.01
        return w, b

    def dense_layer_params(k, cin):
        ks = jax.random.split(k, 4)
        bn1s, bn1b = bn_fold(ks[0], cin)
        w1, b1 = linear(ks[1], cin, MID)
        bn2s, bn2b = bn_fold(ks[2], MID)
        w2, b2 = linear(ks[3], MID, GROWTH)
        return [bn1s, bn1b, w1, b1, bn2s, bn2b, w2, b2]

    keys = jax.random.split(key, 7)
    params = []
    params += dense_layer_params(keys[0], NUM_INIT)            # 39 -> 69
    params += dense_layer_params(keys[1], NUM_INIT + GROWTH)   # 69 -> 99
    t_s, t_b = bn_fold(keys[2], 99)
    tw, tb = linear(keys[3], 99, 49)
    params += [t_s, t_b, tw, tb]                               # 99 -> 49
    params += dense_layer_params(keys[4], 49)                  # 49 -> 79
    n5s, n5b = bn_fold(keys[5], 79)
    cw, cb = linear(keys[6], 79, 1)
    params += [n5s, n5b, cw, cb]
    return params


def pack_params(params):
    """Pack natural-shape params into lane-padded `vecs` (32,128) and `mats` (7,128,128)."""
    vecs = jnp.zeros((NUM_VEC_ROWS, LANES), jnp.float32)
    mats = jnp.zeros((NUM_MATS, LANES, LANES), jnp.float32)

    def put_vec(vecs, row, vals, lane_off=0):
        vals = vals.reshape(-1)
        return vecs.at[row, lane_off:lane_off + vals.shape[0]].set(vals)

    def put_mat(mats, idx, w, row_off=0, col_off=0):
        r, c = w.shape
        return mats.at[idx, row_off:row_off + r, col_off:col_off + c].set(w)

    def pack_dense(vecs, mats, p, vrow, midx, out_off):
        bn1s, bn1b, w1, b1, bn2s, bn2b, w2, b2 = p
        vecs = put_vec(vecs, vrow + 0, bn1s)
        vecs = put_vec(vecs, vrow + 1, bn1b)
        vecs = put_vec(vecs, vrow + 2, b1)
        vecs = put_vec(vecs, vrow + 3, bn2s)
        vecs = put_vec(vecs, vrow + 4, bn2b)
        vecs = put_vec(vecs, vrow + 5, b2, lane_off=out_off)   # place bias on new lanes
        mats = put_mat(mats, midx + 0, w1)
        mats = put_mat(mats, midx + 1, w2, col_off=out_off)    # place fc2 cols on new lanes
        return vecs, mats

    vecs, mats = pack_dense(vecs, mats, params[0:8],  L11_V, L11_W1, NUM_INIT)           # -> 39..68
    vecs, mats = pack_dense(vecs, mats, params[8:16], L12_V, L12_W1, NUM_INIT + GROWTH)  # -> 69..98

    t_s, t_b, tw, tb = params[16:20]
    vecs = put_vec(vecs, T1_V + 0, t_s)
    vecs = put_vec(vecs, T1_V + 1, t_b)
    vecs = put_vec(vecs, T1_V + 2, tb)
    mats = put_mat(mats, T1_W, tw)

    vecs, mats = pack_dense(vecs, mats, params[20:28], L21_V, L21_W1, 49)                # -> 49..78

    n5s, n5b, cw, cb = params[28:32]
    vecs = put_vec(vecs, N5_S, n5s)                  # lane 79 scale stays 0
    vecs = put_vec(vecs, N5_B, n5b)
    vecs = vecs.at[N5_B, 79].set(1.0)                # constant-1 lane carries classifier bias
    vecs = put_vec(vecs, CLS_W0, cw[:, 0])           # classifier weights at lanes 0..78
    vecs = vecs.at[CLS_W0, 79].set(cb[0, 0])         # classifier bias folded in
    return vecs, mats


# --------------------------------------------------------------------------
# Pure-JAX reference (concat-based, mirrors the PyTorch eval-mode forward)
# --------------------------------------------------------------------------
def densenet_ref(x, params):
    def dense_layer(x, q):
        bn1s, bn1b, w1, b1, bn2s, bn2b, w2, b2 = q
        h = jnp.tanh(x * bn1s + bn1b)
        h = h @ w1 + b1
        h = jnp.tanh(h * bn2s + bn2b)
        h = h @ w2 + b2
        return jnp.concatenate([x, h], axis=1)

    x = dense_layer(x, params[0:8])
    x = dense_layer(x, params[8:16])
    t_s, t_b, tw, tb = params[16:20]
    x = jnp.tanh(x * t_s + t_b) @ tw + tb
    x = dense_layer(x, params[20:28])
    n5s, n5b, cw, cb = params[28:32]
    x = x * n5s + n5b
    return x @ cw + cb


if __name__ == "__main__":
    key = jax.random.PRNGKey(0)
    kx, kp = jax.random.split(key)

    n_rows = 4096                          # rows after x.view(-1, 39); 8 grid steps at tile_n=512
    x = jax.random.normal(kx, (n_rows, NUM_INIT), jnp.float32)
    params = make_params(kp)
    vecs, mats = pack_params(params)

    out = densenet_forward(x, vecs, mats, tile_n=512)
    jax.block_until_ready(out)

    with jax.default_matmul_precision("highest"):   # true-f32 reference matmuls
        ref = densenet_ref(x, params)

    assert out.shape == (n_rows, 1), out.shape
    err = float(jnp.max(jnp.abs(out - ref)))
    assert jnp.allclose(out, ref, rtol=1e-4, atol=1e-4), f"max abs err {err}"
    print("KERNEL_OK")
</pallas_src>

<mosaic_0001>
module attributes {stable_mosaic.version = 11 : i64} {
  func.func @densenet_kernel(%arg0: i32, %arg1: memref<512x128xf32, #tpu.memory_space<vmem>>, %arg2: memref<32x128xf32, #tpu.memory_space<vmem>>, %arg3: memref<7x128x128xf32, #tpu.memory_space<vmem>>, %arg4: memref<8x512xf32, #tpu.memory_space<vmem>>) attributes {dimension_semantics = [#tpu.dimension_semantics<parallel>], iteration_bounds = array<i64: 8>, scalar_prefetch = 0 : i64, scratch_operands = 0 : i64, tpu.core_type = #tpu.core_type<tc>, window_params = [{transform_indices = @transform_0, window_bounds = array<i64: 512, 128>}, {pipeline_mode = #tpu.pipeline_mode<synchronous>, transform_indices = @transform_1, window_bounds = array<i64: 32, 128>}, {pipeline_mode = #tpu.pipeline_mode<synchronous>, transform_indices = @transform_2, window_bounds = array<i64: 7, 128, 128>}, {transform_indices = @transform_3, window_bounds = array<i64: 8, 512>}]} {
    %c0 = arith.constant 0 : index
    %c0_0 = arith.constant 0 : index
    %0 = vector.load %arg1[%c0, %c0_0] : memref<512x128xf32, #tpu.memory_space<vmem>>, vector<512x128xf32>
    %c0_1 = arith.constant 0 : index
    %c0_2 = arith.constant 0 : index
    %1 = vector.load %arg2[%c0_1, %c0_2] : memref<32x128xf32, #tpu.memory_space<vmem>>, vector<1x128xf32>
    %2 = vector.broadcast %1 : vector<1x128xf32> to vector<512x128xf32>
    %3 = arith.mulf %0, %2 : vector<512x128xf32>
    %c1 = arith.constant 1 : index
    %c0_3 = arith.constant 0 : index
    %4 = vector.load %arg2[%c1, %c0_3] : memref<32x128xf32, #tpu.memory_space<vmem>>, vector<1x128xf32>
    %5 = vector.broadcast %4 : vector<1x128xf32> to vector<512x128xf32>
    %6 = arith.addf %3, %5 : vector<512x128xf32>
    %7 = math.tanh %6 : vector<512x128xf32>
    %c0_4 = arith.constant 0 : index
    %c0_5 = arith.constant 0 : index
    %c0_6 = arith.constant 0 : index
    %8 = vector.load %arg3[%c0_4, %c0_5, %c0_6] : memref<7x128x128xf32, #tpu.memory_space<vmem>>, vector<1x128x128xf32>
    %9 = vector.shape_cast %8 : vector<1x128x128xf32> to vector<128x128xf32>
    %cst = arith.constant dense<0.000000e+00> : vector<512x128xf32>
    %10 = tpu.matmul %7, %9, %cst {dimension_numbers = #tpu.dot_dimension_numbers<[1], [0], [0], [1], [0, 0, 1, 1], [], []>} : vector<512x128xf32>, vector<128x128xf32>, vector<512x128xf32> -> vector<512x128xf32>
    %c2 = arith.constant 2 : index
    %c0_7 = arith.constant 0 : index
    %11 = vector.load %arg2[%c2, %c0_7] : memref<32x128xf32, #tpu.memory_space<vmem>>, vector<1x128xf32>
    %12 = vector.broadcast %11 : vector<1x128xf32> to vector<512x128xf32>
    %13 = arith.addf %10, %12 : vector<512x128xf32>
    %c3 = arith.constant 3 : index
    %c0_8 = arith.constant 0 : index
    %14 = vector.load %arg2[%c3, %c0_8] : memref<32x128xf32, #tpu.memory_space<vmem>>, vector<1x128xf32>
    %15 = vector.broadcast %14 : vector<1x128xf32> to vector<512x128xf32>
    %16 = arith.mulf %13, %15 : vector<512x128xf32>
    %c4 = arith.constant 4 : index
    %c0_9 = arith.constant 0 : index
    %17 = vector.load %arg2[%c4, %c0_9] : memref<32x128xf32, #tpu.memory_space<vmem>>, vector<1x128xf32>
    %18 = vector.broadcast %17 : vector<1x128xf32> to vector<512x128xf32>
    %19 = arith.addf %16, %18 : vector<512x128xf32>
    %20 = math.tanh %19 : vector<512x128xf32>
    %c1_10 = arith.constant 1 : index
    %c0_11 = arith.constant 0 : index
    %c0_12 = arith.constant 0 : index
    %21 = vector.load %arg3[%c1_10, %c0_11, %c0_12] : memref<7x128x128xf32, #tpu.memory_space<vmem>>, vector<1x128x128xf32>
    %22 = vector.shape_cast %21 : vector<1x128x128xf32> to vector<128x128xf32>
    %cst_13 = arith.constant dense<0.000000e+00> : vector<512x128xf32>
    %23 = tpu.matmul %20, %22, %cst_13 {dimension_numbers = #tpu.dot_dimension_numbers<[1], [0], [0], [1], [0, 0, 1, 1], [], []>} : vector<512x128xf32>, vector<128x128xf32>, vector<512x128xf32> -> vector<512x128xf32>
    %c5 = arith.constant 5 : index
    %c0_14 = arith.constant 0 : index
    %24 = vector.load %arg2[%c5, %c0_14] : memref<32x128xf32, #tpu.memory_space<vmem>>, vector<1x128xf32>
    %25 = vector.broadcast %24 : vector<1x128xf32> to vector<512x128xf32>
    %26 = arith.addf %23, %25 : vector<512x128xf32>
    %27 = arith.addf %0, %26 : vector<512x128xf32>
    %c6 = arith.constant 6 : index
    %c0_15 = arith.constant 0 : index
    %28 = vector.load %arg2[%c6, %c0_15] : memref<32x128xf32, #tpu.memory_space<vmem>>, vector<1x128xf32>
    %29 = vector.broadcast %28 : vector<1x128xf32> to vector<512x128xf32>
    %30 = arith.mulf %27, %29 : vector<512x128xf32>
    %c7 = arith.constant 7 : index
    %c0_16 = arith.constant 0 : index
    %31 = vector.load %arg2[%c7, %c0_16] : memref<32x128xf32, #tpu.memory_space<vmem>>, vector<1x128xf32>
    %32 = vector.broadcast %31 : vector<1x128xf32> to vector<512x128xf32>
    %33 = arith.addf %30, %32 : vector<512x128xf32>
    %34 = math.tanh %33 : vector<512x128xf32>
    %c2_17 = arith.constant 2 : index
    %c0_18 = arith.constant 0 : index
    %c0_19 = arith.constant 0 : index
    %35 = vector.load %arg3[%c2_17, %c0_18, %c0_19] : memref<7x128x128xf32, #tpu.memory_space<vmem>>, vector<1x128x128xf32>
    %36 = vector.shape_cast %35 : vector<1x128x128xf32> to vector<128x128xf32>
    %cst_20 = arith.constant dense<0.000000e+00> : vector<512x128xf32>
    %37 = tpu.matmul %34, %36, %cst_20 {dimension_numbers = #tpu.dot_dimension_numbers<[1], [0], [0], [1], [0, 0, 1, 1], [], []>} : vector<512x128xf32>, vector<128x128xf32>, vector<512x128xf32> -> vector<512x128xf32>
    %c8 = arith.constant 8 : index
    %c0_21 = arith.constant 0 : index
    %38 = vector.load %arg2[%c8, %c0_21] : memref<32x128xf32, #tpu.memory_space<vmem>>, vector<1x128xf32>
    %39 = vector.broadcast %38 : vector<1x128xf32> to vector<512x128xf32>
    %40 = arith.addf %37, %39 : vector<512x128xf32>
    %c9 = arith.constant 9 : index
    %c0_22 = arith.constant 0 : index
    %41 = vector.load %arg2[%c9, %c0_22] : memref<32x128xf32, #tpu.memory_space<vmem>>, vector<1x128xf32>
    %42 = vector.broadcast %41 : vector<1x128xf32> to vector<512x128xf32>
    %43 = arith.mulf %40, %42 : vector<512x128xf32>
    %c10 = arith.constant 10 : index
    %c0_23 = arith.constant 0 : index
    %44 = vector.load %arg2[%c10, %c0_23] : memref<32x128xf32, #tpu.memory_space<vmem>>, vector<1x128xf32>
    %45 = vector.broadcast %44 : vector<1x128xf32> to vector<512x128xf32>
    %46 = arith.addf %43, %45 : vector<512x128xf32>
    %47 = math.tanh %46 : vector<512x128xf32>
    %c3_24 = arith.constant 3 : index
    %c0_25 = arith.constant 0 : index
    %c0_26 = arith.constant 0 : index
    %48 = vector.load %arg3[%c3_24, %c0_25, %c0_26] : memref<7x128x128xf32, #tpu.memory_space<vmem>>, vector<1x128x128xf32>
    %49 = vector.shape_cast %48 : vector<1x128x128xf32> to vector<128x128xf32>
    %cst_27 = arith.constant dense<0.000000e+00> : vector<512x128xf32>
    %50 = tpu.matmul %47, %49, %cst_27 {dimension_numbers = #tpu.dot_dimension_numbers<[1], [0], [0], [1], [0, 0, 1, 1], [], []>} : vector<512x128xf32>, vector<128x128xf32>, vector<512x128xf32> -> vector<512x128xf32>
    %c11 = arith.constant 11 : index
    %c0_28 = arith.constant 0 : index
    %51 = vector.load %arg2[%c11, %c0_28] : memref<32x128xf32, #tpu.memory_space<vmem>>, vector<1x128xf32>
    %52 = vector.broadcast %51 : vector<1x128xf32> to vector<512x128xf32>
    %53 = arith.addf %50, %52 : vector<512x128xf32>
    %54 = arith.addf %27, %53 : vector<512x128xf32>
    %c12 = arith.constant 12 : index
    %c0_29 = arith.constant 0 : index
    %55 = vector.load %arg2[%c12, %c0_29] : memref<32x128xf32, #tpu.memory_space<vmem>>, vector<1x128xf32>
    %56 = vector.broadcast %55 : vector<1x128xf32> to vector<512x128xf32>
    %57 = arith.mulf %54, %56 : vector<512x128xf32>
    %c13 = arith.constant 13 : index
    %c0_30 = arith.constant 0 : index
    %58 = vector.load %arg2[%c13, %c0_30] : memref<32x128xf32, #tpu.memory_space<vmem>>, vector<1x128xf32>
    %59 = vector.broadcast %58 : vector<1x128xf32> to vector<512x128xf32>
    %60 = arith.addf %57, %59 : vector<512x128xf32>
    %61 = math.tanh %60 : vector<512x128xf32>
    %c4_31 = arith.constant 4 : index
    %c0_32 = arith.constant 0 : index
    %c0_33 = arith.constant 0 : index
    %62 = vector.load %arg3[%c4_31, %c0_32, %c0_33] : memref<7x128x128xf32, #tpu.memory_space<vmem>>, vector<1x128x128xf32>
    %63 = vector.shape_cast %62 : vector<1x128x128xf32> to vector<128x128xf32>
    %cst_34 = arith.constant dense<0.000000e+00> : vector<512x128xf32>
    %64 = tpu.matmul %61, %63, %cst_34 {dimension_numbers = #tpu.dot_dimension_numbers<[1], [0], [0], [1], [0, 0, 1, 1], [], []>} : vector<512x128xf32>, vector<128x128xf32>, vector<512x128xf32> -> vector<512x128xf32>
    %c14 = arith.constant 14 : index
    %c0_35 = arith.constant 0 : index
    %65 = vector.load %arg2[%c14, %c0_35] : memref<32x128xf32, #tpu.memory_space<vmem>>, vector<1x128xf32>
    %66 = vector.broadcast %65 : vector<1x128xf32> to vector<512x128xf32>
    %67 = arith.addf %64, %66 : vector<512x128xf32>
    %c15 = arith.constant 15 : index
    %c0_36 = arith.constant 0 : index
    %68 = vector.load %arg2[%c15, %c0_36] : memref<32x128xf32, #tpu.memory_space<vmem>>, vector<1x128xf32>
    %69 = vector.broadcast %68 : vector<1x128xf32> to vector<512x128xf32>
    %70 = arith.mulf %67, %69 : vector<512x128xf32>
    %c16 = arith.constant 16 : index
    %c0_37 = arith.constant 0 : index
    %71 = vector.load %arg2[%c16, %c0_37] : memref<32x128xf32, #tpu.memory_space<vmem>>, vector<1x128xf32>
    %72 = vector.broadcast %71 : vector<1x128xf32> to vector<512x128xf32>
    %73 = arith.addf %70, %72 : vector<512x128xf32>
    %74 = math.tanh %73 : vector<512x128xf32>
    %c5_38 = arith.constant 5 : index
    %c0_39 = arith.constant 0 : index
    %c0_40 = arith.constant 0 : index
    %75 = vector.load %arg3[%c5_38, %c0_39, %c0_40] : memref<7x128x128xf32, #tpu.memory_space<vmem>>, vector<1x128x128xf32>
    %76 = vector.shape_cast %75 : vector<1x128x128xf32> to vector<128x128xf32>
    %cst_41 = arith.constant dense<0.000000e+00> : vector<512x128xf32>
    %77 = tpu.matmul %74, %76, %cst_41 {dimension_numbers = #tpu.dot_dimension_numbers<[1], [0], [0], [1], [0, 0, 1, 1], [], []>} : vector<512x128xf32>, vector<128x128xf32>, vector<512x128xf32> -> vector<512x128xf32>
    %c17 = arith.constant 17 : index
    %c0_42 = arith.constant 0 : index
    %78 = vector.load %arg2[%c17, %c0_42] : memref<32x128xf32, #tpu.memory_space<vmem>>, vector<1x128xf32>
    %79 = vector.broadcast %78 : vector<1x128xf32> to vector<512x128xf32>
    %80 = arith.addf %77, %79 : vector<512x128xf32>
    %c18 = arith.constant 18 : index
    %c0_43 = arith.constant 0 : index
    %81 = vector.load %arg2[%c18, %c0_43] : memref<32x128xf32, #tpu.memory_space<vmem>>, vector<1x128xf32>
    %82 = vector.broadcast %81 : vector<1x128xf32> to vector<512x128xf32>
    %83 = arith.mulf %80, %82 : vector<512x128xf32>
    %c19 = arith.constant 19 : index
    %c0_44 = arith.constant 0 : index
    %84 = vector.load %arg2[%c19, %c0_44] : memref<32x128xf32, #tpu.memory_space<vmem>>, vector<1x128xf32>
    %85 = vector.broadcast %84 : vector<1x128xf32> to vector<512x128xf32>
    %86 = arith.addf %83, %85 : vector<512x128xf32>
    %87 = math.tanh %86 : vector<512x128xf32>
    %c6_45 = arith.constant 6 : index
    %c0_46 = arith.constant 0 : index
    %c0_47 = arith.constant 0 : index
    %88 = vector.load %arg3[%c6_45, %c0_46, %c0_47] : memref<7x128x128xf32, #tpu.memory_space<vmem>>, vector<1x128x128xf32>
    %89 = vector.shape_cast %88 : vector<1x128x128xf32> to vector<128x128xf32>
    %cst_48 = arith.constant dense<0.000000e+00> : vector<512x128xf32>
    %90 = tpu.matmul %87, %89, %cst_48 {dimension_numbers = #tpu.dot_dimension_numbers<[1], [0], [0], [1], [0, 0, 1, 1], [], []>} : vector<512x128xf32>, vector<128x128xf32>, vector<512x128xf32> -> vector<512x128xf32>
    %c20 = arith.constant 20 : index
    %c0_49 = arith.constant 0 : index
    %91 = vector.load %arg2[%c20, %c0_49] : memref<32x128xf32, #tpu.memory_space<vmem>>, vector<1x128xf32>
    %92 = vector.broadcast %91 : vector<1x128xf32> to vector<512x128xf32>
    %93 = arith.addf %90, %92 : vector<512x128xf32>
    %94 = arith.addf %67, %93 : vector<512x128xf32>
    %c21 = arith.constant 21 : index
    %c0_50 = arith.constant 0 : index
    %95 = vector.load %arg2[%c21, %c0_50] : memref<32x128xf32, #tpu.memory_space<vmem>>, vector<1x128xf32>
    %96 = vector.broadcast %95 : vector<1x128xf32> to vector<512x128xf32>
    %97 = arith.mulf %94, %96 : vector<512x128xf32>
    %c22 = arith.constant 22 : index
    %c0_51 = arith.constant 0 : index
    %98 = vector.load %arg2[%c22, %c0_51] : memref<32x128xf32, #tpu.memory_space<vmem>>, vector<1x128xf32>
    %99 = vector.broadcast %98 : vector<1x128xf32> to vector<512x128xf32>
    %100 = arith.addf %97, %99 : vector<512x128xf32>
    %c24 = arith.constant 24 : index
    %c0_52 = arith.constant 0 : index
    %101 = vector.load %arg2[%c24, %c0_52] : memref<32x128xf32, #tpu.memory_space<vmem>>, vector<8x128xf32>
    %cst_53 = arith.constant dense<0.000000e+00> : vector<8x512xf32>
    %102 = tpu.matmul %101, %100, %cst_53 {dimension_numbers = #tpu.dot_dimension_numbers<[1], [1], [0], [0], [0, 0, 1, 0], [], []>} : vector<8x128xf32>, vector<512x128xf32>, vector<8x512xf32> -> vector<8x512xf32>
    %c0_54 = arith.constant 0 : index
    %c0_55 = arith.constant 0 : index
    %103 = vector.load %arg4[%c0_54, %c0_55] : memref<8x512xf32, #tpu.memory_space<vmem>>, vector<8x512xf32>
    tpu.vector_store %arg4[%c0_54, %c0_55], %102 {strides = array<i32>} : memref<8x512xf32, #tpu.memory_space<vmem>>, vector<8x512xf32>,
    return
  }
  func.func @transform_0(%arg0: i32) -> (i32, i32) {
    %c0_i32 = arith.constant 0 : i32
    %c0_i32_0 = arith.constant 0 : i32
    return %arg0, %c0_i32 : i32, i32
  }
  func.func @transform_1(%arg0: i32) -> (i32, i32) {
    %c0_i32 = arith.constant 0 : i32
    %c0_i32_0 = arith.constant 0 : i32
    %c0_i32_1 = arith.constant 0 : i32
    return %c0_i32, %c0_i32_0 : i32, i32
  }
  func.func @transform_2(%arg0: i32) -> (i32, i32, i32) {
    %c0_i32 = arith.constant 0 : i32
    %c0_i32_0 = arith.constant 0 : i32
    %c0_i32_1 = arith.constant 0 : i32
    %c0_i32_2 = arith.constant 0 : i32
    return %c0_i32, %c0_i32_0, %c0_i32_1 : i32, i32, i32
  }
  func.func @transform_3(%arg0: i32) -> (i32, i32) {
    %c0_i32 = arith.constant 0 : i32
    %c0_i32_0 = arith.constant 0 : i32
    return %c0_i32, %arg0 : i32, i32
  }
}

</mosaic_0001>

<llo_original>
// kernel: tpu_custom_call.1
$region0: #{tpu_custom_call.1}
  #allocation0 [shape = 'u32[]', space=smem, size = 0x4, offset = 0x4, fixed_abs, tag = 'smem constant byte address 0x4 - core index']
  #allocation1 [shape = 'u32[144,128]{1,0:T(1,128)}', space=vmem, size = 0x12000, scoped, tag = 'internal scratch']
  %s0 = inlined_call_operand.hbm [shape: f32[4096,128], index: 0, kind: input, shape index: {}]
  %s1 = inlined_call_operand.hbm [shape: f32[32,128], index: 1, kind: input, shape index: {}]
  %s2 = inlined_call_operand.hbm [shape: f32[7,128,128], index: 2, kind: input, shape index: {}]
  %s3 = inlined_call_operand.hbm [shape: f32[8,4096], index: 3, kind: output, shape index: {}]
  %s4 = sld [smem:[#allocation0]]
  $region57: #{tpu_custom_call.1} parent=0
    _
  %s6 = ssub.s32 1, %s4
  %s7 = scalar_select 0, %s6, %s4
  $region1: #{tpu_custom_call.1} parent=0
    #allocation2 [shape = 'u8[524288]{0}', space=vmem, size = 0x80000, scoped, tag = 'input window, operand 0']
    #allocation3 [shape = 's32[2]{0}', space=sflag, size = 0x8, scoped, tag = 'scoped memory for tpu_custom_call.1']
    #allocation4 [shape = 's32[2]{0}', space=sflag, size = 0x8, scoped, tag = 'scoped memory for tpu_custom_call.1']
    #allocation5 [shape = 'u8[16384]{0}', space=vmem, size = 0x4000, scoped, tag = 'input window, operand 1, single buffered']
    #allocation6 [shape = 's32[1]{0}', space=sflag, size = 0x4, scoped, tag = 'scoped memory for tpu_custom_call.1']
    #allocation7 [shape = 'u8[458752]{0}', space=vmem, size = 0x70000, scoped, tag = 'input window, operand 2, single buffered']
    #allocation8 [shape = 'u8[32768]{0}', space=vmem, size = 0x8000, scoped, tag = 'output window, operand 0']
    %8 = vsyncpa [#allocation3], 0
    %s9 = scalar_lea.sflag [#allocation3], 1
    %10 = vsyncpa %s9, 0
    %11 = vsyncpa [#allocation6], 0
    %12 = vsyncpa [#allocation4], 0
    %s13 = scalar_lea.sflag [#allocation4], 1
    %14 = vsyncpa %s13, 0
    loop: start=0, step=1, limit=10
    $region2: #{tpu_custom_call.1} parent=1 // loop_pre_header
      _
    $region3: #{tpu_custom_call.1} parent=1 // loop_header
      %s16 = sphi 0, %s20
      %p17 = scmp.ge.s32.totalorder %s16, 10
      %s26 = sphi 0, %s28
      %s29 = sphi 0, %s26
      %s30 = sphi 0, %s29
      %s46 = sphi 0, %s30
      %s50 = sphi 0, %s50
      %s52 = sphi 0, %s50
      %s53 = sphi 0, %s52
      %s67 = sphi 0, %s53
      %s71 = sphi 0, %s71
      %s73 = sphi 0, %s71
      %s74 = sphi 0, %s73
      %s88 = sphi 0, %s74
      %s94 = sphi 0, %s96
      %s97 = sphi 0, %s94
      %s98 = sphi 0, %s97
      %s114 = sphi 0, %s98
    $region4: #{tpu_custom_call.1} parent=1 // loop_header_branch
      %19 = sbr.rel (%p17) target = $region8
    $region5: #{tpu_custom_call.1} parent=1 // loop_body
      %s21 = ssub.s32 %s16, 1
      %s22 = ssub.s32 %s16, 2
      %s23 = sadd.s32 %s16, 1
      %s24 = ssub.s32 %s16, %s23
      %p25 = scmp.eq.s32.totalorder %s24, 0
      %s27 = sadd.s32 %s26, 1
      %s28 = scalar_select %p25, %s26, %s27
      %p31 = pneg %p25
      %p32 = scmp.eq.s32.totalorder %s16, 7
      %p33 = por %p31, %p32
      %p34 = scmp.ne.s32.totalorder %s26, %s29
      %p35 = scmp.eq.s32.totalorder %s16, 0
      %p36 = por %p34, %p35
      %p37 = scmp.ne.s32.totalorder %s26, %s29
      %p38 = scmp.eq.s32.totalorder %s21, 7
      %p39 = por %p37, %p38
      %p40 = scmp.ne.s32.totalorder %s29, %s30
      %p41 = scmp.eq.s32.totalorder %s21, 0
      %p42 = por %p40, %p41
      %p43 = scmp.ne.s32.totalorder %s29, %s30
      %p44 = scmp.eq.s32.totalorder %s22, 7
      %p45 = por %p43, %p44
      %p47 = scmp.ne.s32.totalorder %s30, %s46
      %p48 = scmp.eq.s32.totalorder %s22, 0
      %p49 = por %p47, %p48
      %s51 = sadd.s32 %s50, 1
      %p54 = scmp.eq.s32.totalorder %s16, 7
      %p55 = scmp.ne.s32.totalorder %s50, %s52
      %p56 = scmp.eq.s32.totalorder %s16, 0
      %p57 = por %p55, %p56
      %p58 = scmp.ne.s32.totalorder %s50, %s52
      %p59 = scmp.eq.s32.totalorder %s21, 7
      %p60 = por %p58, %p59
      %p61 = scmp.ne.s32.totalorder %s52, %s53
      %p62 = scmp.eq.s32.totalorder %s21, 0
      %p63 = por %p61, %p62
      %p64 = scmp.ne.s32.totalorder %s52, %s53
      %p65 = scmp.eq.s32.totalorder %s22, 7
      %p66 = por %p64, %p65
      %p68 = scmp.ne.s32.totalorder %s53, %s67
      %p69 = scmp.eq.s32.totalorder %s22, 0
      %p70 = por %p68, %p69
      %s72 = sadd.s32 %s71, 1
      %p75 = scmp.eq.s32.totalorder %s16, 7
      %p76 = scmp.ne.s32.totalorder %s71, %s73
      %p77 = scmp.eq.s32.totalorder %s16, 0
      %p78 = por %p76, %p77
      %p79 = scmp.ne.s32.totalorder %s71, %s73
      %p80 = scmp.eq.s32.totalorder %s21, 7
      %p81 = por %p79, %p80
      %p82 = scmp.ne.s32.totalorder %s73, %s74
      %p83 = scmp.eq.s32.totalorder %s21, 0
      %p84 = por %p82, %p83
      %p85 = scmp.ne.s32.totalorder %s73, %s74
      %p86 = scmp.eq.s32.totalorder %s22, 7
      %p87 = por %p85, %p86
      %p89 = scmp.ne.s32.totalorder %s74, %s88
      %p90 = scmp.eq.s32.totalorder %s22, 0
      %p91 = por %p89, %p90
      %s92 = ssub.s32 %s16, %s23
      %p93 = scmp.eq.s32.totalorder %s92, 0
      %s95 = sadd.s32 %s94, 1
      %s96 = scalar_select %p93, %s94, %s95
      %p99 = pneg %p93
      %p100 = scmp.eq.s32.totalorder %s16, 7
      %p101 = por %p99, %p100
      %p102 = scmp.ne.s32.totalorder %s94, %s97
      %p103 = scmp.eq.s32.totalorder %s16, 0
      %p104 = por %p102, %p103
      %p105 = scmp.ne.s32.totalorder %s94, %s97
      %p106 = scmp.eq.s32.totalorder %s21, 7
      %p107 = por %p105, %p106
      %p108 = scmp.ne.s32.totalorder %s97, %s98
      %p109 = scmp.eq.s32.totalorder %s21, 0
      %p110 = por %p108, %p109
      %p111 = scmp.ne.s32.totalorder %s97, %s98
      %p112 = scmp.eq.s32.totalorder %s22, 7
      %p113 = por %p111, %p112
      %p115 = scmp.ne.s32.totalorder %s98, %s114
      %p116 = scmp.eq.s32.totalorder %s22, 0
      %p117 = por %p115, %p116
      %p118 = scmp.le.s32.totalorder 1, %s16
      %p119 = scmp.lt.s32.totalorder %s16, 9
      %p120 = pnand %p118, %p119
      %p121 = pneg %p120
      // Predicated region
      $region9: #{tpu_custom_call.1} parent=5 // pred_check
        _
      $region10: #{tpu_custom_call.1} parent=5 // pred_check_branch
        %123 = sbr.rel (%p120) target = $region12
      $region11: #{tpu_custom_call.1} parent=5 // pred_region
        %s124 = ssub.s32 %s16, 1
        // Predicated region
        $region13: #{tpu_custom_call.1} parent=11 // pred_check
          %p125 = pneg %p63
        $region14: #{tpu_custom_call.1} parent=11 // pred_check_branch
          %127 = sbr.rel (%p125) target = $region16
        $region15: #{tpu_custom_call.1} parent=11 // pred_region
          %s129 = ssub.s32 512, 512
          %130 = vsyncadd [#allocation6], %s129
          %s131 = sshll.u32 [#allocation5], 4
          %s132 = int_to_ptr.vmem [resolvable:$true] %s131
          %137 = dma.hbm_to_vmem [thread:$0]  %s1, 512, %s132, [#allocation6], 128, 128, 8
        $region16: #{tpu_custom_call.1} parent=11 // pred_fallthru
          _
        // Predicated region
        $region17: #{tpu_custom_call.1} parent=11 // pred_check
          %p138 = pneg %p84
        $region18: #{tpu_custom_call.1} parent=11 // pred_check_branch
          %140 = sbr.rel (%p138) target = $region20
        $region19: #{tpu_custom_call.1} parent=11 // pred_region
          %s142 = ssub.s32 14336, 14336
          %143 = vsyncadd [#allocation6], %s142
          %s144 = sshll.u32 [#allocation7], 4
          %s145 = int_to_ptr.vmem [resolvable:$true] %s144
          %150 = dma.hbm_to_vmem [thread:$0]  %s2, 14336, %s145, [#allocation6], 128, 128, 8
        $region20: #{tpu_custom_call.1} parent=11 // pred_fallthru
          _
      $region12: #{tpu_custom_call.1} parent=5 // pred_fallthru
        _
      %p151 = scmp.lt.s32.totalorder %s16, 8
      // Predicated region
      $region21: #{tpu_custom_call.1} parent=5 // pred_check
        %p152 = pneg %p151
      $region22: #{tpu_custom_call.1} parent=5 // pred_check_branch
        %154 = sbr.rel (%p152) target = $region24
      $region23: #{tpu_custom_call.1} parent=5 // pred_region
        // Predicated region
        $region25: #{tpu_custom_call.1} parent=23 // pred_check
          %p155 = pneg %p36
        $region26: #{tpu_custom_call.1} parent=23 // pred_check_branch
          %157 = sbr.rel (%p155) target = $region28
        $region27: #{tpu_custom_call.1} parent=23 // pred_region
          %s158 = sand.u32 %s26, 1
          %s159 = scalar_lea.sflag [#allocation3], %s158
          %s160 = sand.u32 %s26, 1
          %s161 = smul.addr %s160, 512
          %s162 = scalar_lea.vmem [#allocation2], %s161
          %s163 = smul.u32 64, %s16
          %s165 = ssub.s32 8192, 8192
          %166 = vsyncadd %s159, %s165
          %s167 = smul.addr %s163, 128
          %s168 = scalar_lea.hbm %s0, %s167
          %s169 = sshll.u32 %s162, 4
          %s170 = int_to_ptr.vmem [resolvable:$true] %s169
          %175 = dma.hbm_to_vmem [thread:$0]  %s168, 8192, %s170, %s159, 128, 128, 8
        $region28: #{tpu_custom_call.1} parent=23 // pred_fallthru
          _
      $region24: #{tpu_custom_call.1} parent=5 // pred_fallthru
        _
      %p176 = scmp.le.s32.totalorder 1, %s16
      %p177 = scmp.lt.s32.totalorder %s16, 9
      %p178 = pnand %p176, %p177
      %p179 = pneg %p178
      // Predicated region
      $region29: #{tpu_custom_call.1} parent=5 // pred_check
        _
      $region30: #{tpu_custom_call.1} parent=5 // pred_check_branch
        %181 = sbr.rel (%p178) target = $region32
      $region31: #{tpu_custom_call.1} parent=5 // pred_region
        %s182 = ssub.s32 %s16, 1
        %s183 = sand.u32 %s29, 1
        %s184 = scalar_lea.sflag [#allocation3], %s183
        %s185 = sand.u32 %s29, 1
        %s186 = smul.addr %s185, 512
        %s187 = scalar_lea.vmem [#allocation2], %s186
        // Predicated region
        $region33: #{tpu_custom_call.1} parent=31 // pred_check
          %p188 = pneg %p42
        $region34: #{tpu_custom_call.1} parent=31 // pred_check_branch
          %190 = sbr.rel (%p188) target = $region36
        $region35: #{tpu_custom_call.1} parent=31 // pred_region
          %191 = dma.done %s184, 8192
        $region36: #{tpu_custom_call.1} parent=31 // pred_fallthru
          _
        // Predicated region
        $region37: #{tpu_custom_call.1} parent=31 // pred_check
          %p192 = pneg %p63
        $region38: #{tpu_custom_call.1} parent=31 // pred_check_branch
          %194 = sbr.rel (%p192) target = $region40
        $region39: #{tpu_custom_call.1} parent=31 // pred_region
          %195 = dma.done [#allocation6], 512
        $region40: #{tpu_custom_call.1} parent=31 // pred_fallthru
          _
        // Predicated region
        $region41: #{tpu_custom_call.1} parent=31 // pred_check
          %p196 = pneg %p84
        $region42: #{tpu_custom_call.1} parent=31 // pred_check_branch
          %198 = sbr.rel (%p196) target = $region44
        $region43: #{tpu_custom_call.1} parent=31 // pred_region
          %199 = dma.done [#allocation6], 14336
        $region44: #{tpu_custom_call.1} parent=31 // pred_fallthru
          _
        %s200 = sand.u32 %s29, 1
        %s201 = scalar_lea.sflag [#allocation3], %s200
        %s202 = sand.u32 %s29, 1
        %s203 = smul.addr %s202, 512
        %s204 = scalar_lea.vmem [#allocation2], %s203
        %p205 = pneg %p42
        %p206 = pneg %p39
        %p207 = pneg %p63
        %p208 = pneg %p60
        %p209 = pneg %p84
        %p210 = pneg %p81
        %p211 = pneg %p110
        %p212 = pneg %p107
        %s213 = sand.u32 %s97, 1
        %s214 = scalar_lea.sflag [#allocation4], %s213
        %s215 = sand.u32 %s97, 1
        %s216 = smul.addr %s215, 32
        %s217 = scalar_lea.vmem [#allocation8], %s216
        %s218 = smul.u32 64, %s21
        %s219 = smul.u32 4, %s21
        %v220 = vld [vmem:[%s187] sm:$0xff]
        %v221 = vld [vmem:[%s187 + $0x8] sm:$0xff]
        %v222 = vld [vmem:[%s187 + $0x10] sm:$0xff]
        %v223 = vld [vmem:[%s187 + $0x18] sm:$0xff]
        %v224 = vld [vmem:[%s187 + $0x20] sm:$0xff]
        %v225 = vld [vmem:[%s187 + $0x28] sm:$0xff]
        %v226 = vld [vmem:[%s187 + $0x30] sm:$0xff]
        %v227 = vld [vmem:[%s187 + $0x38] sm:$0xff]
        %v228 = vld [vmem:[%s187 + $0x40] sm:$0xff]
        %v229 = vld [vmem:[%s187 + $0x48] sm:$0xff]
        %v230 = vld [vmem:[%s187 + $0x50] sm:$0xff]
        %v231 = vld [vmem:[%s187 + $0x58] sm:$0xff]
        %v232 = vld [vmem:[%s187 + $0x60] sm:$0xff]
        %v233 = vld [vmem:[%s187 + $0x68] sm:$0xff]
        %v234 = vld [vmem:[%s187 + $0x70] sm:$0xff]
        %v235 = vld [vmem:[%s187 + $0x78] sm:$0xff]
        %v236 = vld [vmem:[%s187 + $0x80] sm:$0xff]
        %v237 = vld [vmem:[%s187 + $0x88] sm:$0xff]
        %v238 = vld [vmem:[%s187 + $0x90] sm:$0xff]
        %v239 = vld [vmem:[%s187 + $0x98] sm:$0xff]
        %v240 = vld [vmem:[%s187 + $0xa0] sm:$0xff]
        %v241 = vld [vmem:[%s187 + $0xa8] sm:$0xff]
        %v242 = vld [vmem:[%s187 + $0xb0] sm:$0xff]
        %v243 = vld [vmem:[%s187 + $0xb8] sm:$0xff]
        %v244 = vld [vmem:[%s187 + $0xc0] sm:$0xff]
        %v245 = vld [vmem:[%s187 + $0xc8] sm:$0xff]
        %v246 = vld [vmem:[%s187 + $0xd0] sm:$0xff]
        %v247 = vld [vmem:[%s187 + $0xd8] sm:$0xff]
        %v248 = vld [vmem:[%s187 + $0xe0] sm:$0xff]
        %v249 = vld [vmem:[%s187 + $0xe8] sm:$0xff]
        %v250 = vld [vmem:[%s187 + $0xf0] sm:$0xff]
        %v251 = vld [vmem:[%s187 + $0xf8] sm:$0xff]
        %v252 = vld [vmem:[%s187 + $0x100] sm:$0xff]
        %v253 = vld [vmem:[%s187 + $0x108] sm:$0xff]
        %v254 = vld [vmem:[%s187 + $0x110] sm:$0xff]
        %v255 = vld [vmem:[%s187 + $0x118] sm:$0xff]
        %v256 = vld [vmem:[%s187 + $0x120] sm:$0xff]
        %v257 = vld [vmem:[%s187 + $0x128] sm:$0xff]
        %v258 = vld [vmem:[%s187 + $0x130] sm:$0xff]
        %v259 = vld [vmem:[%s187 + $0x138] sm:$0xff]
        %v260 = vld [vmem:[%s187 + $0x140] sm:$0xff]
        %v261 = vld [vmem:[%s187 + $0x148] sm:$0xff]
        %v262 = vld [vmem:[%s187 + $0x150] sm:$0xff]
        %v263 = vld [vmem:[%s187 + $0x158] sm:$0xff]
        %v264 = vld [vmem:[%s187 + $0x160] sm:$0xff]
        %v265 = vld [vmem:[%s187 + $0x168] sm:$0xff]
        %v266 = vld [vmem:[%s187 + $0x170] sm:$0xff]
        %v267 = vld [vmem:[%s187 + $0x178] sm:$0xff]
        %v268 = vld [vmem:[%s187 + $0x180] sm:$0xff]
        %v269 = vld [vmem:[%s187 + $0x188] sm:$0xff]
        %v270 = vld [vmem:[%s187 + $0x190] sm:$0xff]
        %v271 = vld [vmem:[%s187 + $0x198] sm:$0xff]
        %v272 = vld [vmem:[%s187 + $0x1a0] sm:$0xff]
        %v273 = vld [vmem:[%s187 + $0x1a8] sm:$0xff]
        %v274 = vld [vmem:[%s187 + $0x1b0] sm:$0xff]
        %v275 = vld [vmem:[%s187 + $0x1b8] sm:$0xff]
        %v276 = vld [vmem:[%s187 + $0x1c0] sm:$0xff]
        %v277 = vld [vmem:[%s187 + $0x1c8] sm:$0xff]
        %v278 = vld [vmem:[%s187 + $0x1d0] sm:$0xff]
        %v279 = vld [vmem:[%s187 + $0x1d8] sm:$0xff]
        %v280 = vld [vmem:[%s187 + $0x1e0] sm:$0xff]
        %v281 = vld [vmem:[%s187 + $0x1e8] sm:$0xff]
        %v282 = vld [vmem:[%s187 + $0x1f0] sm:$0xff]
        %v283 = vld [vmem:[%s187 + $0x1f8] sm:$0xff]
        %v284 = vld [vmem:[#allocation5] sm:$0x1]
        %v285 = vlaneseq
        %v286 = vshrl.u32 %v285, 7
        %v287 = vsub.s32 0, %v286
        %v288 = vrot.slane %v284, %v287
        %v289 = vmul.f32 %v220, %v288
        %v290 = vmul.f32 %v221, %v288
        %v291 = vmul.f32 %v222, %v288
        %v292 = vmul.f32 %v223, %v288
        %v293 = vmul.f32 %v224, %v288
        %v294 = vmul.f32 %v225, %v288
        %v295 = vmul.f32 %v226, %v288
        %v296 = vmul.f32 %v227, %v288
        %v297 = vmul.f32 %v228, %v288
        %v298 = vmul.f32 %v229, %v288
        %v299 = vmul.f32 %v230, %v288
        %v300 = vmul.f32 %v231, %v288
        %v301 = vmul.f32 %v232, %v288
        %v302 = vmul.f32 %v233, %v288
        %v303 = vmul.f32 %v234, %v288
        %v304 = vmul.f32 %v235, %v288
        %v305 = vmul.f32 %v236, %v288
        %v306 = vmul.f32 %v237, %v288
        %v307 = vmul.f32 %v238, %v288
        %v308 = vmul.f32 %v239, %v288
        %v309 = vmul.f32 %v240, %v288
        %v310 = vmul.f32 %v241, %v288
        %v311 = vmul.f32 %v242, %v288
        %v312 = vmul.f32 %v243, %v288
        %v313 = vmul.f32 %v244, %v288
        %v314 = vmul.f32 %v245, %v288
        %v315 = vmul.f32 %v246, %v288
        %v316 = vmul.f32 %v247, %v288
        %v317 = vmul.f32 %v248, %v288
        %v318 = vmul.f32 %v249, %v288
        %v319 = vmul.f32 %v250, %v288
        %v320 = vmul.f32 %v251, %v288
        %v321 = vmul.f32 %v252, %v288
        %v322 = vmul.f32 %v253, %v288
        %v323 = vmul.f32 %v254, %v288
        %v324 = vmul.f32 %v255, %v288
        %v325 = vmul.f32 %v256, %v288
        %v326 = vmul.f32 %v257, %v288
        %v327 = vmul.f32 %v258, %v288
        %v328 = vmul.f32 %v259, %v288
        %v329 = vmul.f32 %v260, %v288
        %v330 = vmul.f32 %v261, %v288
        %v331 = vmul.f32 %v262, %v288
        %v332 = vmul.f32 %v263, %v288
        %v333 = vmul.f32 %v264, %v288
        %v334 = vmul.f32 %v265, %v288
        %v335 = vmul.f32 %v266, %v288
        %v336 = vmul.f32 %v267, %v288
        %v337 = vmul.f32 %v268, %v288
        %v338 = vmul.f32 %v269, %v288
        %v339 = vmul.f32 %v270, %v288
        %v340 = vmul.f32 %v271, %v288
        %v341 = vmul.f32 %v272, %v288
        %v342 = vmul.f32 %v273, %v288
        %v343 = vmul.f32 %v274, %v288
        %v344 = vmul.f32 %v275, %v288
        %v345 = vmul.f32 %v276, %v288
        %v346 = vmul.f32 %v277, %v288
        %v347 = vmul.f32 %v278, %v288
        %v348 = vmul.f32 %v279, %v288
        %v349 = vmul.f32 %v280, %v288
        %v350 = vmul.f32 %v281, %v288
        %v351 = vmul.f32 %v282, %v288
        %v352 = vmul.f32 %v283, %v288
        %v353 = vld [vmem:[#allocation5 + $0x1] sm:$0x1]
        %v354 = vlaneseq
        %v355 = vshrl.u32 %v354, 7
        %v356 = vsub.s32 0, %v355
        %v357 = vrot.slane %v353, %v356
        %v358 = vadd.f32 %v289, %v357
        %v359 = vadd.f32 %v290, %v357
        %v360 = vadd.f32 %v291, %v357
        %v361 = vadd.f32 %v292, %v357
        %v362 = vadd.f32 %v293, %v357
        %v363 = vadd.f32 %v294, %v357
        %v364 = vadd.f32 %v295, %v357
        %v365 = vadd.f32 %v296, %v357
        %v366 = vadd.f32 %v297, %v357
        %v367 = vadd.f32 %v298, %v357
        %v368 = vadd.f32 %v299, %v357
        %v369 = vadd.f32 %v300, %v357
        %v370 = vadd.f32 %v301, %v357
        %v371 = vadd.f32 %v302, %v357
        %v372 = vadd.f32 %v303, %v357
        %v373 = vadd.f32 %v304, %v357
        %v374 = vadd.f32 %v305, %v357
        %v375 = vadd.f32 %v306, %v357
        %v376 = vadd.f32 %v307, %v357
        %v377 = vadd.f32 %v308, %v357
        %v378 = vadd.f32 %v309, %v357
        %v379 = vadd.f32 %v310, %v357
        %v380 = vadd.f32 %v311, %v357
        %v381 = vadd.f32 %v312, %v357
        %v382 = vadd.f32 %v313, %v357
        %v383 = vadd.f32 %v314, %v357
        %v384 = vadd.f32 %v315, %v357
        %v385 = vadd.f32 %v316, %v357
        %v386 = vadd.f32 %v317, %v357
        %v387 = vadd.f32 %v318, %v357
        %v388 = vadd.f32 %v319, %v357
        %v389 = vadd.f32 %v320, %v357
        %v390 = vadd.f32 %v321, %v357
        %v391 = vadd.f32 %v322, %v357
        %v392 = vadd.f32 %v323, %v357
        %v393 = vadd.f32 %v324, %v357
        %v394 = vadd.f32 %v325, %v357
        %v395 = vadd.f32 %v326, %v357
        %v396 = vadd.f32 %v327, %v357
        %v397 = vadd.f32 %v328, %v357
        %v398 = vadd.f32 %v329, %v357
        %v399 = vadd.f32 %v330, %v357
        %v400 = vadd.f32 %v331, %v357
        %v401 = vadd.f32 %v332, %v357
        %v402 = vadd.f32 %v333, %v357
        %v403 = vadd.f32 %v334, %v357
        %v404 = vadd.f32 %v335, %v357
        %v405 = vadd.f32 %v336, %v357
        %v406 = vadd.f32 %v337, %v357
        %v407 = vadd.f32 %v338, %v357
        %v408 = vadd.f32 %v339, %v357
        %v409 = vadd.f32 %v340, %v357
        %v410 = vadd.f32 %v341, %v357
        %v411 = vadd.f32 %v342, %v357
        %v412 = vadd.f32 %v343, %v357
        %v413 = vadd.f32 %v344, %v357
        %v414 = vadd.f32 %v345, %v357
        %v415 = vadd.f32 %v346, %v357
        %v416 = vadd.f32 %v347, %v357
        %v417 = vadd.f32 %v348, %v357
        %v418 = vadd.f32 %v349, %v357
        %v419 = vadd.f32 %v350, %v357
        %v420 = vadd.f32 %v351, %v357
        %v421 = vadd.f32 %v352, %v357
        %v422 = vtanh.pop %v358
        %v423 = vtanh.pop %v359
        %v424 = vtanh.pop %v360
        %v425 = vtanh.pop %v361
        %v426 = vtanh.pop %v362
        %v427 = vtanh.pop %v363
        %v428 = vtanh.pop %v364
        %v429 = vtanh.pop %v365
        %v430 = vtanh.pop %v366
        %v431 = vtanh.pop %v367
        %v432 = vtanh.pop %v368
        %v433 = vtanh.pop %v369
        %v434 = vtanh.pop %v370
        %v435 = vtanh.pop %v371
        %v436 = vtanh.pop %v372
        %v437 = vtanh.pop %v373
        %v438 = vtanh.pop %v374
        %v439 = vtanh.pop %v375
        %v440 = vtanh.pop %v376
        %v441 = vtanh.pop %v377
        %v442 = vtanh.pop %v378
        %v443 = vtanh.pop %v379
        %v444 = vtanh.pop %v380
        %v445 = vtanh.pop %v381
        %v446 = vtanh.pop %v382
        %v447 = vtanh.pop %v383
        %v448 = vtanh.pop %v384
        %v449 = vtanh.pop %v385
        %v450 = vtanh.pop %v386
        %v451 = vtanh.pop %v387
        %v452 = vtanh.pop %v388
        %v453 = vtanh.pop %v389
        %v454 = vtanh.pop %v390
        %v455 = vtanh.pop %v391
        %v456 = vtanh.pop %v392
        %v457 = vtanh.pop %v393
        %v458 = vtanh.pop %v394
        %v459 = vtanh.pop %v395
        %v460 = vtanh.pop %v396
        %v461 = vtanh.pop %v397
        %v462 = vtanh.pop %v398
        %v463 = vtanh.pop %v399
        %v464 = vtanh.pop %v400
        %v465 = vtanh.pop %v401
        %v466 = vtanh.pop %v402
        %v467 = vtanh.pop %v403
        %v468 = vtanh.pop %v404
        %v469 = vtanh.pop %v405
        %v470 = vtanh.pop %v406
        %v471 = vtanh.pop %v407
        %v472 = vtanh.pop %v408
        %v473 = vtanh.pop %v409
        %v474 = vtanh.pop %v410
        %v475 = vtanh.pop %v411
        %v476 = vtanh.pop %v412
        %v477 = vtanh.pop %v413
        %v478 = vtanh.pop %v414
        %v479 = vtanh.pop %v415
        %v480 = vtanh.pop %v416
        %v481 = vtanh.pop %v417
        %v482 = vtanh.pop %v418
        %v483 = vtanh.pop %v419
        %v484 = vtanh.pop %v420
        %v485 = vtanh.pop %v421
        %v486 = vld [vmem:[#allocation7] sm:$0xff]
        %v487 = vld [vmem:[#allocation7 + $0x8] sm:$0xff]
        %v488 = vld [vmem:[#allocation7 + $0x10] sm:$0xff]
        %v489 = vld [vmem:[#allocation7 + $0x18] sm:$0xff]
        %v490 = vld [vmem:[#allocation7 + $0x20] sm:$0xff]
        %v491 = vld [vmem:[#allocation7 + $0x28] sm:$0xff]
        %v492 = vld [vmem:[#allocation7 + $0x30] sm:$0xff]
        %v493 = vld [vmem:[#allocation7 + $0x38] sm:$0xff]
        %v494 = vld [vmem:[#allocation7 + $0x40] sm:$0xff]
        %v495 = vld [vmem:[#allocation7 + $0x48] sm:$0xff]
        %v496 = vld [vmem:[#allocation7 + $0x50] sm:$0xff]
        %v497 = vld [vmem:[#allocation7 + $0x58] sm:$0xff]
        %v498 = vld [vmem:[#allocation7 + $0x60] sm:$0xff]
        %v499 = vld [vmem:[#allocation7 + $0x68] sm:$0xff]
        %v500 = vld [vmem:[#allocation7 + $0x70] sm:$0xff]
        %v501 = vld [vmem:[#allocation7 + $0x78] sm:$0xff]
        %v502 = vld [vmem:[#allocation5 + $0x2] sm:$0x1]
        %v503 = vlaneseq
        %v504 = vshrl.u32 %v503, 7
        %v505 = vsub.s32 0, %v504
        %v506 = vrot.slane %v502, %v505
        %507 = vmatprep.subr.mxu0 0.0
        %508 = vmatpush1.msra.mxu0 %v501
        %509 = vmatprep.subr.mxu0 0.0
        %510 = vmatpush1.msra.mxu0 %v500
        %511 = vmatprep.subr.mxu0 0.0
        %512 = vmatpush1.msra.mxu0 %v499
        %513 = vmatprep.subr.mxu0 0.0
        %514 = vmatpush1.msra.mxu0 %v498
        %515 = vmatprep.subr.mxu0 0.0
        %516 = vmatpush1.msra.mxu0 %v497
        %517 = vmatprep.subr.mxu0 0.0
        %518 = vmatpush1.msra.mxu0 %v496
        %519 = vmatprep.subr.mxu0 0.0
        %520 = vmatpush1.msra.mxu0 %v495
        %521 = vmatprep.subr.mxu0 0.0
        %522 = vmatpush1.msra.mxu0 %v494
        %523 = vmatprep.subr.mxu0 0.0
        %524 = vmatpush1.msra.mxu0 %v493
        %525 = vmatprep.subr.mxu0 0.0
        %526 = vmatpush1.msra.mxu0 %v492
        %527 = vmatprep.subr.mxu0 0.0
        %528 = vmatpush1.msra.mxu0 %v491
        %529 = vmatprep.subr.mxu0 0.0
        %530 = vmatpush1.msra.mxu0 %v490
        %531 = vmatprep.subr.mxu0 0.0
        %532 = vmatpush1.msra.mxu0 %v489
        %533 = vmatprep.subr.mxu0 0.0
        %534 = vmatpush1.msra.mxu0 %v488
        %535 = vmatprep.subr.mxu0 0.0
        %536 = vmatpush1.msra.mxu0 %v487
        %537 = vmatprep.subr.mxu0 0.0
        %538 = vmatpush1.msra.mxu0 %v486
        %539 = vmatprep.subr.mxu0 0.0
        %540 = vmatpush2.msra.mxu0 0.0
        %541 = vmatprep.subr.mxu0 0.0
        %542 = vmatpush2.msra.mxu0 0.0
        %543 = vmatprep.subr.mxu0 0.0
        %544 = vmatpush2.msra.mxu0 0.0
        %545 = vmatprep.subr.mxu0 0.0
        %546 = vmatpush2.msra.mxu0 0.0
        %547 = vmatprep.subr.mxu0 0.0
        %548 = vmatpush2.msra.mxu0 0.0
        %549 = vmatprep.subr.mxu0 0.0
        %550 = vmatpush2.msra.mxu0 0.0
        %551 = vmatprep.subr.mxu0 0.0
        %552 = vmatpush2.msra.mxu0 0.0
        %553 = vmatprep.subr.mxu0 0.0
        %554 = vmatpush2.msra.mxu0 0.0
        %555 = vmatprep.subr.mxu0 0.0
        %556 = vmatpush2.msra.mxu0 0.0
        %557 = vmatprep.subr.mxu0 0.0
        %558 = vmatpush2.msra.mxu0 0.0
        %559 = vmatprep.subr.mxu0 0.0
        %560 = vmatpush2.msra.mxu0 0.0
        %561 = vmatprep.subr.mxu0 0.0
        %562 = vmatpush2.msra.mxu0 0.0
        %563 = vmatprep.subr.mxu0 0.0
        %564 = vmatpush2.msra.mxu0 0.0
        %565 = vmatprep.subr.mxu0 0.0
        %566 = vmatpush2.msra.mxu0 0.0
        %567 = vmatprep.subr.mxu0 0.0
        %568 = vmatpush2.msra.mxu0 0.0
        %569 = vmatprep.subr.mxu0 0.0
        %570 = vmatpush2.msra.mxu0 0.0
        %571 = vmatprep.mubr.f32.mxu0 0.0
        %572 = vmatmul.mubr.f32.gmra.mxu0 %v422
        %v573 = vpop.f32.mrf.mxu0
        %v574 = vadd.f32 %v506, %v573
        %v575 = vpop.f32.mrf.mxu0
        %576 = vmatprep.mubr.f32.mxu0 0.0
        %577 = vmatmul.mubr.f32.gmra.mxu0 %v423
        %v578 = vpop.f32.mrf.mxu0
        %v579 = vadd.f32 %v506, %v578
        %v580 = vpop.f32.mrf.mxu0
        %581 = vmatprep.mubr.f32.mxu0 0.0
        %582 = vmatmul.mubr.f32.gmra.mxu0 %v424
        %v583 = vpop.f32.mrf.mxu0
        %v584 = vadd.f32 %v506, %v583
        %v585 = vpop.f32.mrf.mxu0
        %586 = vmatprep.mubr.f32.mxu0 0.0
        %587 = vmatmul.mubr.f32.gmra.mxu0 %v425
        %v588 = vpop.f32.mrf.mxu0
        %v589 = vadd.f32 %v506, %v588
        %v590 = vpop.f32.mrf.mxu0
        %591 = vmatprep.mubr.f32.mxu0 0.0
        %592 = vmatmul.mubr.f32.gmra.mxu0 %v426
        %v593 = vpop.f32.mrf.mxu0
        %v594 = vadd.f32 %v506, %v593
        %v595 = vpop.f32.mrf.mxu0
        %596 = vmatprep.mubr.f32.mxu0 0.0
        %597 = vmatmul.mubr.f32.gmra.mxu0 %v427
        %v598 = vpop.f32.mrf.mxu0
        %v599 = vadd.f32 %v506, %v598
        %v600 = vpop.f32.mrf.mxu0
        %601 = vmatprep.mubr.f32.mxu0 0.0
        %602 = vmatmul.mubr.f32.gmra.mxu0 %v428
        %v603 = vpop.f32.mrf.mxu0
        %v604 = vadd.f32 %v506, %v603
        %v605 = vpop.f32.mrf.mxu0
        %606 = vmatprep.mubr.f32.mxu0 0.0
        %607 = vmatmul.mubr.f32.gmra.mxu0 %v429
        %v608 = vpop.f32.mrf.mxu0
        %v609 = vadd.f32 %v506, %v608
        %v610 = vpop.f32.mrf.mxu0
        %611 = vmatprep.mubr.f32.mxu0 0.0
        %612 = vmatmul.mubr.f32.gmra.mxu0 %v430
        %v613 = vpop.f32.mrf.mxu0
        %v614 = vadd.f32 %v506, %v613
        %v615 = vpop.f32.mrf.mxu0
        %616 = vmatprep.mubr.f32.mxu0 0.0
        %617 = vmatmul.mubr.f32.gmra.mxu0 %v431
        %v618 = vpop.f32.mrf.mxu0
        %v619 = vadd.f32 %v506, %v618
        %v620 = vpop.f32.mrf.mxu0
        %621 = vmatprep.mubr.f32.mxu0 0.0
        %622 = vmatmul.mubr.f32.gmra.mxu0 %v432
        %v623 = vpop.f32.mrf.mxu0
        %v624 = vadd.f32 %v506, %v623
        %v625 = vpop.f32.mrf.mxu0
        %626 = vmatprep.mubr.f32.mxu0 0.0
        %627 = vmatmul.mubr.f32.gmra.mxu0 %v433
        %v628 = vpop.f32.mrf.mxu0
        %v629 = vadd.f32 %v506, %v628
        %v630 = vpop.f32.mrf.mxu0
        %631 = vmatprep.mubr.f32.mxu0 0.0
        %632 = vmatmul.mubr.f32.gmra.mxu0 %v434
        %v633 = vpop.f32.mrf.mxu0
        %v634 = vadd.f32 %v506, %v633
        %v635 = vpop.f32.mrf.mxu0
        %636 = vmatprep.mubr.f32.mxu0 0.0
        %637 = vmatmul.mubr.f32.gmra.mxu0 %v435
        %v638 = vpop.f32.mrf.mxu0
        %v639 = vadd.f32 %v506, %v638
        %v640 = vpop.f32.mrf.mxu0
        %641 = vmatprep.mubr.f32.mxu0 0.0
        %642 = vmatmul.mubr.f32.gmra.mxu0 %v436
        %v643 = vpop.f32.mrf.mxu0
        %v644 = vadd.f32 %v506, %v643
        %v645 = vpop.f32.mrf.mxu0
        %646 = vmatprep.mubr.f32.mxu0 0.0
        %647 = vmatmul.mubr.f32.gmra.mxu0 %v437
        %v648 = vpop.f32.mrf.mxu0
        %v649 = vadd.f32 %v506, %v648
        %v650 = vpop.f32.mrf.mxu0
        %651 = vmatprep.mubr.f32.mxu0 0.0
        %652 = vmatmul.mubr.f32.gmra.mxu0 %v438
        %v653 = vpop.f32.mrf.mxu0
        %v654 = vadd.f32 %v506, %v653
        %v655 = vpop.f32.mrf.mxu0
        %656 = vmatprep.mubr.f32.mxu0 0.0
        %657 = vmatmul.mubr.f32.gmra.mxu0 %v439
        %v658 = vpop.f32.mrf.mxu0
        %v659 = vadd.f32 %v506, %v658
        %v660 = vpop.f32.mrf.mxu0
        %661 = vmatprep.mubr.f32.mxu0 0.0
        %662 = vmatmul.mubr.f32.gmra.mxu0 %v440
        %v663 = vpop.f32.mrf.mxu0
        %v664 = vadd.f32 %v506, %v663
        %v665 = vpop.f32.mrf.mxu0
        %666 = vmatprep.mubr.f32.mxu0 0.0
        %667 = vmatmul.mubr.f32.gmra.mxu0 %v441
        %v668 = vpop.f32.mrf.mxu0
        %v669 = vadd.f32 %v506, %v668
        %v670 = vpop.f32.mrf.mxu0
        %671 = vmatprep.mubr.f32.mxu0 0.0
        %672 = vmatmul.mubr.f32.gmra.mxu0 %v442
        %v673 = vpop.f32.mrf.mxu0
        %v674 = vadd.f32 %v506, %v673
        %v675 = vpop.f32.mrf.mxu0
        %676 = vmatprep.mubr.f32.mxu0 0.0
        %677 = vmatmul.mubr.f32.gmra.mxu0 %v443
        %v678 = vpop.f32.mrf.mxu0
        %v679 = vadd.f32 %v506, %v678
        %v680 = vpop.f32.mrf.mxu0
        %681 = vmatprep.mubr.f32.mxu0 0.0
        %682 = vmatmul.mubr.f32.gmra.mxu0 %v444
        %v683 = vpop.f32.mrf.mxu0
        %v684 = vadd.f32 %v506, %v683
        %v685 = vpop.f32.mrf.mxu0
        %686 = vmatprep.mubr.f32.mxu0 0.0
        %687 = vmatmul.mubr.f32.gmra.mxu0 %v445
        %v688 = vpop.f32.mrf.mxu0
        %v689 = vadd.f32 %v506, %v688
        %v690 = vpop.f32.mrf.mxu0
        %691 = vmatprep.mubr.f32.mxu0 0.0
        %692 = vmatmul.mubr.f32.gmra.mxu0 %v446
        %v693 = vpop.f32.mrf.mxu0
        %v694 = vadd.f32 %v506, %v693
        %v695 = vpop.f32.mrf.mxu0
        %696 = vmatprep.mubr.f32.mxu0 0.0
        %697 = vmatmul.mubr.f32.gmra.mxu0 %v447
        %v698 = vpop.f32.mrf.mxu0
        %v699 = vadd.f32 %v506, %v698
        %v700 = vpop.f32.mrf.mxu0
        %701 = vmatprep.mubr.f32.mxu0 0.0
        %702 = vmatmul.mubr.f32.gmra.mxu0 %v448
        %v703 = vpop.f32.mrf.mxu0
        %v704 = vadd.f32 %v506, %v703
        %v705 = vpop.f32.mrf.mxu0
        %706 = vmatprep.mubr.f32.mxu0 0.0
        %707 = vmatmul.mubr.f32.gmra.mxu0 %v449
        %v708 = vpop.f32.mrf.mxu0
        %v709 = vadd.f32 %v506, %v708
        %v710 = vpop.f32.mrf.mxu0
        %711 = vmatprep.mubr.f32.mxu0 0.0
        %712 = vmatmul.mubr.f32.gmra.mxu0 %v450
        %v713 = vpop.f32.mrf.mxu0
        %v714 = vadd.f32 %v506, %v713
        %v715 = vpop.f32.mrf.mxu0
        %716 = vmatprep.mubr.f32.mxu0 0.0
        %717 = vmatmul.mubr.f32.gmra.mxu0 %v451
        %v718 = vpop.f32.mrf.mxu0
        %v719 = vadd.f32 %v506, %v718
        %v720 = vpop.f32.mrf.mxu0
        %721 = vmatprep.mubr.f32.mxu0 0.0
        %722 = vmatmul.mubr.f32.gmra.mxu0 %v452
        %v723 = vpop.f32.mrf.mxu0
        %v724 = vadd.f32 %v506, %v723
        %v725 = vpop.f32.mrf.mxu0
        %726 = vmatprep.mubr.f32.mxu0 0.0
        %727 = vmatmul.mubr.f32.gmra.mxu0 %v453
        %v728 = vpop.f32.mrf.mxu0
        %v729 = vadd.f32 %v506, %v728
        %v730 = vpop.f32.mrf.mxu0
        %731 = vmatprep.mubr.f32.mxu0 0.0
        %732 = vmatmul.mubr.f32.gmra.mxu0 %v454
        %v733 = vpop.f32.mrf.mxu0
        %v734 = vadd.f32 %v506, %v733
        %v735 = vpop.f32.mrf.mxu0
        %736 = vmatprep.mubr.f32.mxu0 0.0
        %737 = vmatmul.mubr.f32.gmra.mxu0 %v455
        %v738 = vpop.f32.mrf.mxu0
        %v739 = vadd.f32 %v506, %v738
        %v740 = vpop.f32.mrf.mxu0
        %741 = vmatprep.mubr.f32.mxu0 0.0
        %742 = vmatmul.mubr.f32.gmra.mxu0 %v456
        %v743 = vpop.f32.mrf.mxu0
        %v744 = vadd.f32 %v506, %v743
        %v745 = vpop.f32.mrf.mxu0
        %746 = vmatprep.mubr.f32.mxu0 0.0
        %747 = vmatmul.mubr.f32.gmra.mxu0 %v457
        %v748 = vpop.f32.mrf.mxu0
        %v749 = vadd.f32 %v506, %v748
        %v750 = vpop.f32.mrf.mxu0
        %751 = vmatprep.mubr.f32.mxu0 0.0
        %752 = vmatmul.mubr.f32.gmra.mxu0 %v458
        %v753 = vpop.f32.mrf.mxu0
        %v754 = vadd.f32 %v506, %v753
        %v755 = vpop.f32.mrf.mxu0
        %756 = vmatprep.mubr.f32.mxu0 0.0
        %757 = vmatmul.mubr.f32.gmra.mxu0 %v459
        %v758 = vpop.f32.mrf.mxu0
        %v759 = vadd.f32 %v506, %v758
        %v760 = vpop.f32.mrf.mxu0
        %761 = vmatprep.mubr.f32.mxu0 0.0
        %762 = vmatmul.mubr.f32.gmra.mxu0 %v460
        %v763 = vpop.f32.mrf.mxu0
        %v764 = vadd.f32 %v506, %v763
        %v765 = vpop.f32.mrf.mxu0
        %766 = vmatprep.mubr.f32.mxu0 0.0
        %767 = vmatmul.mubr.f32.gmra.mxu0 %v461
        %v768 = vpop.f32.mrf.mxu0
        %v769 = vadd.f32 %v506, %v768
        %v770 = vpop.f32.mrf.mxu0
        %771 = vmatprep.mubr.f32.mxu0 0.0
        %772 = vmatmul.mubr.f32.gmra.mxu0 %v462
        %v773 = vpop.f32.mrf.mxu0
        %v774 = vadd.f32 %v506, %v773
        %v775 = vpop.f32.mrf.mxu0
        %776 = vmatprep.mubr.f32.mxu0 0.0
        %777 = vmatmul.mubr.f32.gmra.mxu0 %v463
        %v778 = vpop.f32.mrf.mxu0
        %v779 = vadd.f32 %v506, %v778
        %v780 = vpop.f32.mrf.mxu0
        %781 = vmatprep.mubr.f32.mxu0 0.0
        %782 = vmatmul.mubr.f32.gmra.mxu0 %v464
        %v783 = vpop.f32.mrf.mxu0
        %v784 = vadd.f32 %v506, %v783
        %v785 = vpop.f32.mrf.mxu0
        %786 = vmatprep.mubr.f32.mxu0 0.0
        %787 = vmatmul.mubr.f32.gmra.mxu0 %v465
        %v788 = vpop.f32.mrf.mxu0
        %v789 = vadd.f32 %v506, %v788
        %v790 = vpop.f32.mrf.mxu0
        %791 = vmatprep.mubr.f32.mxu0 0.0
        %792 = vmatmul.mubr.f32.gmra.mxu0 %v466
        %v793 = vpop.f32.mrf.mxu0
        %v794 = vadd.f32 %v506, %v793
        %v795 = vpop.f32.mrf.mxu0
        %796 = vmatprep.mubr.f32.mxu0 0.0
        %797 = vmatmul.mubr.f32.gmra.mxu0 %v467
        %v798 = vpop.f32.mrf.mxu0
        %v799 = vadd.f32 %v506, %v798
        %v800 = vpop.f32.mrf.mxu0
        %801 = vmatprep.mubr.f32.mxu0 0.0
        %802 = vmatmul.mubr.f32.gmra.mxu0 %v468
        %v803 = vpop.f32.mrf.mxu0
        %v804 = vadd.f32 %v506, %v803
        %v805 = vpop.f32.mrf.mxu0
        %806 = vmatprep.mubr.f32.mxu0 0.0
        %807 = vmatmul.mubr.f32.gmra.mxu0 %v469
        %v808 = vpop.f32.mrf.mxu0
        %v809 = vadd.f32 %v506, %v808
        %v810 = vpop.f32.mrf.mxu0
        %811 = vmatprep.mubr.f32.mxu0 0.0
        %812 = vmatmul.mubr.f32.gmra.mxu0 %v470
        %v813 = vpop.f32.mrf.mxu0
        %v814 = vadd.f32 %v506, %v813
        %v815 = vpop.f32.mrf.mxu0
        %816 = vmatprep.mubr.f32.mxu0 0.0
        %817 = vmatmul.mubr.f32.gmra.mxu0 %v471
        %v818 = vpop.f32.mrf.mxu0
        %v819 = vadd.f32 %v506, %v818
        %v820 = vpop.f32.mrf.mxu0
        %821 = vmatprep.mubr.f32.mxu0 0.0
        %822 = vmatmul.mubr.f32.gmra.mxu0 %v472
        %v823 = vpop.f32.mrf.mxu0
        %v824 = vadd.f32 %v506, %v823
        %v825 = vpop.f32.mrf.mxu0
        %826 = vmatprep.mubr.f32.mxu0 0.0
        %827 = vmatmul.mubr.f32.gmra.mxu0 %v473
        %v828 = vpop.f32.mrf.mxu0
        %v829 = vadd.f32 %v506, %v828
        %v830 = vpop.f32.mrf.mxu0
        %831 = vmatprep.mubr.f32.mxu0 0.0
        %832 = vmatmul.mubr.f32.gmra.mxu0 %v474
        %v833 = vpop.f32.mrf.mxu0
        %v834 = vadd.f32 %v506, %v833
        %v835 = vpop.f32.mrf.mxu0
        %836 = vmatprep.mubr.f32.mxu0 0.0
        %837 = vmatmul.mubr.f32.gmra.mxu0 %v475
        %v838 = vpop.f32.mrf.mxu0
        %v839 = vadd.f32 %v506, %v838
        %v840 = vpop.f32.mrf.mxu0
        %841 = vmatprep.mubr.f32.mxu0 0.0
        %842 = vmatmul.mubr.f32.gmra.mxu0 %v476
        %v843 = vpop.f32.mrf.mxu0
        %v844 = vadd.f32 %v506, %v843
        %v845 = vpop.f32.mrf.mxu0
        %846 = vmatprep.mubr.f32.mxu0 0.0
        %847 = vmatmul.mubr.f32.gmra.mxu0 %v477
        %v848 = vpop.f32.mrf.mxu0
        %v849 = vadd.f32 %v506, %v848
        %v850 = vpop.f32.mrf.mxu0
        %851 = vmatprep.mubr.f32.mxu0 0.0
        %852 = vmatmul.mubr.f32.gmra.mxu0 %v478
        %v853 = vpop.f32.mrf.mxu0
        %v854 = vadd.f32 %v506, %v853
        %v855 = vpop.f32.mrf.mxu0
        %856 = vmatprep.mubr.f32.mxu0 0.0
        %857 = vmatmul.mubr.f32.gmra.mxu0 %v479
        %v858 = vpop.f32.mrf.mxu0
        %v859 = vadd.f32 %v506, %v858
        %v860 = vpop.f32.mrf.mxu0
        %861 = vmatprep.mubr.f32.mxu0 0.0
        %862 = vmatmul.mubr.f32.gmra.mxu0 %v480
        %v863 = vpop.f32.mrf.mxu0
        %v864 = vadd.f32 %v506, %v863
        %v865 = vpop.f32.mrf.mxu0
        %866 = vmatprep.mubr.f32.mxu0 0.0
        %867 = vmatmul.mubr.f32.gmra.mxu0 %v481
        %v868 = vpop.f32.mrf.mxu0
        %v869 = vadd.f32 %v506, %v868
        %v870 = vpop.f32.mrf.mxu0
        %871 = vmatprep.mubr.f32.mxu0 0.0
        %872 = vmatmul.mubr.f32.gmra.mxu0 %v482
        %v873 = vpop.f32.mrf.mxu0
        %v874 = vadd.f32 %v506, %v873
        %v875 = vpop.f32.mrf.mxu0
        %876 = vmatprep.mubr.f32.mxu0 0.0
        %877 = vmatmul.mubr.f32.gmra.mxu0 %v483
        %v878 = vpop.f32.mrf.mxu0
        %v879 = vadd.f32 %v506, %v878
        %v880 = vpop.f32.mrf.mxu0
        %881 = vmatprep.mubr.f32.mxu0 0.0
        %882 = vmatmul.mubr.f32.gmra.mxu0 %v484
        %v883 = vpop.f32.mrf.mxu0
        %v884 = vadd.f32 %v506, %v883
        %v885 = vpop.f32.mrf.mxu0
        %886 = vmatprep.mubr.f32.mxu0 0.0
        %887 = vmatmul.mubr.f32.gmra.mxu0 %v485
        %v888 = vpop.f32.mrf.mxu0
        %v889 = vadd.f32 %v506, %v888
        %v890 = vpop.f32.mrf.mxu0
        %891 = vdwg.mxu0
        %v892 = vld [vmem:[#allocation5 + $0x3] sm:$0x1]
        %v893 = vlaneseq
        %v894 = vshrl.u32 %v893, 7
        %v895 = vsub.s32 0, %v894
        %v896 = vrot.slane %v892, %v895
        %v897 = vmul.f32 %v574, %v896
        %v898 = vmul.f32 %v579, %v896
        %v899 = vmul.f32 %v584, %v896
        %v900 = vmul.f32 %v589, %v896
        %v901 = vmul.f32 %v594, %v896
        %v902 = vmul.f32 %v599, %v896
        %v903 = vmul.f32 %v604, %v896
        %v904 = vmul.f32 %v609, %v896
        %v905 = vmul.f32 %v614, %v896
        %v906 = vmul.f32 %v619, %v896
        %v907 = vmul.f32 %v624, %v896
        %v908 = vmul.f32 %v629, %v896
        %v909 = vmul.f32 %v634, %v896
        %v910 = vmul.f32 %v639, %v896
        %v911 = vmul.f32 %v644, %v896
        %v912 = vmul.f32 %v649, %v896
        %v913 = vmul.f32 %v654, %v896
        %v914 = vmul.f32 %v659, %v896
        %v915 = vmul.f32 %v664, %v896
        %v916 = vmul.f32 %v669, %v896
        %v917 = vmul.f32 %v674, %v896
        %v918 = vmul.f32 %v679, %v896
        %v919 = vmul.f32 %v684, %v896
        %v920 = vmul.f32 %v689, %v896
        %v921 = vmul.f32 %v694, %v896
        %v922 = vmul.f32 %v699, %v896
        %v923 = vmul.f32 %v704, %v896
        %v924 = vmul.f32 %v709, %v896
        %v925 = vmul.f32 %v714, %v896
        %v926 = vmul.f32 %v719, %v896
        %v927 = vmul.f32 %v724, %v896
        %v928 = vmul.f32 %v729, %v896
        %v929 = vmul.f32 %v734, %v896
        %v930 = vmul.f32 %v739, %v896
        %v931 = vmul.f32 %v744, %v896
        %v932 = vmul.f32 %v749, %v896
        %v933 = vmul.f32 %v754, %v896
        %v934 = vmul.f32 %v759, %v896
        %v935 = vmul.f32 %v764, %v896
        %v936 = vmul.f32 %v769, %v896
        %v937 = vmul.f32 %v774, %v896
        %v938 = vmul.f32 %v779, %v896
        %v939 = vmul.f32 %v784, %v896
        %v940 = vmul.f32 %v789, %v896
        %v941 = vmul.f32 %v794, %v896
        %v942 = vmul.f32 %v799, %v896
        %v943 = vmul.f32 %v804, %v896
        %v944 = vmul.f32 %v809, %v896
        %v945 = vmul.f32 %v814, %v896
        %v946 = vmul.f32 %v819, %v896
        %v947 = vmul.f32 %v824, %v896
        %v948 = vmul.f32 %v829, %v896
        %v949 = vmul.f32 %v834, %v896
        %v950 = vmul.f32 %v839, %v896
        %v951 = vmul.f32 %v844, %v896
        %v952 = vmul.f32 %v849, %v896
        %v953 = vmul.f32 %v854, %v896
        %v954 = vmul.f32 %v859, %v896
        %v955 = vmul.f32 %v864, %v896
        %v956 = vmul.f32 %v869, %v896
        %v957 = vmul.f32 %v874, %v896
        %v958 = vmul.f32 %v879, %v896
        %v959 = vmul.f32 %v884, %v896
        %v960 = vmul.f32 %v889, %v896
        %v961 = vld [vmem:[#allocation5 + $0x4] sm:$0x1]
        %v962 = vlaneseq
        %v963 = vshrl.u32 %v962, 7
        %v964 = vsub.s32 0, %v963
        %v965 = vrot.slane %v961, %v964
        %v966 = vadd.f32 %v897, %v965
        %v967 = vadd.f32 %v898, %v965
        %v968 = vadd.f32 %v899, %v965
        %v969 = vadd.f32 %v900, %v965
        %v970 = vadd.f32 %v901, %v965
        %v971 = vadd.f32 %v902, %v965
        %v972 = vadd.f32 %v903, %v965
        %v973 = vadd.f32 %v904, %v965
        %v974 = vadd.f32 %v905, %v965
        %v975 = vadd.f32 %v906, %v965
        %v976 = vadd.f32 %v907, %v965
        %v977 = vadd.f32 %v908, %v965
        %v978 = vadd.f32 %v909, %v965
        %v979 = vadd.f32 %v910, %v965
        %v980 = vadd.f32 %v911, %v965
        %v981 = vadd.f32 %v912, %v965
        %v982 = vadd.f32 %v913, %v965
        %v983 = vadd.f32 %v914, %v965
        %v984 = vadd.f32 %v915, %v965
        %v985 = vadd.f32 %v916, %v965
        %v986 = vadd.f32 %v917, %v965
        %v987 = vadd.f32 %v918, %v965
        %v988 = vadd.f32 %v919, %v965
        %v989 = vadd.f32 %v920, %v965
        %v990 = vadd.f32 %v921, %v965
        %v991 = vadd.f32 %v922, %v965
        %v992 = vadd.f32 %v923, %v965
        %v993 = vadd.f32 %v924, %v965
        %v994 = vadd.f32 %v925, %v965
        %v995 = vadd.f32 %v926, %v965
        %v996 = vadd.f32 %v927, %v965
        %v997 = vadd.f32 %v928, %v965
        %v998 = vadd.f32 %v929, %v965
        %v999 = vadd.f32 %v930, %v965
        %v1000 = vadd.f32 %v931, %v965
        %v1001 = vadd.f32 %v932, %v965
        %v1002 = vadd.f32 %v933, %v965
        %v1003 = vadd.f32 %v934, %v965
        %v1004 = vadd.f32 %v935, %v965
        %v1005 = vadd.f32 %v936, %v965
        %v1006 = vadd.f32 %v937, %v965
        %v1007 = vadd.f32 %v938, %v965
        %v1008 = vadd.f32 %v939, %v965
        %v1009 = vadd.f32 %v940, %v965
        %v1010 = vadd.f32 %v941, %v965
        %v1011 = vadd.f32 %v942, %v965
        %v1012 = vadd.f32 %v943, %v965
        %v1013 = vadd.f32 %v944, %v965
        %v1014 = vadd.f32 %v945, %v965
        %v1015 = vadd.f32 %v946, %v965
        %v1016 = vadd.f32 %v947, %v965
        %v1017 = vadd.f32 %v948, %v965
        %v1018 = vadd.f32 %v949, %v965
        %v1019 = vadd.f32 %v950, %v965
        %v1020 = vadd.f32 %v951, %v965
        %v1021 = vadd.f32 %v952, %v965
        %v1022 = vadd.f32 %v953, %v965
        %v1023 = vadd.f32 %v954, %v965
        %v1024 = vadd.f32 %v955, %v965
        %v1025 = vadd.f32 %v956, %v965
        %v1026 = vadd.f32 %v957, %v965
        %v1027 = vadd.f32 %v958, %v965
        %v1028 = vadd.f32 %v959, %v965
        %v1029 = vadd.f32 %v960, %v965
        %v1030 = vtanh.pop %v966
        %v1031 = vtanh.pop %v967
        %v1032 = vtanh.pop %v968
        %v1033 = vtanh.pop %v969
        %v1034 = vtanh.pop %v970
        %v1035 = vtanh.pop %v971
        %v1036 = vtanh.pop %v972
        %v1037 = vtanh.pop %v973
        %v1038 = vtanh.pop %v974
        %v1039 = vtanh.pop %v975
        %v1040 = vtanh.pop %v976
        %v1041 = vtanh.pop %v977
        %v1042 = vtanh.pop %v978
        %v1043 = vtanh.pop %v979
        %v1044 = vtanh.pop %v980
        %v1045 = vtanh.pop %v981
        %v1046 = vtanh.pop %v982
        %v1047 = vtanh.pop %v983
        %v1048 = vtanh.pop %v984
        %v1049 = vtanh.pop %v985
        %v1050 = vtanh.pop %v986
        %v1051 = vtanh.pop %v987
        %v1052 = vtanh.pop %v988
        %v1053 = vtanh.pop %v989
        %v1054 = vtanh.pop %v990
        %v1055 = vtanh.pop %v991
        %v1056 = vtanh.pop %v992
        %v1057 = vtanh.pop %v993
        %v1058 = vtanh.pop %v994
        %v1059 = vtanh.pop %v995
        %v1060 = vtanh.pop %v996
        %v1061 = vtanh.pop %v997
        %v1062 = vtanh.pop %v998
        %v1063 = vtanh.pop %v999
        %v1064 = vtanh.pop %v1000
        %v1065 = vtanh.pop %v1001
        %v1066 = vtanh.pop %v1002
        %v1067 = vtanh.pop %v1003
        %v1068 = vtanh.pop %v1004
        %v1069 = vtanh.pop %v1005
        %v1070 = vtanh.pop %v1006
        %v1071 = vtanh.pop %v1007
        %v1072 = vtanh.pop %v1008
        %v1073 = vtanh.pop %v1009
        %v1074 = vtanh.pop %v1010
        %v1075 = vtanh.pop %v1011
        %v1076 = vtanh.pop %v1012
        %v1077 = vtanh.pop %v1013
        %v1078 = vtanh.pop %v1014
        %v1079 = vtanh.pop %v1015
        %v1080 = vtanh.pop %v1016
        %v1081 = vtanh.pop %v1017
        %v1082 = vtanh.pop %v1018
        %v1083 = vtanh.pop %v1019
        %v1084 = vtanh.pop %v1020
        %v1085 = vtanh.pop %v1021
        %v1086 = vtanh.pop %v1022
        %v1087 = vtanh.pop %v1023
        %v1088 = vtanh.pop %v1024
        %v1089 = vtanh.pop %v1025
        %v1090 = vtanh.pop %v1026
        %v1091 = vtanh.pop %v1027
        %v1092 = vtanh.pop %v1028
        %v1093 = vtanh.pop %v1029
        %s1094 = scalar_lea.vmem [#allocation7], 128
        %v1095 = vld [vmem:[%s1094] sm:$0xff]
        %v1096 = vld [vmem:[%s1094 + $0x8] sm:$0xff]
        %v1097 = vld [vmem:[%s1094 + $0x10] sm:$0xff]
        %v1098 = vld [vmem:[%s1094 + $0x18] sm:$0xff]
        %v1099 = vld [vmem:[%s1094 + $0x20] sm:$0xff]
        %v1100 = vld [vmem:[%s1094 + $0x28] sm:$0xff]
        %v1101 = vld [vmem:[%s1094 + $0x30] sm:$0xff]
        %v1102 = vld [vmem:[%s1094 + $0x38] sm:$0xff]
        %v1103 = vld [vmem:[%s1094 + $0x40] sm:$0xff]
        %v1104 = vld [vmem:[%s1094 + $0x48] sm:$0xff]
        %v1105 = vld [vmem:[%s1094 + $0x50] sm:$0xff]
        %v1106 = vld [vmem:[%s1094 + $0x58] sm:$0xff]
        %v1107 = vld [vmem:[%s1094 + $0x60] sm:$0xff]
        %v1108 = vld [vmem:[%s1094 + $0x68] sm:$0xff]
        %v1109 = vld [vmem:[%s1094 + $0x70] sm:$0xff]
        %v1110 = vld [vmem:[%s1094 + $0x78] sm:$0xff]
        %v1111 = vld [vmem:[#allocation5 + $0x5] sm:$0x1]
        %v1112 = vlaneseq
        %v1113 = vshrl.u32 %v1112, 7
        %v1114 = vsub.s32 0, %v1113
        %v1115 = vrot.slane %v1111, %v1114
        %1116 = vmatprep.subr.mxu0 0.0
        %1117 = vmatpush1.msra.mxu0 %v1110
        %1118 = vmatprep.subr.mxu0 0.0
        %1119 = vmatpush1.msra.mxu0 %v1109
        %1120 = vmatprep.subr.mxu0 0.0
        %1121 = vmatpush1.msra.mxu0 %v1108
        %1122 = vmatprep.subr.mxu0 0.0
        %1123 = vmatpush1.msra.mxu0 %v1107
        %1124 = vmatprep.subr.mxu0 0.0
        %1125 = vmatpush1.msra.mxu0 %v1106
        %1126 = vmatprep.subr.mxu0 0.0
        %1127 = vmatpush1.msra.mxu0 %v1105
        %1128 = vmatprep.subr.mxu0 0.0
        %1129 = vmatpush1.msra.mxu0 %v1104
        %1130 = vmatprep.subr.mxu0 0.0
        %1131 = vmatpush1.msra.mxu0 %v1103
        %1132 = vmatprep.subr.mxu0 0.0
        %1133 = vmatpush1.msra.mxu0 %v1102
        %1134 = vmatprep.subr.mxu0 0.0
        %1135 = vmatpush1.msra.mxu0 %v1101
        %1136 = vmatprep.subr.mxu0 0.0
        %1137 = vmatpush1.msra.mxu0 %v1100
        %1138 = vmatprep.subr.mxu0 0.0
        %1139 = vmatpush1.msra.mxu0 %v1099
        %1140 = vmatprep.subr.mxu0 0.0
        %1141 = vmatpush1.msra.mxu0 %v1098
        %1142 = vmatprep.subr.mxu0 0.0
        %1143 = vmatpush1.msra.mxu0 %v1097
        %1144 = vmatprep.subr.mxu0 0.0
        %1145 = vmatpush1.msra.mxu0 %v1096
        %1146 = vmatprep.subr.mxu0 0.0
        %1147 = vmatpush1.msra.mxu0 %v1095
        %1148 = vmatprep.subr.mxu0 0.0
        %1149 = vmatpush2.msra.mxu0 0.0
        %1150 = vmatprep.subr.mxu0 0.0
        %1151 = vmatpush2.msra.mxu0 0.0
        %1152 = vmatprep.subr.mxu0 0.0
        %1153 = vmatpush2.msra.mxu0 0.0
        %1154 = vmatprep.subr.mxu0 0.0
        %1155 = vmatpush2.msra.mxu0 0.0
        %1156 = vmatprep.subr.mxu0 0.0
        %1157 = vmatpush2.msra.mxu0 0.0
        %1158 = vmatprep.subr.mxu0 0.0
        %1159 = vmatpush2.msra.mxu0 0.0
        %1160 = vmatprep.subr.mxu0 0.0
        %1161 = vmatpush2.msra.mxu0 0.0
        %1162 = vmatprep.subr.mxu0 0.0
        %1163 = vmatpush2.msra.mxu0 0.0
        %1164 = vmatprep.subr.mxu0 0.0
        %1165 = vmatpush2.msra.mxu0 0.0
        %1166 = vmatprep.subr.mxu0 0.0
        %1167 = vmatpush2.msra.mxu0 0.0
        %1168 = vmatprep.subr.mxu0 0.0
        %1169 = vmatpush2.msra.mxu0 0.0
        %1170 = vmatprep.subr.mxu0 0.0
        %1171 = vmatpush2.msra.mxu0 0.0
        %1172 = vmatprep.subr.mxu0 0.0
        %1173 = vmatpush2.msra.mxu0 0.0
        %1174 = vmatprep.subr.mxu0 0.0
        %1175 = vmatpush2.msra.mxu0 0.0
        %1176 = vmatprep.subr.mxu0 0.0
        %1177 = vmatpush2.msra.mxu0 0.0
        %1178 = vmatprep.subr.mxu0 0.0
        %1179 = vmatpush2.msra.mxu0 0.0
        %1180 = vmatprep.mubr.f32.mxu0 0.0
        %1181 = vmatmul.mubr.f32.gmra.mxu0 %v1030
        %v1182 = vpop.f32.mrf.mxu0
        %v1183 = vadd.f32 %v1115, %v1182
        %v1184 = vpop.f32.mrf.mxu0
        %1185 = vmatprep.mubr.f32.mxu0 0.0
        %1186 = vmatmul.mubr.f32.gmra.mxu0 %v1031
        %v1187 = vpop.f32.mrf.mxu0
        %v1188 = vadd.f32 %v1115, %v1187
        %v1189 = vpop.f32.mrf.mxu0
        %1190 = vmatprep.mubr.f32.mxu0 0.0
        %1191 = vmatmul.mubr.f32.gmra.mxu0 %v1032
        %v1192 = vpop.f32.mrf.mxu0
        %v1193 = vadd.f32 %v1115, %v1192
        %v1194 = vpop.f32.mrf.mxu0
        %1195 = vmatprep.mubr.f32.mxu0 0.0
        %1196 = vmatmul.mubr.f32.gmra.mxu0 %v1033
        %v1197 = vpop.f32.mrf.mxu0
        %v1198 = vadd.f32 %v1115, %v1197
        %v1199 = vpop.f32.mrf.mxu0
        %1200 = vmatprep.mubr.f32.mxu0 0.0
        %1201 = vmatmul.mubr.f32.gmra.mxu0 %v1034
        %v1202 = vpop.f32.mrf.mxu0
        %v1203 = vadd.f32 %v1115, %v1202
        %v1204 = vpop.f32.mrf.mxu0
        %1205 = vmatprep.mubr.f32.mxu0 0.0
        %1206 = vmatmul.mubr.f32.gmra.mxu0 %v1035
        %v1207 = vpop.f32.mrf.mxu0
        %v1208 = vadd.f32 %v1115, %v1207
        %v1209 = vpop.f32.mrf.mxu0
        %1210 = vmatprep.mubr.f32.mxu0 0.0
        %1211 = vmatmul.mubr.f32.gmra.mxu0 %v1036
        %v1212 = vpop.f32.mrf.mxu0
        %v1213 = vadd.f32 %v1115, %v1212
        %v1214 = vpop.f32.mrf.mxu0
        %1215 = vmatprep.mubr.f32.mxu0 0.0
        %1216 = vmatmul.mubr.f32.gmra.mxu0 %v1037
        %v1217 = vpop.f32.mrf.mxu0
        %v1218 = vadd.f32 %v1115, %v1217
        %v1219 = vpop.f32.mrf.mxu0
        %1220 = vmatprep.mubr.f32.mxu0 0.0
        %1221 = vmatmul.mubr.f32.gmra.mxu0 %v1038
        %v1222 = vpop.f32.mrf.mxu0
        %v1223 = vadd.f32 %v1115, %v1222
        %v1224 = vpop.f32.mrf.mxu0
        %1225 = vmatprep.mubr.f32.mxu0 0.0
        %1226 = vmatmul.mubr.f32.gmra.mxu0 %v1039
        %v1227 = vpop.f32.mrf.mxu0
        %v1228 = vadd.f32 %v1115, %v1227
        %v1229 = vpop.f32.mrf.mxu0
        %1230 = vmatprep.mubr.f32.mxu0 0.0
        %1231 = vmatmul.mubr.f32.gmra.mxu0 %v1040
        %v1232 = vpop.f32.mrf.mxu0
        %v1233 = vadd.f32 %v1115, %v1232
        %v1234 = vpop.f32.mrf.mxu0
        %1235 = vmatprep.mubr.f32.mxu0 0.0
        %1236 = vmatmul.mubr.f32.gmra.mxu0 %v1041
        %v1237 = vpop.f32.mrf.mxu0
        %v1238 = vadd.f32 %v1115, %v1237
        %v1239 = vpop.f32.mrf.mxu0
        %1240 = vmatprep.mubr.f32.mxu0 0.0
        %1241 = vmatmul.mubr.f32.gmra.mxu0 %v1042
        %v1242 = vpop.f32.mrf.mxu0
        %v1243 = vadd.f32 %v1115, %v1242
        %v1244 = vpop.f32.mrf.mxu0
        %1245 = vmatprep.mubr.f32.mxu0 0.0
        %1246 = vmatmul.mubr.f32.gmra.mxu0 %v1043
        %v1247 = vpop.f32.mrf.mxu0
        %v1248 = vadd.f32 %v1115, %v1247
        %v1249 = vpop.f32.mrf.mxu0
        %1250 = vmatprep.mubr.f32.mxu0 0.0
        %1251 = vmatmul.mubr.f32.gmra.mxu0 %v1044
        %v1252 = vpop.f32.mrf.mxu0
        %v1253 = vadd.f32 %v1115, %v1252
        %v1254 = vpop.f32.mrf.mxu0
        %1255 = vmatprep.mubr.f32.mxu0 0.0
        %1256 = vmatmul.mubr.f32.gmra.mxu0 %v1045
        %v1257 = vpop.f32.mrf.mxu0
        %v1258 = vadd.f32 %v1115, %v1257
        %v1259 = vpop.f32.mrf.mxu0
        %1260 = vmatprep.mubr.f32.mxu0 0.0
        %1261 = vmatmul.mubr.f32.gmra.mxu0 %v1046
        %v1262 = vpop.f32.mrf.mxu0
        %v1263 = vadd.f32 %v1115, %v1262
        %v1264 = vpop.f32.mrf.mxu0
        %1265 = vmatprep.mubr.f32.mxu0 0.0
        %1266 = vmatmul.mubr.f32.gmra.mxu0 %v1047
        %v1267 = vpop.f32.mrf.mxu0
        %v1268 = vadd.f32 %v1115, %v1267
        %v1269 = vpop.f32.mrf.mxu0
        %1270 = vmatprep.mubr.f32.mxu0 0.0
        %1271 = vmatmul.mubr.f32.gmra.mxu0 %v1048
        %v1272 = vpop.f32.mrf.mxu0
        %v1273 = vadd.f32 %v1115, %v1272
        %v1274 = vpop.f32.mrf.mxu0
        %1275 = vmatprep.mubr.f32.mxu0 0.0
        %1276 = vmatmul.mubr.f32.gmra.mxu0 %v1049
        %v1277 = vpop.f32.mrf.mxu0
        %v1278 = vadd.f32 %v1115, %v1277
        %v1279 = vpop.f32.mrf.mxu0
        %1280 = vmatprep.mubr.f32.mxu0 0.0
        %1281 = vmatmul.mubr.f32.gmra.mxu0 %v1050
        %v1282 = vpop.f32.mrf.mxu0
        %v1283 = vadd.f32 %v1115, %v1282
        %v1284 = vpop.f32.mrf.mxu0
        %1285 = vmatprep.mubr.f32.mxu0 0.0
        %1286 = vmatmul.mubr.f32.gmra.mxu0 %v1051
        %v1287 = vpop.f32.mrf.mxu0
        %v1288 = vadd.f32 %v1115, %v1287
        %v1289 = vpop.f32.mrf.mxu0
        %1290 = vmatprep.mubr.f32.mxu0 0.0
        %1291 = vmatmul.mubr.f32.gmra.mxu0 %v1052
        %v1292 = vpop.f32.mrf.mxu0
        %v1293 = vadd.f32 %v1115, %v1292
        %v1294 = vpop.f32.mrf.mxu0
        %1295 = vmatprep.mubr.f32.mxu0 0.0
        %1296 = vmatmul.mubr.f32.gmra.mxu0 %v1053
        %v1297 = vpop.f32.mrf.mxu0
        %v1298 = vadd.f32 %v1115, %v1297
        %v1299 = vpop.f32.mrf.mxu0
        %1300 = vmatprep.mubr.f32.mxu0 0.0
        %1301 = vmatmul.mubr.f32.gmra.mxu0 %v1054
        %v1302 = vpop.f32.mrf.mxu0
        %v1303 = vadd.f32 %v1115, %v1302
        %v1304 = vpop.f32.mrf.mxu0
        %1305 = vmatprep.mubr.f32.mxu0 0.0
        %1306 = vmatmul.mubr.f32.gmra.mxu0 %v1055
        %v1307 = vpop.f32.mrf.mxu0
        %v1308 = vadd.f32 %v1115, %v1307
        %v1309 = vpop.f32.mrf.mxu0
        %1310 = vmatprep.mubr.f32.mxu0 0.0
        %1311 = vmatmul.mubr.f32.gmra.mxu0 %v1056
        %v1312 = vpop.f32.mrf.mxu0
        %v1313 = vadd.f32 %v1115, %v1312
        %v1314 = vpop.f32.mrf.mxu0
        %1315 = vmatprep.mubr.f32.mxu0 0.0
        %1316 = vmatmul.mubr.f32.gmra.mxu0 %v1057
        %v1317 = vpop.f32.mrf.mxu0
        %v1318 = vadd.f32 %v1115, %v1317
        %v1319 = vpop.f32.mrf.mxu0
        %1320 = vmatprep.mubr.f32.mxu0 0.0
        %1321 = vmatmul.mubr.f32.gmra.mxu0 %v1058
        %v1322 = vpop.f32.mrf.mxu0
        %v1323 = vadd.f32 %v1115, %v1322
        %v1324 = vpop.f32.mrf.mxu0
        %1325 = vmatprep.mubr.f32.mxu0 0.0
        %1326 = vmatmul.mubr.f32.gmra.mxu0 %v1059
        %v1327 = vpop.f32.mrf.mxu0
        %v1328 = vadd.f32 %v1115, %v1327
        %v1329 = vpop.f32.mrf.mxu0
        %1330 = vmatprep.mubr.f32.mxu0 0.0
        %1331 = vmatmul.mubr.f32.gmra.mxu0 %v1060
        %v1332 = vpop.f32.mrf.mxu0
        %v1333 = vadd.f32 %v1115, %v1332
        %v1334 = vpop.f32.mrf.mxu0
        %1335 = vmatprep.mubr.f32.mxu0 0.0
        %1336 = vmatmul.mubr.f32.gmra.mxu0 %v1061
        %v1337 = vpop.f32.mrf.mxu0
        %v1338 = vadd.f32 %v1115, %v1337
        %v1339 = vpop.f32.mrf.mxu0
        %1340 = vmatprep.mubr.f32.mxu0 0.0
        %1341 = vmatmul.mubr.f32.gmra.mxu0 %v1062
        %v1342 = vpop.f32.mrf.mxu0
        %v1343 = vadd.f32 %v1115, %v1342
        %v1344 = vpop.f32.mrf.mxu0
        %1345 = vmatprep.mubr.f32.mxu0 0.0
        %1346 = vmatmul.mubr.f32.gmra.mxu0 %v1063
        %v1347 = vpop.f32.mrf.mxu0
        %v1348 = vadd.f32 %v1115, %v1347
        %v1349 = vpop.f32.mrf.mxu0
        %1350 = vmatprep.mubr.f32.mxu0 0.0
        %1351 = vmatmul.mubr.f32.gmra.mxu0 %v1064
        %v1352 = vpop.f32.mrf.mxu0
        %v1353 = vadd.f32 %v1115, %v1352
        %v1354 = vpop.f32.mrf.mxu0
        %1355 = vmatprep.mubr.f32.mxu0 0.0
        %1356 = vmatmul.mubr.f32.gmra.mxu0 %v1065
        %v1357 = vpop.f32.mrf.mxu0
        %v1358 = vadd.f32 %v1115, %v1357
        %v1359 = vpop.f32.mrf.mxu0
        %1360 = vmatprep.mubr.f32.mxu0 0.0
        %1361 = vmatmul.mubr.f32.gmra.mxu0 %v1066
        %v1362 = vpop.f32.mrf.mxu0
        %v1363 = vadd.f32 %v1115, %v1362
        %v1364 = vpop.f32.mrf.mxu0
        %1365 = vmatprep.mubr.f32.mxu0 0.0
        %1366 = vmatmul.mubr.f32.gmra.mxu0 %v1067
        %v1367 = vpop.f32.mrf.mxu0
        %v1368 = vadd.f32 %v1115, %v1367
        %v1369 = vpop.f32.mrf.mxu0
        %1370 = vmatprep.mubr.f32.mxu0 0.0
        %1371 = vmatmul.mubr.f32.gmra.mxu0 %v1068
        %v1372 = vpop.f32.mrf.mxu0
        %v1373 = vadd.f32 %v1115, %v1372
        %v1374 = vpop.f32.mrf.mxu0
        %1375 = vmatprep.mubr.f32.mxu0 0.0
        %1376 = vmatmul.mubr.f32.gmra.mxu0 %v1069
        %v1377 = vpop.f32.mrf.mxu0
        %v1378 = vadd.f32 %v1115, %v1377
        %v1379 = vpop.f32.mrf.mxu0
        %1380 = vmatprep.mubr.f32.mxu0 0.0
        %1381 = vmatmul.mubr.f32.gmra.mxu0 %v1070
        %v1382 = vpop.f32.mrf.mxu0
        %v1383 = vadd.f32 %v1115, %v1382
        %v1384 = vpop.f32.mrf.mxu0
        %1385 = vmatprep.mubr.f32.mxu0 0.0
        %1386 = vmatmul.mubr.f32.gmra.mxu0 %v1071
        %v1387 = vpop.f32.mrf.mxu0
        %v1388 = vadd.f32 %v1115, %v1387
        %v1389 = vpop.f32.mrf.mxu0
        %1390 = vmatprep.mubr.f32.mxu0 0.0
        %1391 = vmatmul.mubr.f32.gmra.mxu0 %v1072
        %v1392 = vpop.f32.mrf.mxu0
        %v1393 = vadd.f32 %v1115, %v1392
        %v1394 = vpop.f32.mrf.mxu0
        %1395 = vmatprep.mubr.f32.mxu0 0.0
        %1396 = vmatmul.mubr.f32.gmra.mxu0 %v1073
        %v1397 = vpop.f32.mrf.mxu0
        %v1398 = vadd.f32 %v1115, %v1397
        %v1399 = vpop.f32.mrf.mxu0
        %1400 = vmatprep.mubr.f32.mxu0 0.0
        %1401 = vmatmul.mubr.f32.gmra.mxu0 %v1074
        %v1402 = vpop.f32.mrf.mxu0
        %v1403 = vadd.f32 %v1115, %v1402
        %v1404 = vpop.f32.mrf.mxu0
        %1405 = vmatprep.mubr.f32.mxu0 0.0
        %1406 = vmatmul.mubr.f32.gmra.mxu0 %v1075
        %v1407 = vpop.f32.mrf.mxu0
        %v1408 = vadd.f32 %v1115, %v1407
        %v1409 = vpop.f32.mrf.mxu0
        %1410 = vmatprep.mubr.f32.mxu0 0.0
        %1411 = vmatmul.mubr.f32.gmra.mxu0 %v1076
        %v1412 = vpop.f32.mrf.mxu0
        %v1413 = vadd.f32 %v1115, %v1412
        %v1414 = vpop.f32.mrf.mxu0
        %1415 = vmatprep.mubr.f32.mxu0 0.0
        %1416 = vmatmul.mubr.f32.gmra.mxu0 %v1077
        %v1417 = vpop.f32.mrf.mxu0
        %v1418 = vadd.f32 %v1115, %v1417
        %v1419 = vpop.f32.mrf.mxu0
        %1420 = vmatprep.mubr.f32.mxu0 0.0
        %1421 = vmatmul.mubr.f32.gmra.mxu0 %v1078
        %v1422 = vpop.f32.mrf.mxu0
        %v1423 = vadd.f32 %v1115, %v1422
        %v1424 = vpop.f32.mrf.mxu0
        %1425 = vmatprep.mubr.f32.mxu0 0.0
        %1426 = vmatmul.mubr.f32.gmra.mxu0 %v1079
        %v1427 = vpop.f32.mrf.mxu0
        %v1428 = vadd.f32 %v1115, %v1427
        %v1429 = vpop.f32.mrf.mxu0
        %1430 = vmatprep.mubr.f32.mxu0 0.0
        %1431 = vmatmul.mubr.f32.gmra.mxu0 %v1080
        %v1432 = vpop.f32.mrf.mxu0
        %v1433 = vadd.f32 %v1115, %v1432
        %v1434 = vpop.f32.mrf.mxu0
        %1435 = vmatprep.mubr.f32.mxu0 0.0
        %1436 = vmatmul.mubr.f32.gmra.mxu0 %v1081
        %v1437 = vpop.f32.mrf.mxu0
        %v1438 = vadd.f32 %v1115, %v1437
        %v1439 = vpop.f32.mrf.mxu0
        %1440 = vmatprep.mubr.f32.mxu0 0.0
        %1441 = vmatmul.mubr.f32.gmra.mxu0 %v1082
        %v1442 = vpop.f32.mrf.mxu0
        %v1443 = vadd.f32 %v1115, %v1442
        %v1444 = vpop.f32.mrf.mxu0
        %1445 = vmatprep.mubr.f32.mxu0 0.0
        %1446 = vmatmul.mubr.f32.gmra.mxu0 %v1083
        %v1447 = vpop.f32.mrf.mxu0
        %v1448 = vadd.f32 %v1115, %v1447
        %v1449 = vpop.f32.mrf.mxu0
        %1450 = vmatprep.mubr.f32.mxu0 0.0
        %1451 = vmatmul.mubr.f32.gmra.mxu0 %v1084
        %v1452 = vpop.f32.mrf.mxu0
        %v1453 = vadd.f32 %v1115, %v1452
        %v1454 = vpop.f32.mrf.mxu0
        %1455 = vmatprep.mubr.f32.mxu0 0.0
        %1456 = vmatmul.mubr.f32.gmra.mxu0 %v1085
        %v1457 = vpop.f32.mrf.mxu0
        %v1458 = vadd.f32 %v1115, %v1457
        %v1459 = vpop.f32.mrf.mxu0
        %1460 = vmatprep.mubr.f32.mxu0 0.0
        %1461 = vmatmul.mubr.f32.gmra.mxu0 %v1086
        %v1462 = vpop.f32.mrf.mxu0
        %v1463 = vadd.f32 %v1115, %v1462
        %v1464 = vpop.f32.mrf.mxu0
        %1465 = vmatprep.mubr.f32.mxu0 0.0
        %1466 = vmatmul.mubr.f32.gmra.mxu0 %v1087
        %v1467 = vpop.f32.mrf.mxu0
        %v1468 = vadd.f32 %v1115, %v1467
        %v1469 = vpop.f32.mrf.mxu0
        %1470 = vmatprep.mubr.f32.mxu0 0.0
        %1471 = vmatmul.mubr.f32.gmra.mxu0 %v1088
        %v1472 = vpop.f32.mrf.mxu0
        %v1473 = vadd.f32 %v1115, %v1472
        %v1474 = vpop.f32.mrf.mxu0
        %1475 = vmatprep.mubr.f32.mxu0 0.0
        %1476 = vmatmul.mubr.f32.gmra.mxu0 %v1089
        %v1477 = vpop.f32.mrf.mxu0
        %v1478 = vadd.f32 %v1115, %v1477
        %v1479 = vpop.f32.mrf.mxu0
        %1480 = vmatprep.mubr.f32.mxu0 0.0
        %1481 = vmatmul.mubr.f32.gmra.mxu0 %v1090
        %v1482 = vpop.f32.mrf.mxu0
        %v1483 = vadd.f32 %v1115, %v1482
        %v1484 = vpop.f32.mrf.mxu0
        %1485 = vmatprep.mubr.f32.mxu0 0.0
        %1486 = vmatmul.mubr.f32.gmra.mxu0 %v1091
        %v1487 = vpop.f32.mrf.mxu0
        %v1488 = vadd.f32 %v1115, %v1487
        %v1489 = vpop.f32.mrf.mxu0
        %1490 = vmatprep.mubr.f32.mxu0 0.0
        %1491 = vmatmul.mubr.f32.gmra.mxu0 %v1092
        %v1492 = vpop.f32.mrf.mxu0
        %v1493 = vadd.f32 %v1115, %v1492
        %v1494 = vpop.f32.mrf.mxu0
        %1495 = vmatprep.mubr.f32.mxu0 0.0
        %1496 = vmatmul.mubr.f32.gmra.mxu0 %v1093
        %v1497 = vpop.f32.mrf.mxu0
        %v1498 = vadd.f32 %v1115, %v1497
        %v1499 = vpop.f32.mrf.mxu0
        %1500 = vdwg.mxu0
        %v1501 = vadd.f32 %v220, %v1183
        %v1502 = vadd.f32 %v221, %v1188
        %v1503 = vadd.f32 %v222, %v1193
        %v1504 = vadd.f32 %v223, %v1198
        %v1505 = vadd.f32 %v224, %v1203
        %v1506 = vadd.f32 %v225, %v1208
        %v1507 = vadd.f32 %v226, %v1213
        %v1508 = vadd.f32 %v227, %v1218
        %v1509 = vadd.f32 %v228, %v1223
        %v1510 = vadd.f32 %v229, %v1228
        %v1511 = vadd.f32 %v230, %v1233
        %v1512 = vadd.f32 %v231, %v1238
        %v1513 = vadd.f32 %v232, %v1243
        %v1514 = vadd.f32 %v233, %v1248
        %v1515 = vadd.f32 %v234, %v1253
        %v1516 = vadd.f32 %v235, %v1258
        %v1517 = vadd.f32 %v236, %v1263
        %v1518 = vadd.f32 %v237, %v1268
        %v1519 = vadd.f32 %v238, %v1273
        %v1520 = vadd.f32 %v239, %v1278
        %v1521 = vadd.f32 %v240, %v1283
        %v1522 = vadd.f32 %v241, %v1288
        %v1523 = vadd.f32 %v242, %v1293
        %v1524 = vadd.f32 %v243, %v1298
        %v1525 = vadd.f32 %v244, %v1303
        %v1526 = vadd.f32 %v245, %v1308
        %v1527 = vadd.f32 %v246, %v1313
        %v1528 = vadd.f32 %v247, %v1318
        %v1529 = vadd.f32 %v248, %v1323
        %v1530 = vadd.f32 %v249, %v1328
        %v1531 = vadd.f32 %v250, %v1333
        %v1532 = vadd.f32 %v251, %v1338
        %v1533 = vadd.f32 %v252, %v1343
        %v1534 = vadd.f32 %v253, %v1348
        %v1535 = vadd.f32 %v254, %v1353
        %v1536 = vadd.f32 %v255, %v1358
        %v1537 = vadd.f32 %v256, %v1363
        %v1538 = vadd.f32 %v257, %v1368
        %v1539 = vadd.f32 %v258, %v1373
        %v1540 = vadd.f32 %v259, %v1378
        %v1541 = vadd.f32 %v260, %v1383
        %v1542 = vadd.f32 %v261, %v1388
        %v1543 = vadd.f32 %v262, %v1393
        %v1544 = vadd.f32 %v263, %v1398
        %v1545 = vadd.f32 %v264, %v1403
        %v1546 = vadd.f32 %v265, %v1408
        %v1547 = vadd.f32 %v266, %v1413
        %v1548 = vadd.f32 %v267, %v1418
        %v1549 = vadd.f32 %v268, %v1423
        %v1550 = vadd.f32 %v269, %v1428
        %v1551 = vadd.f32 %v270, %v1433
        %v1552 = vadd.f32 %v271, %v1438
        %v1553 = vadd.f32 %v272, %v1443
        %v1554 = vadd.f32 %v273, %v1448
        %v1555 = vadd.f32 %v274, %v1453
        %v1556 = vadd.f32 %v275, %v1458
        %v1557 = vadd.f32 %v276, %v1463
        %v1558 = vadd.f32 %v277, %v1468
        %v1559 = vadd.f32 %v278, %v1473
        %v1560 = vadd.f32 %v279, %v1478
        %v1561 = vadd.f32 %v280, %v1483
        %v1562 = vadd.f32 %v281, %v1488
        %v1563 = vadd.f32 %v282, %v1493
        %v1564 = vadd.f32 %v283, %v1498
        %v1565 = vld [vmem:[#allocation5 + $0x6] sm:$0x1]
        %v1566 = vlaneseq
        %v1567 = vshrl.u32 %v1566, 7
        %v1568 = vsub.s32 0, %v1567
        %v1569 = vrot.slane %v1565, %v1568
        %v1570 = vmul.f32 %v1501, %v1569
        %v1571 = vmul.f32 %v1502, %v1569
        %v1572 = vmul.f32 %v1503, %v1569
        %v1573 = vmul.f32 %v1504, %v1569
        %v1574 = vmul.f32 %v1505, %v1569
        %v1575 = vmul.f32 %v1506, %v1569
        %v1576 = vmul.f32 %v1507, %v1569
        %v1577 = vmul.f32 %v1508, %v1569
        %v1578 = vmul.f32 %v1509, %v1569
        %v1579 = vmul.f32 %v1510, %v1569
        %v1580 = vmul.f32 %v1511, %v1569
        %v1581 = vmul.f32 %v1512, %v1569
        %v1582 = vmul.f32 %v1513, %v1569
        %v1583 = vmul.f32 %v1514, %v1569
        %v1584 = vmul.f32 %v1515, %v1569
        %v1585 = vmul.f32 %v1516, %v1569
        %v1586 = vmul.f32 %v1517, %v1569
        %v1587 = vmul.f32 %v1518, %v1569
        %v1588 = vmul.f32 %v1519, %v1569
        %v1589 = vmul.f32 %v1520, %v1569
        %v1590 = vmul.f32 %v1521, %v1569
        %v1591 = vmul.f32 %v1522, %v1569
        %v1592 = vmul.f32 %v1523, %v1569
        %v1593 = vmul.f32 %v1524, %v1569
        %v1594 = vmul.f32 %v1525, %v1569
        %v1595 = vmul.f32 %v1526, %v1569
        %v1596 = vmul.f32 %v1527, %v1569
        %v1597 = vmul.f32 %v1528, %v1569
        %v1598 = vmul.f32 %v1529, %v1569
        %v1599 = vmul.f32 %v1530, %v1569
        %v1600 = vmul.f32 %v1531, %v1569
        %v1601 = vmul.f32 %v1532, %v1569
        %v1602 = vmul.f32 %v1533, %v1569
        %v1603 = vmul.f32 %v1534, %v1569
        %v1604 = vmul.f32 %v1535, %v1569
        %v1605 = vmul.f32 %v1536, %v1569
        %v1606 = vmul.f32 %v1537, %v1569
        %v1607 = vmul.f32 %v1538, %v1569
        %v1608 = vmul.f32 %v1539, %v1569
        %v1609 = vmul.f32 %v1540, %v1569
        %v1610 = vmul.f32 %v1541, %v1569
        %v1611 = vmul.f32 %v1542, %v1569
        %v1612 = vmul.f32 %v1543, %v1569
        %v1613 = vmul.f32 %v1544, %v1569
        %v1614 = vmul.f32 %v1545, %v1569
        %v1615 = vmul.f32 %v1546, %v1569
        %v1616 = vmul.f32 %v1547, %v1569
        %v1617 = vmul.f32 %v1548, %v1569
        %v1618 = vmul.f32 %v1549, %v1569
        %v1619 = vmul.f32 %v1550, %v1569
        %v1620 = vmul.f32 %v1551, %v1569
        %v1621 = vmul.f32 %v1552, %v1569
        %v1622 = vmul.f32 %v1553, %v1569
        %v1623 = vmul.f32 %v1554, %v1569
        %v1624 = vmul.f32 %v1555, %v1569
        %v1625 = vmul.f32 %v1556, %v1569
        %v1626 = vmul.f32 %v1557, %v1569
        %v1627 = vmul.f32 %v1558, %v1569
        %v1628 = vmul.f32 %v1559, %v1569
        %v1629 = vmul.f32 %v1560, %v1569
        %v1630 = vmul.f32 %v1561, %v1569
        %v1631 = vmul.f32 %v1562, %v1569
        %v1632 = vmul.f32 %v1563, %v1569
        %v1633 = vmul.f32 %v1564, %v1569
        %v1634 = vld [vmem:[#allocation5 + $0x7] sm:$0x1]
        %v1635 = vlaneseq
        %v1636 = vshrl.u32 %v1635, 7
        %v1637 = vsub.s32 0, %v1636
        %v1638 = vrot.slane %v1634, %v1637
        %v1639 = vadd.f32 %v1570, %v1638
        %v1640 = vadd.f32 %v1571, %v1638
        %v1641 = vadd.f32 %v1572, %v1638
        %v1642 = vadd.f32 %v1573, %v1638
        %v1643 = vadd.f32 %v1574, %v1638
        %v1644 = vadd.f32 %v1575, %v1638
        %v1645 = vadd.f32 %v1576, %v1638
        %v1646 = vadd.f32 %v1577, %v1638
        %v1647 = vadd.f32 %v1578, %v1638
        %v1648 = vadd.f32 %v1579, %v1638
        %v1649 = vadd.f32 %v1580, %v1638
        %v1650 = vadd.f32 %v1581, %v1638
        %v1651 = vadd.f32 %v1582, %v1638
        %v1652 = vadd.f32 %v1583, %v1638
        %v1653 = vadd.f32 %v1584, %v1638
        %v1654 = vadd.f32 %v1585, %v1638
        %v1655 = vadd.f32 %v1586, %v1638
        %v1656 = vadd.f32 %v1587, %v1638
        %v1657 = vadd.f32 %v1588, %v1638
        %v1658 = vadd.f32 %v1589, %v1638
        %v1659 = vadd.f32 %v1590, %v1638
        %v1660 = vadd.f32 %v1591, %v1638
        %v1661 = vadd.f32 %v1592, %v1638
        %v1662 = vadd.f32 %v1593, %v1638
        %v1663 = vadd.f32 %v1594, %v1638
        %v1664 = vadd.f32 %v1595, %v1638
        %v1665 = vadd.f32 %v1596, %v1638
        %v1666 = vadd.f32 %v1597, %v1638
        %v1667 = vadd.f32 %v1598, %v1638
        %v1668 = vadd.f32 %v1599, %v1638
        %v1669 = vadd.f32 %v1600, %v1638
        %v1670 = vadd.f32 %v1601, %v1638
        %v1671 = vadd.f32 %v1602, %v1638
        %v1672 = vadd.f32 %v1603, %v1638
        %v1673 = vadd.f32 %v1604, %v1638
        %v1674 = vadd.f32 %v1605, %v1638
        %v1675 = vadd.f32 %v1606, %v1638
        %v1676 = vadd.f32 %v1607, %v1638
        %v1677 = vadd.f32 %v1608, %v1638
        %v1678 = vadd.f32 %v1609, %v1638
        %v1679 = vadd.f32 %v1610, %v1638
        %v1680 = vadd.f32 %v1611, %v1638
        %v1681 = vadd.f32 %v1612, %v1638
        %v1682 = vadd.f32 %v1613, %v1638
        %v1683 = vadd.f32 %v1614, %v1638
        %v1684 = vadd.f32 %v1615, %v1638
        %v1685 = vadd.f32 %v1616, %v1638
        %v1686 = vadd.f32 %v1617, %v1638
        %v1687 = vadd.f32 %v1618, %v1638
        %v1688 = vadd.f32 %v1619, %v1638
        %v1689 = vadd.f32 %v1620, %v1638
        %v1690 = vadd.f32 %v1621, %v1638
        %v1691 = vadd.f32 %v1622, %v1638
        %v1692 = vadd.f32 %v1623, %v1638
        %v1693 = vadd.f32 %v1624, %v1638
        %v1694 = vadd.f32 %v1625, %v1638
        %v1695 = vadd.f32 %v1626, %v1638
        %v1696 = vadd.f32 %v1627, %v1638
        %v1697 = vadd.f32 %v1628, %v1638
        %v1698 = vadd.f32 %v1629, %v1638
        %v1699 = vadd.f32 %v1630, %v1638
        %v1700 = vadd.f32 %v1631, %v1638
        %v1701 = vadd.f32 %v1632, %v1638
        %v1702 = vadd.f32 %v1633, %v1638
        %v1703 = vtanh.pop %v1639
        %v1704 = vtanh.pop %v1640
        %v1705 = vtanh.pop %v1641
        %v1706 = vtanh.pop %v1642
        %v1707 = vtanh.pop %v1643
        %v1708 = vtanh.pop %v1644
        %v1709 = vtanh.pop %v1645
        %v1710 = vtanh.pop %v1646
        %v1711 = vtanh.pop %v1647
        %v1712 = vtanh.pop %v1648
        %v1713 = vtanh.pop %v1649
        %v1714 = vtanh.pop %v1650
        %v1715 = vtanh.pop %v1651
        %v1716 = vtanh.pop %v1652
        %v1717 = vtanh.pop %v1653
        %v1718 = vtanh.pop %v1654
        %v1719 = vtanh.pop %v1655
        %v1720 = vtanh.pop %v1656
        %v1721 = vtanh.pop %v1657
        %v1722 = vtanh.pop %v1658
        %v1723 = vtanh.pop %v1659
        %v1724 = vtanh.pop %v1660
        %v1725 = vtanh.pop %v1661
        %v1726 = vtanh.pop %v1662
        %v1727 = vtanh.pop %v1663
        %v1728 = vtanh.pop %v1664
        %v1729 = vtanh.pop %v1665
        %v1730 = vtanh.pop %v1666
        %v1731 = vtanh.pop %v1667
        %v1732 = vtanh.pop %v1668
        %v1733 = vtanh.pop %v1669
        %v1734 = vtanh.pop %v1670
        %v1735 = vtanh.pop %v1671
        %v1736 = vtanh.pop %v1672
        %v1737 = vtanh.pop %v1673
        %v1738 = vtanh.pop %v1674
        %v1739 = vtanh.pop %v1675
        %v1740 = vtanh.pop %v1676
        %v1741 = vtanh.pop %v1677
        %v1742 = vtanh.pop %v1678
        %v1743 = vtanh.pop %v1679
        %v1744 = vtanh.pop %v1680
        %v1745 = vtanh.pop %v1681
        %v1746 = vtanh.pop %v1682
        %v1747 = vtanh.pop %v1683
        %v1748 = vtanh.pop %v1684
        %v1749 = vtanh.pop %v1685
        %v1750 = vtanh.pop %v1686
        %v1751 = vtanh.pop %v1687
        %v1752 = vtanh.pop %v1688
        %v1753 = vtanh.pop %v1689
        %v1754 = vtanh.pop %v1690
        %v1755 = vtanh.pop %v1691
        %v1756 = vtanh.pop %v1692
        %v1757 = vtanh.pop %v1693
        %v1758 = vtanh.pop %v1694
        %v1759 = vtanh.pop %v1695
        %v1760 = vtanh.pop %v1696
        %v1761 = vtanh.pop %v1697
        %v1762 = vtanh.pop %v1698
        %v1763 = vtanh.pop %v1699
        %v1764 = vtanh.pop %v1700
        %v1765 = vtanh.pop %v1701
        %v1766 = vtanh.pop %v1702
        %s1767 = scalar_lea.vmem [#allocation7], 256
        %v1768 = vld [vmem:[%s1767] sm:$0xff]
        %v1769 = vld [vmem:[%s1767 + $0x8] sm:$0xff]
        %v1770 = vld [vmem:[%s1767 + $0x10] sm:$0xff]
        %v1771 = vld [vmem:[%s1767 + $0x18] sm:$0xff]
        %v1772 = vld [vmem:[%s1767 + $0x20] sm:$0xff]
        %v1773 = vld [vmem:[%s1767 + $0x28] sm:$0xff]
        %v1774 = vld [vmem:[%s1767 + $0x30] sm:$0xff]
        %v1775 = vld [vmem:[%s1767 + $0x38] sm:$0xff]
        %v1776 = vld [vmem:[%s1767 + $0x40] sm:$0xff]
        %v1777 = vld [vmem:[%s1767 + $0x48] sm:$0xff]
        %v1778 = vld [vmem:[%s1767 + $0x50] sm:$0xff]
        %v1779 = vld [vmem:[%s1767 + $0x58] sm:$0xff]
        %v1780 = vld [vmem:[%s1767 + $0x60] sm:$0xff]
        %v1781 = vld [vmem:[%s1767 + $0x68] sm:$0xff]
        %v1782 = vld [vmem:[%s1767 + $0x70] sm:$0xff]
        %v1783 = vld [vmem:[%s1767 + $0x78] sm:$0xff]
        %v1784 = vld [vmem:[#allocation5 + $0x8] sm:$0x1]
        %v1785 = vlaneseq
        %v1786 = vshrl.u32 %v1785, 7
        %v1787 = vsub.s32 0, %v1786
        %v1788 = vrot.slane %v1784, %v1787
        %1789 = vmatprep.subr.mxu0 0.0
        %1790 = vmatpush1.msra.mxu0 %v1783
        %1791 = vmatprep.subr.mxu0 0.0
        %1792 = vmatpush1.msra.mxu0 %v1782
        %1793 = vmatprep.subr.mxu0 0.0
        %1794 = vmatpush1.msra.mxu0 %v1781
        %1795 = vmatprep.subr.mxu0 0.0
        %1796 = vmatpush1.msra.mxu0 %v1780
        %1797 = vmatprep.subr.mxu0 0.0
        %1798 = vmatpush1.msra.mxu0 %v1779
        %1799 = vmatprep.subr.mxu0 0.0
        %1800 = vmatpush1.msra.mxu0 %v1778
        %1801 = vmatprep.subr.mxu0 0.0
        %1802 = vmatpush1.msra.mxu0 %v1777
        %1803 = vmatprep.subr.mxu0 0.0
        %1804 = vmatpush1.msra.mxu0 %v1776
        %1805 = vmatprep.subr.mxu0 0.0
        %1806 = vmatpush1.msra.mxu0 %v1775
        %1807 = vmatprep.subr.mxu0 0.0
        %1808 = vmatpush1.msra.mxu0 %v1774
        %1809 = vmatprep.subr.mxu0 0.0
        %1810 = vmatpush1.msra.mxu0 %v1773
        %1811 = vmatprep.subr.mxu0 0.0
        %1812 = vmatpush1.msra.mxu0 %v1772
        %1813 = vmatprep.subr.mxu0 0.0
        %1814 = vmatpush1.msra.mxu0 %v1771
        %1815 = vmatprep.subr.mxu0 0.0
        %1816 = vmatpush1.msra.mxu0 %v1770
        %1817 = vmatprep.subr.mxu0 0.0
        %1818 = vmatpush1.msra.mxu0 %v1769
        %1819 = vmatprep.subr.mxu0 0.0
        %1820 = vmatpush1.msra.mxu0 %v1768
        %1821 = vmatprep.subr.mxu0 0.0
        %1822 = vmatpush2.msra.mxu0 0.0
        %1823 = vmatprep.subr.mxu0 0.0
        %1824 = vmatpush2.msra.mxu0 0.0
        %1825 = vmatprep.subr.mxu0 0.0
        %1826 = vmatpush2.msra.mxu0 0.0
        %1827 = vmatprep.subr.mxu0 0.0
        %1828 = vmatpush2.msra.mxu0 0.0
        %1829 = vmatprep.subr.mxu0 0.0
        %1830 = vmatpush2.msra.mxu0 0.0
        %1831 = vmatprep.subr.mxu0 0.0
        %1832 = vmatpush2.msra.mxu0 0.0
        %1833 = vmatprep.subr.mxu0 0.0
        %1834 = vmatpush2.msra.mxu0 0.0
        %1835 = vmatprep.subr.mxu0 0.0
        %1836 = vmatpush2.msra.mxu0 0.0
        %1837 = vmatprep.subr.mxu0 0.0
        %1838 = vmatpush2.msra.mxu0 0.0
        %1839 = vmatprep.subr.mxu0 0.0
        %1840 = vmatpush2.msra.mxu0 0.0
        %1841 = vmatprep.subr.mxu0 0.0
        %1842 = vmatpush2.msra.mxu0 0.0
        %1843 = vmatprep.subr.mxu0 0.0
        %1844 = vmatpush2.msra.mxu0 0.0
        %1845 = vmatprep.subr.mxu0 0.0
        %1846 = vmatpush2.msra.mxu0 0.0
        %1847 = vmatprep.subr.mxu0 0.0
        %1848 = vmatpush2.msra.mxu0 0.0
        %1849 = vmatprep.subr.mxu0 0.0
        %1850 = vmatpush2.msra.mxu0 0.0
        %1851 = vmatprep.subr.mxu0 0.0
        %1852 = vmatpush2.msra.mxu0 0.0
        %1853 = vmatprep.mubr.f32.mxu0 0.0
        %1854 = vmatmul.mubr.f32.gmra.mxu0 %v1703
        %v1855 = vpop.f32.mrf.mxu0
        %v1856 = vadd.f32 %v1788, %v1855
        %v1857 = vpop.f32.mrf.mxu0
        %1858 = vmatprep.mubr.f32.mxu0 0.0
        %1859 = vmatmul.mubr.f32.gmra.mxu0 %v1704
        %v1860 = vpop.f32.mrf.mxu0
        %v1861 = vadd.f32 %v1788, %v1860
        %v1862 = vpop.f32.mrf.mxu0
        %1863 = vmatprep.mubr.f32.mxu0 0.0
        %1864 = vmatmul.mubr.f32.gmra.mxu0 %v1705
        %v1865 = vpop.f32.mrf.mxu0
        %v1866 = vadd.f32 %v1788, %v1865
        %v1867 = vpop.f32.mrf.mxu0
        %1868 = vmatprep.mubr.f32.mxu0 0.0
        %1869 = vmatmul.mubr.f32.gmra.mxu0 %v1706
        %v1870 = vpop.f32.mrf.mxu0
        %v1871 = vadd.f32 %v1788, %v1870
        %v1872 = vpop.f32.mrf.mxu0
        %1873 = vmatprep.mubr.f32.mxu0 0.0
        %1874 = vmatmul.mubr.f32.gmra.mxu0 %v1707
        %v1875 = vpop.f32.mrf.mxu0
        %v1876 = vadd.f32 %v1788, %v1875
        %v1877 = vpop.f32.mrf.mxu0
        %1878 = vmatprep.mubr.f32.mxu0 0.0
        %1879 = vmatmul.mubr.f32.gmra.mxu0 %v1708
        %v1880 = vpop.f32.mrf.mxu0
        %v1881 = vadd.f32 %v1788, %v1880
        %v1882 = vpop.f32.mrf.mxu0
        %1883 = vmatprep.mubr.f32.mxu0 0.0
        %1884 = vmatmul.mubr.f32.gmra.mxu0 %v1709
        %v1885 = vpop.f32.mrf.mxu0
        %v1886 = vadd.f32 %v1788, %v1885
        %v1887 = vpop.f32.mrf.mxu0
        %1888 = vmatprep.mubr.f32.mxu0 0.0
        %1889 = vmatmul.mubr.f32.gmra.mxu0 %v1710
        %v1890 = vpop.f32.mrf.mxu0
        %v1891 = vadd.f32 %v1788, %v1890
        %v1892 = vpop.f32.mrf.mxu0
        %1893 = vmatprep.mubr.f32.mxu0 0.0
        %1894 = vmatmul.mubr.f32.gmra.mxu0 %v1711
        %v1895 = vpop.f32.mrf.mxu0
        %v1896 = vadd.f32 %v1788, %v1895
        %v1897 = vpop.f32.mrf.mxu0
        %1898 = vmatprep.mubr.f32.mxu0 0.0
        %1899 = vmatmul.mubr.f32.gmra.mxu0 %v1712
        %v1900 = vpop.f32.mrf.mxu0
        %v1901 = vadd.f32 %v1788, %v1900
        %v1902 = vpop.f32.mrf.mxu0
        %1903 = vmatprep.mubr.f32.mxu0 0.0
        %1904 = vmatmul.mubr.f32.gmra.mxu0 %v1713
        %v1905 = vpop.f32.mrf.mxu0
        %v1906 = vadd.f32 %v1788, %v1905
        %v1907 = vpop.f32.mrf.mxu0
        %1908 = vmatprep.mubr.f32.mxu0 0.0
        %1909 = vmatmul.mubr.f32.gmra.mxu0 %v1714
        %v1910 = vpop.f32.mrf.mxu0
        %v1911 = vadd.f32 %v1788, %v1910
        %v1912 = vpop.f32.mrf.mxu0
        %1913 = vmatprep.mubr.f32.mxu0 0.0
        %1914 = vmatmul.mubr.f32.gmra.mxu0 %v1715
        %v1915 = vpop.f32.mrf.mxu0
        %v1916 = vadd.f32 %v1788, %v1915
        %v1917 = vpop.f32.mrf.mxu0
        %1918 = vmatprep.mubr.f32.mxu0 0.0
        %1919 = vmatmul.mubr.f32.gmra.mxu0 %v1716
        %v1920 = vpop.f32.mrf.mxu0
        %v1921 = vadd.f32 %v1788, %v1920
        %v1922 = vpop.f32.mrf.mxu0
        %1923 = vmatprep.mubr.f32.mxu0 0.0
        %1924 = vmatmul.mubr.f32.gmra.mxu0 %v1717
        %v1925 = vpop.f32.mrf.mxu0
        %v1926 = vadd.f32 %v1788, %v1925
        %v1927 = vpop.f32.mrf.mxu0
        %1928 = vmatprep.mubr.f32.mxu0 0.0
        %1929 = vmatmul.mubr.f32.gmra.mxu0 %v1718
        %v1930 = vpop.f32.mrf.mxu0
        %v1931 = vadd.f32 %v1788, %v1930
        %v1932 = vpop.f32.mrf.mxu0
        %1933 = vmatprep.mubr.f32.mxu0 0.0
        %1934 = vmatmul.mubr.f32.gmra.mxu0 %v1719
        %v1935 = vpop.f32.mrf.mxu0
        %v1936 = vadd.f32 %v1788, %v1935
        %v1937 = vpop.f32.mrf.mxu0
        %1938 = vmatprep.mubr.f32.mxu0 0.0
        %1939 = vmatmul.mubr.f32.gmra.mxu0 %v1720
        %v1940 = vpop.f32.mrf.mxu0
        %v1941 = vadd.f32 %v1788, %v1940
        %v1942 = vpop.f32.mrf.mxu0
        %1943 = vmatprep.mubr.f32.mxu0 0.0
        %1944 = vmatmul.mubr.f32.gmra.mxu0 %v1721
        %v1945 = vpop.f32.mrf.mxu0
        %v1946 = vadd.f32 %v1788, %v1945
        %v1947 = vpop.f32.mrf.mxu0
        %1948 = vmatprep.mubr.f32.mxu0 0.0
        %1949 = vmatmul.mubr.f32.gmra.mxu0 %v1722
        %v1950 = vpop.f32.mrf.mxu0
        %v1951 = vadd.f32 %v1788, %v1950
        %v1952 = vpop.f32.mrf.mxu0
        %1953 = vmatprep.mubr.f32.mxu0 0.0
        %1954 = vmatmul.mubr.f32.gmra.mxu0 %v1723
        %v1955 = vpop.f32.mrf.mxu0
        %v1956 = vadd.f32 %v1788, %v1955
        %v1957 = vpop.f32.mrf.mxu0
        %1958 = vmatprep.mubr.f32.mxu0 0.0
        %1959 = vmatmul.mubr.f32.gmra.mxu0 %v1724
        %v1960 = vpop.f32.mrf.mxu0
        %v1961 = vadd.f32 %v1788, %v1960
        %v1962 = vpop.f32.mrf.mxu0
        %1963 = vmatprep.mubr.f32.mxu0 0.0
        %1964 = vmatmul.mubr.f32.gmra.mxu0 %v1725
        %v1965 = vpop.f32.mrf.mxu0
        %v1966 = vadd.f32 %v1788, %v1965
        %v1967 = vpop.f32.mrf.mxu0
        %1968 = vmatprep.mubr.f32.mxu0 0.0
        %1969 = vmatmul.mubr.f32.gmra.mxu0 %v1726
        %v1970 = vpop.f32.mrf.mxu0
        %v1971 = vadd.f32 %v1788, %v1970
        %v1972 = vpop.f32.mrf.mxu0
        %1973 = vmatprep.mubr.f32.mxu0 0.0
        %1974 = vmatmul.mubr.f32.gmra.mxu0 %v1727
        %v1975 = vpop.f32.mrf.mxu0
        %v1976 = vadd.f32 %v1788, %v1975
        %v1977 = vpop.f32.mrf.mxu0
        %1978 = vmatprep.mubr.f32.mxu0 0.0
        %1979 = vmatmul.mubr.f32.gmra.mxu0 %v1728
        %v1980 = vpop.f32.mrf.mxu0
        %v1981 = vadd.f32 %v1788, %v1980
        %v1982 = vpop.f32.mrf.mxu0
        %1983 = vmatprep.mubr.f32.mxu0 0.0
        %1984 = vmatmul.mubr.f32.gmra.mxu0 %v1729
        %v1985 = vpop.f32.mrf.mxu0
        %v1986 = vadd.f32 %v1788, %v1985
        %v1987 = vpop.f32.mrf.mxu0
        %1988 = vmatprep.mubr.f32.mxu0 0.0
        %1989 = vmatmul.mubr.f32.gmra.mxu0 %v1730
        %v1990 = vpop.f32.mrf.mxu0
        %v1991 = vadd.f32 %v1788, %v1990
        %v1992 = vpop.f32.mrf.mxu0
        %1993 = vmatprep.mubr.f32.mxu0 0.0
        %1994 = vmatmul.mubr.f32.gmra.mxu0 %v1731
        %v1995 = vpop.f32.mrf.mxu0
        %v1996 = vadd.f32 %v1788, %v1995
        %v1997 = vpop.f32.mrf.mxu0
        %1998 = vmatprep.mubr.f32.mxu0 0.0
        %1999 = vmatmul.mubr.f32.gmra.mxu0 %v1732
        %v2000 = vpop.f32.mrf.mxu0
        %v2001 = vadd.f32 %v1788, %v2000
        %v2002 = vpop.f32.mrf.mxu0
        %2003 = vmatprep.mubr.f32.mxu0 0.0
        %2004 = vmatmul.mubr.f32.gmra.mxu0 %v1733
        %v2005 = vpop.f32.mrf.mxu0
        %v2006 = vadd.f32 %v1788, %v2005
        %v2007 = vpop.f32.mrf.mxu0
        %2008 = vmatprep.mubr.f32.mxu0 0.0
        %2009 = vmatmul.mubr.f32.gmra.mxu0 %v1734
        %v2010 = vpop.f32.mrf.mxu0
        %v2011 = vadd.f32 %v1788, %v2010
        %v2012 = vpop.f32.mrf.mxu0
        %2013 = vmatprep.mubr.f32.mxu0 0.0
        %2014 = vmatmul.mubr.f32.gmra.mxu0 %v1735
        %v2015 = vpop.f32.mrf.mxu0
        %v2016 = vadd.f32 %v1788, %v2015
        %v2017 = vpop.f32.mrf.mxu0
        %2018 = vmatprep.mubr.f32.mxu0 0.0
        %2019 = vmatmul.mubr.f32.gmra.mxu0 %v1736
        %v2020 = vpop.f32.mrf.mxu0
        %v2021 = vadd.f32 %v1788, %v2020
        %v2022 = vpop.f32.mrf.mxu0
        %2023 = vmatprep.mubr.f32.mxu0 0.0
        %2024 = vmatmul.mubr.f32.gmra.mxu0 %v1737
        %v2025 = vpop.f32.mrf.mxu0
        %v2026 = vadd.f32 %v1788, %v2025
        %v2027 = vpop.f32.mrf.mxu0
        %2028 = vmatprep.mubr.f32.mxu0 0.0
        %2029 = vmatmul.mubr.f32.gmra.mxu0 %v1738
        %v2030 = vpop.f32.mrf.mxu0
        %v2031 = vadd.f32 %v1788, %v2030
        %v2032 = vpop.f32.mrf.mxu0
        %2033 = vmatprep.mubr.f32.mxu0 0.0
        %2034 = vmatmul.mubr.f32.gmra.mxu0 %v1739
        %v2035 = vpop.f32.mrf.mxu0
        %v2036 = vadd.f32 %v1788, %v2035
        %v2037 = vpop.f32.mrf.mxu0
        %2038 = vmatprep.mubr.f32.mxu0 0.0
        %2039 = vmatmul.mubr.f32.gmra.mxu0 %v1740
        %v2040 = vpop.f32.mrf.mxu0
        %v2041 = vadd.f32 %v1788, %v2040
        %v2042 = vpop.f32.mrf.mxu0
        %2043 = vmatprep.mubr.f32.mxu0 0.0
        %2044 = vmatmul.mubr.f32.gmra.mxu0 %v1741
        %v2045 = vpop.f32.mrf.mxu0
        %v2046 = vadd.f32 %v1788, %v2045
        %v2047 = vpop.f32.mrf.mxu0
        %2048 = vmatprep.mubr.f32.mxu0 0.0
        %2049 = vmatmul.mubr.f32.gmra.mxu0 %v1742
        %v2050 = vpop.f32.mrf.mxu0
        %v2051 = vadd.f32 %v1788, %v2050
        %v2052 = vpop.f32.mrf.mxu0
        %2053 = vmatprep.mubr.f32.mxu0 0.0
        %2054 = vmatmul.mubr.f32.gmra.mxu0 %v1743
        %v2055 = vpop.f32.mrf.mxu0
        %v2056 = vadd.f32 %v1788, %v2055
        %v2057 = vpop.f32.mrf.mxu0
        %2058 = vmatprep.mubr.f32.mxu0 0.0
        %2059 = vmatmul.mubr.f32.gmra.mxu0 %v1744
        %v2060 = vpop.f32.mrf.mxu0
        %v2061 = vadd.f32 %v1788, %v2060
        %v2062 = vpop.f32.mrf.mxu0
        %2063 = vmatprep.mubr.f32.mxu0 0.0
        %2064 = vmatmul.mubr.f32.gmra.mxu0 %v1745
        %v2065 = vpop.f32.mrf.mxu0
        %v2066 = vadd.f32 %v1788, %v2065
        %v2067 = vpop.f32.mrf.mxu0
        %2068 = vmatprep.mubr.f32.mxu0 0.0
        %2069 = vmatmul.mubr.f32.gmra.mxu0 %v1746
        %v2070 = vpop.f32.mrf.mxu0
        %v2071 = vadd.f32 %v1788, %v2070
        %v2072 = vpop.f32.mrf.mxu0
        %2073 = vmatprep.mubr.f32.mxu0 0.0
        %2074 = vmatmul.mubr.f32.gmra.mxu0 %v1747
        %v2075 = vpop.f32.mrf.mxu0
        %v2076 = vadd.f32 %v1788, %v2075
        %v2077 = vpop.f32.mrf.mxu0
        %2078 = vmatprep.mubr.f32.mxu0 0.0
        %2079 = vmatmul.mubr.f32.gmra.mxu0 %v1748
        %v2080 = vpop.f32.mrf.mxu0
        %v2081 = vadd.f32 %v1788, %v2080
        %v2082 = vpop.f32.mrf.mxu0
        %2083 = vmatprep.mubr.f32.mxu0 0.0
        %2084 = vmatmul.mubr.f32.gmra.mxu0 %v1749
        %v2085 = vpop.f32.mrf.mxu0
        %v2086 = vadd.f32 %v1788, %v2085
        %v2087 = vpop.f32.mrf.mxu0
        %2088 = vmatprep.mubr.f32.mxu0 0.0
        %2089 = vmatmul.mubr.f32.gmra.mxu0 %v1750
        %v2090 = vpop.f32.mrf.mxu0
        %v2091 = vadd.f32 %v1788, %v2090
        %v2092 = vpop.f32.mrf.mxu0
        %2093 = vmatprep.mubr.f32.mxu0 0.0
        %2094 = vmatmul.mubr.f32.gmra.mxu0 %v1751
        %v2095 = vpop.f32.mrf.mxu0
        %v2096 = vadd.f32 %v1788, %v2095
        %v2097 = vpop.f32.mrf.mxu0
        %2098 = vmatprep.mubr.f32.mxu0 0.0
        %2099 = vmatmul.mubr.f32.gmra.mxu0 %v1752
        %v2100 = vpop.f32.mrf.mxu0
        %v2101 = vadd.f32 %v1788, %v2100
        %v2102 = vpop.f32.mrf.mxu0
        %2103 = vmatprep.mubr.f32.mxu0 0.0
        %2104 = vmatmul.mubr.f32.gmra.mxu0 %v1753
        %v2105 = vpop.f32.mrf.mxu0
        %v2106 = vadd.f32 %v1788, %v2105
        %v2107 = vpop.f32.mrf.mxu0
        %2108 = vmatprep.mubr.f32.mxu0 0.0
        %2109 = vmatmul.mubr.f32.gmra.mxu0 %v1754
        %v2110 = vpop.f32.mrf.mxu0
        %v2111 = vadd.f32 %v1788, %v2110
        %v2112 = vpop.f32.mrf.mxu0
        %2113 = vmatprep.mubr.f32.mxu0 0.0
        %2114 = vmatmul.mubr.f32.gmra.mxu0 %v1755
        %v2115 = vpop.f32.mrf.mxu0
        %v2116 = vadd.f32 %v1788, %v2115
        %v2117 = vpop.f32.mrf.mxu0
        %2118 = vmatprep.mubr.f32.mxu0 0.0
        %2119 = vmatmul.mubr.f32.gmra.mxu0 %v1756
        %v2120 = vpop.f32.mrf.mxu0
        %v2121 = vadd.f32 %v1788, %v2120
        %v2122 = vpop.f32.mrf.mxu0
        %2123 = vmatprep.mubr.f32.mxu0 0.0
        %2124 = vmatmul.mubr.f32.gmra.mxu0 %v1757
        %v2125 = vpop.f32.mrf.mxu0
        %v2126 = vadd.f32 %v1788, %v2125
        %v2127 = vpop.f32.mrf.mxu0
        %2128 = vmatprep.mubr.f32.mxu0 0.0
        %2129 = vmatmul.mubr.f32.gmra.mxu0 %v1758
        %v2130 = vpop.f32.mrf.mxu0
        %v2131 = vadd.f32 %v1788, %v2130
        %v2132 = vpop.f32.mrf.mxu0
        %2133 = vmatprep.mubr.f32.mxu0 0.0
        %2134 = vmatmul.mubr.f32.gmra.mxu0 %v1759
        %v2135 = vpop.f32.mrf.mxu0
        %v2136 = vadd.f32 %v1788, %v2135
        %v2137 = vpop.f32.mrf.mxu0
        %2138 = vmatprep.mubr.f32.mxu0 0.0
        %2139 = vmatmul.mubr.f32.gmra.mxu0 %v1760
        %v2140 = vpop.f32.mrf.mxu0
        %v2141 = vadd.f32 %v1788, %v2140
        %v2142 = vpop.f32.mrf.mxu0
        %2143 = vmatprep.mubr.f32.mxu0 0.0
        %2144 = vmatmul.mubr.f32.gmra.mxu0 %v1761
        %v2145 = vpop.f32.mrf.mxu0
        %v2146 = vadd.f32 %v1788, %v2145
        %v2147 = vpop.f32.mrf.mxu0
        %2148 = vmatprep.mubr.f32.mxu0 0.0
        %2149 = vmatmul.mubr.f32.gmra.mxu0 %v1762
        %v2150 = vpop.f32.mrf.mxu0
        %v2151 = vadd.f32 %v1788, %v2150
        %v2152 = vpop.f32.mrf.mxu0
        %2153 = vmatprep.mubr.f32.mxu0 0.0
        %2154 = vmatmul.mubr.f32.gmra.mxu0 %v1763
        %v2155 = vpop.f32.mrf.mxu0
        %v2156 = vadd.f32 %v1788, %v2155
        %v2157 = vpop.f32.mrf.mxu0
        %2158 = vmatprep.mubr.f32.mxu0 0.0
        %2159 = vmatmul.mubr.f32.gmra.mxu0 %v1764
        %v2160 = vpop.f32.mrf.mxu0
        %v2161 = vadd.f32 %v1788, %v2160
        %v2162 = vpop.f32.mrf.mxu0
        %2163 = vmatprep.mubr.f32.mxu0 0.0
        %2164 = vmatmul.mubr.f32.gmra.mxu0 %v1765
        %v2165 = vpop.f32.mrf.mxu0
        %v2166 = vadd.f32 %v1788, %v2165
        %v2167 = vpop.f32.mrf.mxu0
        %2168 = vmatprep.mubr.f32.mxu0 0.0
        %2169 = vmatmul.mubr.f32.gmra.mxu0 %v1766
        %v2170 = vpop.f32.mrf.mxu0
        %v2171 = vadd.f32 %v1788, %v2170
        %v2172 = vpop.f32.mrf.mxu0
        %2173 = vdwg.mxu0
        %v2174 = vld [vmem:[#allocation5 + $0x9] sm:$0x1]
        %v2175 = vlaneseq
        %v2176 = vshrl.u32 %v2175, 7
        %v2177 = vsub.s32 0, %v2176
        %v2178 = vrot.slane %v2174, %v2177
        %v2179 = vmul.f32 %v1856, %v2178
        %v2180 = vmul.f32 %v1861, %v2178
        %v2181 = vmul.f32 %v1866, %v2178
        %v2182 = vmul.f32 %v1871, %v2178
        %v2183 = vmul.f32 %v1876, %v2178
        %v2184 = vmul.f32 %v1881, %v2178
        %v2185 = vmul.f32 %v1886, %v2178
        %v2186 = vmul.f32 %v1891, %v2178
        %v2187 = vmul.f32 %v1896, %v2178
        %v2188 = vmul.f32 %v1901, %v2178
        %v2189 = vmul.f32 %v1906, %v2178
        %v2190 = vmul.f32 %v1911, %v2178
        %v2191 = vmul.f32 %v1916, %v2178
        %v2192 = vmul.f32 %v1921, %v2178
        %v2193 = vmul.f32 %v1926, %v2178
        %v2194 = vmul.f32 %v1931, %v2178
        %v2195 = vmul.f32 %v1936, %v2178
        %v2196 = vmul.f32 %v1941, %v2178
        %v2197 = vmul.f32 %v1946, %v2178
        %v2198 = vmul.f32 %v1951, %v2178
        %v2199 = vmul.f32 %v1956, %v2178
        %v2200 = vmul.f32 %v1961, %v2178
        %v2201 = vmul.f32 %v1966, %v2178
        %v2202 = vmul.f32 %v1971, %v2178
        %v2203 = vmul.f32 %v1976, %v2178
        %v2204 = vmul.f32 %v1981, %v2178
        %v2205 = vmul.f32 %v1986, %v2178
        %v2206 = vmul.f32 %v1991, %v2178
        %v2207 = vmul.f32 %v1996, %v2178
        %v2208 = vmul.f32 %v2001, %v2178
        %v2209 = vmul.f32 %v2006, %v2178
        %v2210 = vmul.f32 %v2011, %v2178
        %v2211 = vmul.f32 %v2016, %v2178
        %v2212 = vmul.f32 %v2021, %v2178
        %v2213 = vmul.f32 %v2026, %v2178
        %v2214 = vmul.f32 %v2031, %v2178
        %v2215 = vmul.f32 %v2036, %v2178
        %v2216 = vmul.f32 %v2041, %v2178
        %v2217 = vmul.f32 %v2046, %v2178
        %v2218 = vmul.f32 %v2051, %v2178
        %v2219 = vmul.f32 %v2056, %v2178
        %v2220 = vmul.f32 %v2061, %v2178
        %v2221 = vmul.f32 %v2066, %v2178
        %v2222 = vmul.f32 %v2071, %v2178
        %v2223 = vmul.f32 %v2076, %v2178
        %v2224 = vmul.f32 %v2081, %v2178
        %v2225 = vmul.f32 %v2086, %v2178
        %v2226 = vmul.f32 %v2091, %v2178
        %v2227 = vmul.f32 %v2096, %v2178
        %v2228 = vmul.f32 %v2101, %v2178
        %v2229 = vmul.f32 %v2106, %v2178
        %v2230 = vmul.f32 %v2111, %v2178
        %v2231 = vmul.f32 %v2116, %v2178
        %v2232 = vmul.f32 %v2121, %v2178
        %v2233 = vmul.f32 %v2126, %v2178
        %v2234 = vmul.f32 %v2131, %v2178
        %v2235 = vmul.f32 %v2136, %v2178
        %v2236 = vmul.f32 %v2141, %v2178
        %v2237 = vmul.f32 %v2146, %v2178
        %v2238 = vmul.f32 %v2151, %v2178
        %v2239 = vmul.f32 %v2156, %v2178
        %v2240 = vmul.f32 %v2161, %v2178
        %v2241 = vmul.f32 %v2166, %v2178
        %v2242 = vmul.f32 %v2171, %v2178
        %v2243 = vld [vmem:[#allocation5 + $0xa] sm:$0x1]
        %v2244 = vlaneseq
        %v2245 = vshrl.u32 %v2244, 7
        %v2246 = vsub.s32 0, %v2245
        %v2247 = vrot.slane %v2243, %v2246
        %v2248 = vadd.f32 %v2179, %v2247
        %v2249 = vadd.f32 %v2180, %v2247
        %v2250 = vadd.f32 %v2181, %v2247
        %v2251 = vadd.f32 %v2182, %v2247
        %v2252 = vadd.f32 %v2183, %v2247
        %v2253 = vadd.f32 %v2184, %v2247
        %v2254 = vadd.f32 %v2185, %v2247
        %v2255 = vadd.f32 %v2186, %v2247
        %v2256 = vadd.f32 %v2187, %v2247
        %v2257 = vadd.f32 %v2188, %v2247
        %v2258 = vadd.f32 %v2189, %v2247
        %v2259 = vadd.f32 %v2190, %v2247
        %v2260 = vadd.f32 %v2191, %v2247
        %v2261 = vadd.f32 %v2192, %v2247
        %v2262 = vadd.f32 %v2193, %v2247
        %v2263 = vadd.f32 %v2194, %v2247
        %v2264 = vadd.f32 %v2195, %v2247
        %v2265 = vadd.f32 %v2196, %v2247
        %v2266 = vadd.f32 %v2197, %v2247
        %v2267 = vadd.f32 %v2198, %v2247
        %v2268 = vadd.f32 %v2199, %v2247
        %v2269 = vadd.f32 %v2200, %v2247
        %v2270 = vadd.f32 %v2201, %v2247
        %v2271 = vadd.f32 %v2202, %v2247
        %v2272 = vadd.f32 %v2203, %v2247
        %v2273 = vadd.f32 %v2204, %v2247
        %v2274 = vadd.f32 %v2205, %v2247
        %v2275 = vadd.f32 %v2206, %v2247
        %v2276 = vadd.f32 %v2207, %v2247
        %v2277 = vadd.f32 %v2208, %v2247
        %v2278 = vadd.f32 %v2209, %v2247
        %v2279 = vadd.f32 %v2210, %v2247
        %v2280 = vadd.f32 %v2211, %v2247
        %v2281 = vadd.f32 %v2212, %v2247
        %v2282 = vadd.f32 %v2213, %v2247
        %v2283 = vadd.f32 %v2214, %v2247
        %v2284 = vadd.f32 %v2215, %v2247
        %v2285 = vadd.f32 %v2216, %v2247
        %v2286 = vadd.f32 %v2217, %v2247
        %v2287 = vadd.f32 %v2218, %v2247
        %v2288 = vadd.f32 %v2219, %v2247
        %v2289 = vadd.f32 %v2220, %v2247
        %v2290 = vadd.f32 %v2221, %v2247
        %v2291 = vadd.f32 %v2222, %v2247
        %v2292 = vadd.f32 %v2223, %v2247
        %v2293 = vadd.f32 %v2224, %v2247
        %v2294 = vadd.f32 %v2225, %v2247
        %v2295 = vadd.f32 %v2226, %v2247
        %v2296 = vadd.f32 %v2227, %v2247
        %v2297 = vadd.f32 %v2228, %v2247
        %v2298 = vadd.f32 %v2229, %v2247
        %v2299 = vadd.f32 %v2230, %v2247
        %v2300 = vadd.f32 %v2231, %v2247
        %v2301 = vadd.f32 %v2232, %v2247
        %v2302 = vadd.f32 %v2233, %v2247
        %v2303 = vadd.f32 %v2234, %v2247
        %v2304 = vadd.f32 %v2235, %v2247
        %v2305 = vadd.f32 %v2236, %v2247
        %v2306 = vadd.f32 %v2237, %v2247
        %v2307 = vadd.f32 %v2238, %v2247
        %v2308 = vadd.f32 %v2239, %v2247
        %v2309 = vadd.f32 %v2240, %v2247
        %v2310 = vadd.f32 %v2241, %v2247
        %v2311 = vadd.f32 %v2242, %v2247
        %v2312 = vtanh.pop %v2248
        %v2313 = vtanh.pop %v2249
        %v2314 = vtanh.pop %v2250
        %v2315 = vtanh.pop %v2251
        %v2316 = vtanh.pop %v2252
        %v2317 = vtanh.pop %v2253
        %v2318 = vtanh.pop %v2254
        %v2319 = vtanh.pop %v2255
        %v2320 = vtanh.pop %v2256
        %v2321 = vtanh.pop %v2257
        %v2322 = vtanh.pop %v2258
        %v2323 = vtanh.pop %v2259
        %v2324 = vtanh.pop %v2260
        %v2325 = vtanh.pop %v2261
        %v2326 = vtanh.pop %v2262
        %v2327 = vtanh.pop %v2263
        %v2328 = vtanh.pop %v2264
        %v2329 = vtanh.pop %v2265
        %v2330 = vtanh.pop %v2266
        %v2331 = vtanh.pop %v2267
        %v2332 = vtanh.pop %v2268
        %v2333 = vtanh.pop %v2269
        %v2334 = vtanh.pop %v2270
        %v2335 = vtanh.pop %v2271
        %v2336 = vtanh.pop %v2272
        %v2337 = vtanh.pop %v2273
        %v2338 = vtanh.pop %v2274
        %v2339 = vtanh.pop %v2275
        %v2340 = vtanh.pop %v2276
        %v2341 = vtanh.pop %v2277
        %v2342 = vtanh.pop %v2278
        %v2343 = vtanh.pop %v2279
        %v2344 = vtanh.pop %v2280
        %v2345 = vtanh.pop %v2281
        %v2346 = vtanh.pop %v2282
        %v2347 = vtanh.pop %v2283
        %v2348 = vtanh.pop %v2284
        %v2349 = vtanh.pop %v2285
        %v2350 = vtanh.pop %v2286
        %v2351 = vtanh.pop %v2287
        %v2352 = vtanh.pop %v2288
        %v2353 = vtanh.pop %v2289
        %v2354 = vtanh.pop %v2290
        %v2355 = vtanh.pop %v2291
        %v2356 = vtanh.pop %v2292
        %v2357 = vtanh.pop %v2293
        %v2358 = vtanh.pop %v2294
        %v2359 = vtanh.pop %v2295
        %v2360 = vtanh.pop %v2296
        %v2361 = vtanh.pop %v2297
        %v2362 = vtanh.pop %v2298
        %v2363 = vtanh.pop %v2299
        %v2364 = vtanh.pop %v2300
        %v2365 = vtanh.pop %v2301
        %v2366 = vtanh.pop %v2302
        %v2367 = vtanh.pop %v2303
        %v2368 = vtanh.pop %v2304
        %v2369 = vtanh.pop %v2305
        %v2370 = vtanh.pop %v2306
        %v2371 = vtanh.pop %v2307
        %v2372 = vtanh.pop %v2308
        %v2373 = vtanh.pop %v2309
        %v2374 = vtanh.pop %v2310
        %v2375 = vtanh.pop %v2311
        %s2376 = scalar_lea.vmem [#allocation7], 384
        %v2377 = vld [vmem:[%s2376] sm:$0xff]
        %v2378 = vld [vmem:[%s2376 + $0x8] sm:$0xff]
        %v2379 = vld [vmem:[%s2376 + $0x10] sm:$0xff]
        %v2380 = vld [vmem:[%s2376 + $0x18] sm:$0xff]
        %v2381 = vld [vmem:[%s2376 + $0x20] sm:$0xff]
        %v2382 = vld [vmem:[%s2376 + $0x28] sm:$0xff]
        %v2383 = vld [vmem:[%s2376 + $0x30] sm:$0xff]
        %v2384 = vld [vmem:[%s2376 + $0x38] sm:$0xff]
        %v2385 = vld [vmem:[%s2376 + $0x40] sm:$0xff]
        %v2386 = vld [vmem:[%s2376 + $0x48] sm:$0xff]
        %v2387 = vld [vmem:[%s2376 + $0x50] sm:$0xff]
        %v2388 = vld [vmem:[%s2376 + $0x58] sm:$0xff]
        %v2389 = vld [vmem:[%s2376 + $0x60] sm:$0xff]
        %v2390 = vld [vmem:[%s2376 + $0x68] sm:$0xff]
        %v2391 = vld [vmem:[%s2376 + $0x70] sm:$0xff]
        %v2392 = vld [vmem:[%s2376 + $0x78] sm:$0xff]
        %v2393 = vld [vmem:[#allocation5 + $0xb] sm:$0x1]
        %v2394 = vlaneseq
        %v2395 = vshrl.u32 %v2394, 7
        %v2396 = vsub.s32 0, %v2395
        %v2397 = vrot.slane %v2393, %v2396
        %2398 = vmatprep.subr.mxu0 0.0
        %2399 = vmatpush1.msra.mxu0 %v2392
        %2400 = vmatprep.subr.mxu0 0.0
        %2401 = vmatpush1.msra.mxu0 %v2391
        %2402 = vmatprep.subr.mxu0 0.0
        %2403 = vmatpush1.msra.mxu0 %v2390
        %2404 = vmatprep.subr.mxu0 0.0
        %2405 = vmatpush1.msra.mxu0 %v2389
        %2406 = vmatprep.subr.mxu0 0.0
        %2407 = vmatpush1.msra.mxu0 %v2388
        %2408 = vmatprep.subr.mxu0 0.0
        %2409 = vmatpush1.msra.mxu0 %v2387
        %2410 = vmatprep.subr.mxu0 0.0
        %2411 = vmatpush1.msra.mxu0 %v2386
        %2412 = vmatprep.subr.mxu0 0.0
        %2413 = vmatpush1.msra.mxu0 %v2385
        %2414 = vmatprep.subr.mxu0 0.0
        %2415 = vmatpush1.msra.mxu0 %v2384
        %2416 = vmatprep.subr.mxu0 0.0
        %2417 = vmatpush1.msra.mxu0 %v2383
        %2418 = vmatprep.subr.mxu0 0.0
        %2419 = vmatpush1.msra.mxu0 %v2382
        %2420 = vmatprep.subr.mxu0 0.0
        %2421 = vmatpush1.msra.mxu0 %v2381
        %2422 = vmatprep.subr.mxu0 0.0
        %2423 = vmatpush1.msra.mxu0 %v2380
        %2424 = vmatprep.subr.mxu0 0.0
        %2425 = vmatpush1.msra.mxu0 %v2379
        %2426 = vmatprep.subr.mxu0 0.0
        %2427 = vmatpush1.msra.mxu0 %v2378
        %2428 = vmatprep.subr.mxu0 0.0
        %2429 = vmatpush1.msra.mxu0 %v2377
        %2430 = vmatprep.subr.mxu0 0.0
        %2431 = vmatpush2.msra.mxu0 0.0
        %2432 = vmatprep.subr.mxu0 0.0
        %2433 = vmatpush2.msra.mxu0 0.0
        %2434 = vmatprep.subr.mxu0 0.0
        %2435 = vmatpush2.msra.mxu0 0.0
        %2436 = vmatprep.subr.mxu0 0.0
        %2437 = vmatpush2.msra.mxu0 0.0
        %2438 = vmatprep.subr.mxu0 0.0
        %2439 = vmatpush2.msra.mxu0 0.0
        %2440 = vmatprep.subr.mxu0 0.0
        %2441 = vmatpush2.msra.mxu0 0.0
        %2442 = vmatprep.subr.mxu0 0.0
        %2443 = vmatpush2.msra.mxu0 0.0
        %2444 = vmatprep.subr.mxu0 0.0
        %2445 = vmatpush2.msra.mxu0 0.0
        %2446 = vmatprep.subr.mxu0 0.0
        %2447 = vmatpush2.msra.mxu0 0.0
        %2448 = vmatprep.subr.mxu0 0.0
        %2449 = vmatpush2.msra.mxu0 0.0
        %2450 = vmatprep.subr.mxu0 0.0
        %2451 = vmatpush2.msra.mxu0 0.0
        %2452 = vmatprep.subr.mxu0 0.0
        %2453 = vmatpush2.msra.mxu0 0.0
        %2454 = vmatprep.subr.mxu0 0.0
        %2455 = vmatpush2.msra.mxu0 0.0
        %2456 = vmatprep.subr.mxu0 0.0
        %2457 = vmatpush2.msra.mxu0 0.0
        %2458 = vmatprep.subr.mxu0 0.0
        %2459 = vmatpush2.msra.mxu0 0.0
        %2460 = vmatprep.subr.mxu0 0.0
        %2461 = vmatpush2.msra.mxu0 0.0
        %2462 = vmatprep.mubr.f32.mxu0 0.0
        %2463 = vmatmul.mubr.f32.gmra.mxu0 %v2312
        %v2464 = vpop.f32.mrf.mxu0
        %v2465 = vadd.f32 %v2397, %v2464
        %v2466 = vpop.f32.mrf.mxu0
        %2467 = vmatprep.mubr.f32.mxu0 0.0
        %2468 = vmatmul.mubr.f32.gmra.mxu0 %v2313
        %v2469 = vpop.f32.mrf.mxu0
        %v2470 = vadd.f32 %v2397, %v2469
        %v2471 = vpop.f32.mrf.mxu0
        %2472 = vmatprep.mubr.f32.mxu0 0.0
        %2473 = vmatmul.mubr.f32.gmra.mxu0 %v2314
        %v2474 = vpop.f32.mrf.mxu0
        %v2475 = vadd.f32 %v2397, %v2474
        %v2476 = vpop.f32.mrf.mxu0
        %2477 = vmatprep.mubr.f32.mxu0 0.0
        %2478 = vmatmul.mubr.f32.gmra.mxu0 %v2315
        %v2479 = vpop.f32.mrf.mxu0
        %v2480 = vadd.f32 %v2397, %v2479
        %v2481 = vpop.f32.mrf.mxu0
        %2482 = vmatprep.mubr.f32.mxu0 0.0
        %2483 = vmatmul.mubr.f32.gmra.mxu0 %v2316
        %v2484 = vpop.f32.mrf.mxu0
        %v2485 = vadd.f32 %v2397, %v2484
        %v2486 = vpop.f32.mrf.mxu0
        %2487 = vmatprep.mubr.f32.mxu0 0.0
        %2488 = vmatmul.mubr.f32.gmra.mxu0 %v2317
        %v2489 = vpop.f32.mrf.mxu0
        %v2490 = vadd.f32 %v2397, %v2489
        %v2491 = vpop.f32.mrf.mxu0
        %2492 = vmatprep.mubr.f32.mxu0 0.0
        %2493 = vmatmul.mubr.f32.gmra.mxu0 %v2318
        %v2494 = vpop.f32.mrf.mxu0
        %v2495 = vadd.f32 %v2397, %v2494
        %v2496 = vpop.f32.mrf.mxu0
        %2497 = vmatprep.mubr.f32.mxu0 0.0
        %2498 = vmatmul.mubr.f32.gmra.mxu0 %v2319
        %v2499 = vpop.f32.mrf.mxu0
        %v2500 = vadd.f32 %v2397, %v2499
        %v2501 = vpop.f32.mrf.mxu0
        %2502 = vmatprep.mubr.f32.mxu0 0.0
        %2503 = vmatmul.mubr.f32.gmra.mxu0 %v2320
        %v2504 = vpop.f32.mrf.mxu0
        %v2505 = vadd.f32 %v2397, %v2504
        %v2506 = vpop.f32.mrf.mxu0
        %2507 = vmatprep.mubr.f32.mxu0 0.0
        %2508 = vmatmul.mubr.f32.gmra.mxu0 %v2321
        %v2509 = vpop.f32.mrf.mxu0
        %v2510 = vadd.f32 %v2397, %v2509
        %v2511 = vpop.f32.mrf.mxu0
        %2512 = vmatprep.mubr.f32.mxu0 0.0
        %2513 = vmatmul.mubr.f32.gmra.mxu0 %v2322
        %v2514 = vpop.f32.mrf.mxu0
        %v2515 = vadd.f32 %v2397, %v2514
        %v2516 = vpop.f32.mrf.mxu0
        %2517 = vmatprep.mubr.f32.mxu0 0.0
        %2518 = vmatmul.mubr.f32.gmra.mxu0 %v2323
        %v2519 = vpop.f32.mrf.mxu0
        %v2520 = vadd.f32 %v2397, %v2519
        %v2521 = vpop.f32.mrf.mxu0
        %2522 = vmatprep.mubr.f32.mxu0 0.0
        %2523 = vmatmul.mubr.f32.gmra.mxu0 %v2324
        %v2524 = vpop.f32.mrf.mxu0
        %v2525 = vadd.f32 %v2397, %v2524
        %v2526 = vpop.f32.mrf.mxu0
        %2527 = vmatprep.mubr.f32.mxu0 0.0
        %2528 = vmatmul.mubr.f32.gmra.mxu0 %v2325
        %v2529 = vpop.f32.mrf.mxu0
        %v2530 = vadd.f32 %v2397, %v2529
        %v2531 = vpop.f32.mrf.mxu0
        %2532 = vmatprep.mubr.f32.mxu0 0.0
        %2533 = vmatmul.mubr.f32.gmra.mxu0 %v2326
        %v2534 = vpop.f32.mrf.mxu0
        %v2535 = vadd.f32 %v2397, %v2534
        %v2536 = vpop.f32.mrf.mxu0
        %2537 = vmatprep.mubr.f32.mxu0 0.0
        %2538 = vmatmul.mubr.f32.gmra.mxu0 %v2327
        %v2539 = vpop.f32.mrf.mxu0
        %v2540 = vadd.f32 %v2397, %v2539
        %v2541 = vpop.f32.mrf.mxu0
        %2542 = vmatprep.mubr.f32.mxu0 0.0
        %2543 = vmatmul.mubr.f32.gmra.mxu0 %v2328
        %v2544 = vpop.f32.mrf.mxu0
        %v2545 = vadd.f32 %v2397, %v2544
        %v2546 = vpop.f32.mrf.mxu0
        %2547 = vmatprep.mubr.f32.mxu0 0.0
        %2548 = vmatmul.mubr.f32.gmra.mxu0 %v2329
        %v2549 = vpop.f32.mrf.mxu0
        %v2550 = vadd.f32 %v2397, %v2549
        %v2551 = vpop.f32.mrf.mxu0
        %2552 = vmatprep.mubr.f32.mxu0 0.0
        %2553 = vmatmul.mubr.f32.gmra.mxu0 %v2330
        %v2554 = vpop.f32.mrf.mxu0
        %v2555 = vadd.f32 %v2397, %v2554
        %v2556 = vpop.f32.mrf.mxu0
        %2557 = vmatprep.mubr.f32.mxu0 0.0
        %2558 = vmatmul.mubr.f32.gmra.mxu0 %v2331
        %v2559 = vpop.f32.mrf.mxu0
        %v2560 = vadd.f32 %v2397, %v2559
        %v2561 = vpop.f32.mrf.mxu0
        %2562 = vmatprep.mubr.f32.mxu0 0.0
        %2563 = vmatmul.mubr.f32.gmra.mxu0 %v2332
        %v2564 = vpop.f32.mrf.mxu0
        %v2565 = vadd.f32 %v2397, %v2564
        %v2566 = vpop.f32.mrf.mxu0
        %2567 = vmatprep.mubr.f32.mxu0 0.0
        %2568 = vmatmul.mubr.f32.gmra.mxu0 %v2333
        %v2569 = vpop.f32.mrf.mxu0
        %v2570 = vadd.f32 %v2397, %v2569
        %v2571 = vpop.f32.mrf.mxu0
        %2572 = vmatprep.mubr.f32.mxu0 0.0
        %2573 = vmatmul.mubr.f32.gmra.mxu0 %v2334
        %v2574 = vpop.f32.mrf.mxu0
        %v2575 = vadd.f32 %v2397, %v2574
        %v2576 = vpop.f32.mrf.mxu0
        %2577 = vmatprep.mubr.f32.mxu0 0.0
        %2578 = vmatmul.mubr.f32.gmra.mxu0 %v2335
        %v2579 = vpop.f32.mrf.mxu0
        %v2580 = vadd.f32 %v2397, %v2579
        %v2581 = vpop.f32.mrf.mxu0
        %2582 = vmatprep.mubr.f32.mxu0 0.0
        %2583 = vmatmul.mubr.f32.gmra.mxu0 %v2336
        %v2584 = vpop.f32.mrf.mxu0
        %v2585 = vadd.f32 %v2397, %v2584
        %v2586 = vpop.f32.mrf.mxu0
        %2587 = vmatprep.mubr.f32.mxu0 0.0
        %2588 = vmatmul.mubr.f32.gmra.mxu0 %v2337
        %v2589 = vpop.f32.mrf.mxu0
        %v2590 = vadd.f32 %v2397, %v2589
        %v2591 = vpop.f32.mrf.mxu0
        %2592 = vmatprep.mubr.f32.mxu0 0.0
        %2593 = vmatmul.mubr.f32.gmra.mxu0 %v2338
        %v2594 = vpop.f32.mrf.mxu0
        %v2595 = vadd.f32 %v2397, %v2594
        %v2596 = vpop.f32.mrf.mxu0
        %2597 = vmatprep.mubr.f32.mxu0 0.0
        %2598 = vmatmul.mubr.f32.gmra.mxu0 %v2339
        %v2599 = vpop.f32.mrf.mxu0
        %v2600 = vadd.f32 %v2397, %v2599
        %v2601 = vpop.f32.mrf.mxu0
        %2602 = vmatprep.mubr.f32.mxu0 0.0
        %2603 = vmatmul.mubr.f32.gmra.mxu0 %v2340
        %v2604 = vpop.f32.mrf.mxu0
        %v2605 = vadd.f32 %v2397, %v2604
        %v2606 = vpop.f32.mrf.mxu0
        %2607 = vmatprep.mubr.f32.mxu0 0.0
        %2608 = vmatmul.mubr.f32.gmra.mxu0 %v2341
        %v2609 = vpop.f32.mrf.mxu0
        %v2610 = vadd.f32 %v2397, %v2609
        %v2611 = vpop.f32.mrf.mxu0
        %2612 = vmatprep.mubr.f32.mxu0 0.0
        %2613 = vmatmul.mubr.f32.gmra.mxu0 %v2342
        %v2614 = vpop.f32.mrf.mxu0
        %v2615 = vadd.f32 %v2397, %v2614
        %v2616 = vpop.f32.mrf.mxu0
        %2617 = vmatprep.mubr.f32.mxu0 0.0
        %2618 = vmatmul.mubr.f32.gmra.mxu0 %v2343
        %v2619 = vpop.f32.mrf.mxu0
        %v2620 = vadd.f32 %v2397, %v2619
        %v2621 = vpop.f32.mrf.mxu0
        %2622 = vmatprep.mubr.f32.mxu0 0.0
        %2623 = vmatmul.mubr.f32.gmra.mxu0 %v2344
        %v2624 = vpop.f32.mrf.mxu0
        %v2625 = vadd.f32 %v2397, %v2624
        %v2626 = vpop.f32.mrf.mxu0
        %2627 = vmatprep.mubr.f32.mxu0 0.0
        %2628 = vmatmul.mubr.f32.gmra.mxu0 %v2345
        %v2629 = vpop.f32.mrf.mxu0
        %v2630 = vadd.f32 %v2397, %v2629
        %v2631 = vpop.f32.mrf.mxu0
        %2632 = vmatprep.mubr.f32.mxu0 0.0
        %2633 = vmatmul.mubr.f32.gmra.mxu0 %v2346
        %v2634 = vpop.f32.mrf.mxu0
        %v2635 = vadd.f32 %v2397, %v2634
        %v2636 = vpop.f32.mrf.mxu0
        %2637 = vmatprep.mubr.f32.mxu0 0.0
        %2638 = vmatmul.mubr.f32.gmra.mxu0 %v2347
        %v2639 = vpop.f32.mrf.mxu0
        %v2640 = vadd.f32 %v2397, %v2639
        %v2641 = vpop.f32.mrf.mxu0
        %2642 = vmatprep.mubr.f32.mxu0 0.0
        %2643 = vmatmul.mubr.f32.gmra.mxu0 %v2348
        %v2644 = vpop.f32.mrf.mxu0
        %v2645 = vadd.f32 %v2397, %v2644
        %v2646 = vpop.f32.mrf.mxu0
        %2647 = vmatprep.mubr.f32.mxu0 0.0
        %2648 = vmatmul.mubr.f32.gmra.mxu0 %v2349
        %v2649 = vpop.f32.mrf.mxu0
        %v2650 = vadd.f32 %v2397, %v2649
        %v2651 = vpop.f32.mrf.mxu0
        %2652 = vmatprep.mubr.f32.mxu0 0.0
        %2653 = vmatmul.mubr.f32.gmra.mxu0 %v2350
        %v2654 = vpop.f32.mrf.mxu0
        %v2655 = vadd.f32 %v2397, %v2654
        %v2656 = vpop.f32.mrf.mxu0
        %2657 = vmatprep.mubr.f32.mxu0 0.0
        %2658 = vmatmul.mubr.f32.gmra.mxu0 %v2351
        %v2659 = vpop.f32.mrf.mxu0
        %v2660 = vadd.f32 %v2397, %v2659
        %v2661 = vpop.f32.mrf.mxu0
        %2662 = vmatprep.mubr.f32.mxu0 0.0
        %2663 = vmatmul.mubr.f32.gmra.mxu0 %v2352
        %v2664 = vpop.f32.mrf.mxu0
        %v2665 = vadd.f32 %v2397, %v2664
        %v2666 = vpop.f32.mrf.mxu0
        %2667 = vmatprep.mubr.f32.mxu0 0.0
        %2668 = vmatmul.mubr.f32.gmra.mxu0 %v2353
        %v2669 = vpop.f32.mrf.mxu0
        %v2670 = vadd.f32 %v2397, %v2669
        %v2671 = vpop.f32.mrf.mxu0
        %2672 = vmatprep.mubr.f32.mxu0 0.0
        %2673 = vmatmul.mubr.f32.gmra.mxu0 %v2354
        %v2674 = vpop.f32.mrf.mxu0
        %v2675 = vadd.f32 %v2397, %v2674
        %v2676 = vpop.f32.mrf.mxu0
        %2677 = vmatprep.mubr.f32.mxu0 0.0
        %2678 = vmatmul.mubr.f32.gmra.mxu0 %v2355
        %v2679 = vpop.f32.mrf.mxu0
        %v2680 = vadd.f32 %v2397, %v2679
        %v2681 = vpop.f32.mrf.mxu0
        %2682 = vmatprep.mubr.f32.mxu0 0.0
        %2683 = vmatmul.mubr.f32.gmra.mxu0 %v2356
        %v2684 = vpop.f32.mrf.mxu0
        %v2685 = vadd.f32 %v2397, %v2684
        %v2686 = vpop.f32.mrf.mxu0
        %2687 = vmatprep.mubr.f32.mxu0 0.0
        %2688 = vmatmul.mubr.f32.gmra.mxu0 %v2357
        %v2689 = vpop.f32.mrf.mxu0
        %v2690 = vadd.f32 %v2397, %v2689
        %v2691 = vpop.f32.mrf.mxu0
        %2692 = vmatprep.mubr.f32.mxu0 0.0
        %2693 = vmatmul.mubr.f32.gmra.mxu0 %v2358
        %v2694 = vpop.f32.mrf.mxu0
        %v2695 = vadd.f32 %v2397, %v2694
        %v2696 = vpop.f32.mrf.mxu0
        %2697 = vmatprep.mubr.f32.mxu0 0.0
        %2698 = vmatmul.mubr.f32.gmra.mxu0 %v2359
        %v2699 = vpop.f32.mrf.mxu0
        %v2700 = vadd.f32 %v2397, %v2699
        %v2701 = vpop.f32.mrf.mxu0
        %2702 = vmatprep.mubr.f32.mxu0 0.0
        %2703 = vmatmul.mubr.f32.gmra.mxu0 %v2360
        %v2704 = vpop.f32.mrf.mxu0
        %v2705 = vadd.f32 %v2397, %v2704
        %v2706 = vpop.f32.mrf.mxu0
        %2707 = vmatprep.mubr.f32.mxu0 0.0
        %2708 = vmatmul.mubr.f32.gmra.mxu0 %v2361
        %v2709 = vpop.f32.mrf.mxu0
        %v2710 = vadd.f32 %v2397, %v2709
        %v2711 = vpop.f32.mrf.mxu0
        %2712 = vmatprep.mubr.f32.mxu0 0.0
        %2713 = vmatmul.mubr.f32.gmra.mxu0 %v2362
        %v2714 = vpop.f32.mrf.mxu0
        %v2715 = vadd.f32 %v2397, %v2714
        %v2716 = vpop.f32.mrf.mxu0
        %2717 = vmatprep.mubr.f32.mxu0 0.0
        %2718 = vmatmul.mubr.f32.gmra.mxu0 %v2363
        %v2719 = vpop.f32.mrf.mxu0
        %v2720 = vadd.f32 %v2397, %v2719
        %v2721 = vpop.f32.mrf.mxu0
        %2722 = vmatprep.mubr.f32.mxu0 0.0
        %2723 = vmatmul.mubr.f32.gmra.mxu0 %v2364
        %v2724 = vpop.f32.mrf.mxu0
        %v2725 = vadd.f32 %v2397, %v2724
        %v2726 = vpop.f32.mrf.mxu0
        %2727 = vmatprep.mubr.f32.mxu0 0.0
        %2728 = vmatmul.mubr.f32.gmra.mxu0 %v2365
        %v2729 = vpop.f32.mrf.mxu0
        %v2730 = vadd.f32 %v2397, %v2729
        %v2731 = vpop.f32.mrf.mxu0
        %2732 = vmatprep.mubr.f32.mxu0 0.0
        %2733 = vmatmul.mubr.f32.gmra.mxu0 %v2366
        %v2734 = vpop.f32.mrf.mxu0
        %v2735 = vadd.f32 %v2397, %v2734
        %v2736 = vpop.f32.mrf.mxu0
        %2737 = vmatprep.mubr.f32.mxu0 0.0
        %2738 = vmatmul.mubr.f32.gmra.mxu0 %v2367
        %v2739 = vpop.f32.mrf.mxu0
        %v2740 = vadd.f32 %v2397, %v2739
        %v2741 = vpop.f32.mrf.mxu0
        %2742 = vmatprep.mubr.f32.mxu0 0.0
        %2743 = vmatmul.mubr.f32.gmra.mxu0 %v2368
        %v2744 = vpop.f32.mrf.mxu0
        %v2745 = vadd.f32 %v2397, %v2744
        %v2746 = vpop.f32.mrf.mxu0
        %2747 = vmatprep.mubr.f32.mxu0 0.0
        %2748 = vmatmul.mubr.f32.gmra.mxu0 %v2369
        %v2749 = vpop.f32.mrf.mxu0
        %v2750 = vadd.f32 %v2397, %v2749
        %v2751 = vpop.f32.mrf.mxu0
        %2752 = vmatprep.mubr.f32.mxu0 0.0
        %2753 = vmatmul.mubr.f32.gmra.mxu0 %v2370
        %v2754 = vpop.f32.mrf.mxu0
        %v2755 = vadd.f32 %v2397, %v2754
        %v2756 = vpop.f32.mrf.mxu0
        %2757 = vmatprep.mubr.f32.mxu0 0.0
        %2758 = vmatmul.mubr.f32.gmra.mxu0 %v2371
        %v2759 = vpop.f32.mrf.mxu0
        %v2760 = vadd.f32 %v2397, %v2759
        %v2761 = vpop.f32.mrf.mxu0
        %2762 = vmatprep.mubr.f32.mxu0 0.0
        %2763 = vmatmul.mubr.f32.gmra.mxu0 %v2372
        %v2764 = vpop.f32.mrf.mxu0
        %v2765 = vadd.f32 %v2397, %v2764
        %v2766 = vpop.f32.mrf.mxu0
        %2767 = vmatprep.mubr.f32.mxu0 0.0
        %2768 = vmatmul.mubr.f32.gmra.mxu0 %v2373
        %v2769 = vpop.f32.mrf.mxu0
        %v2770 = vadd.f32 %v2397, %v2769
        %v2771 = vpop.f32.mrf.mxu0
        %2772 = vmatprep.mubr.f32.mxu0 0.0
        %2773 = vmatmul.mubr.f32.gmra.mxu0 %v2374
        %v2774 = vpop.f32.mrf.mxu0
        %v2775 = vadd.f32 %v2397, %v2774
        %v2776 = vpop.f32.mrf.mxu0
        %2777 = vmatprep.mubr.f32.mxu0 0.0
        %2778 = vmatmul.mubr.f32.gmra.mxu0 %v2375
        %v2779 = vpop.f32.mrf.mxu0
        %v2780 = vadd.f32 %v2397, %v2779
        %v2781 = vpop.f32.mrf.mxu0
        %2782 = vdwg.mxu0
        %v2783 = vadd.f32 %v1501, %v2465
        %v2784 = vadd.f32 %v1502, %v2470
        %v2785 = vadd.f32 %v1503, %v2475
        %v2786 = vadd.f32 %v1504, %v2480
        %v2787 = vadd.f32 %v1505, %v2485
        %v2788 = vadd.f32 %v1506, %v2490
        %v2789 = vadd.f32 %v1507, %v2495
        %v2790 = vadd.f32 %v1508, %v2500
        %v2791 = vadd.f32 %v1509, %v2505
        %v2792 = vadd.f32 %v1510, %v2510
        %v2793 = vadd.f32 %v1511, %v2515
        %v2794 = vadd.f32 %v1512, %v2520
        %v2795 = vadd.f32 %v1513, %v2525
        %v2796 = vadd.f32 %v1514, %v2530
        %v2797 = vadd.f32 %v1515, %v2535
        %v2798 = vadd.f32 %v1516, %v2540
        %v2799 = vadd.f32 %v1517, %v2545
        %v2800 = vadd.f32 %v1518, %v2550
        %v2801 = vadd.f32 %v1519, %v2555
        %v2802 = vadd.f32 %v1520, %v2560
        %v2803 = vadd.f32 %v1521, %v2565
        %v2804 = vadd.f32 %v1522, %v2570
        %v2805 = vadd.f32 %v1523, %v2575
        %v2806 = vadd.f32 %v1524, %v2580
        %v2807 = vadd.f32 %v1525, %v2585
        %v2808 = vadd.f32 %v1526, %v2590
        %v2809 = vadd.f32 %v1527, %v2595
        %v2810 = vadd.f32 %v1528, %v2600
        %v2811 = vadd.f32 %v1529, %v2605
        %v2812 = vadd.f32 %v1530, %v2610
        %v2813 = vadd.f32 %v1531, %v2615
        %v2814 = vadd.f32 %v1532, %v2620
        %v2815 = vadd.f32 %v1533, %v2625
        %v2816 = vadd.f32 %v1534, %v2630
        %v2817 = vadd.f32 %v1535, %v2635
        %v2818 = vadd.f32 %v1536, %v2640
        %v2819 = vadd.f32 %v1537, %v2645
        %v2820 = vadd.f32 %v1538, %v2650
        %v2821 = vadd.f32 %v1539, %v2655
        %v2822 = vadd.f32 %v1540, %v2660
        %v2823 = vadd.f32 %v1541, %v2665
        %v2824 = vadd.f32 %v1542, %v2670
        %v2825 = vadd.f32 %v1543, %v2675
        %v2826 = vadd.f32 %v1544, %v2680
        %v2827 = vadd.f32 %v1545, %v2685
        %v2828 = vadd.f32 %v1546, %v2690
        %v2829 = vadd.f32 %v1547, %v2695
        %v2830 = vadd.f32 %v1548, %v2700
        %v2831 = vadd.f32 %v1549, %v2705
        %v2832 = vadd.f32 %v1550, %v2710
        %v2833 = vadd.f32 %v1551, %v2715
        %v2834 = vadd.f32 %v1552, %v2720
        %v2835 = vadd.f32 %v1553, %v2725
        %v2836 = vadd.f32 %v1554, %v2730
        %v2837 = vadd.f32 %v1555, %v2735
        %v2838 = vadd.f32 %v1556, %v2740
        %v2839 = vadd.f32 %v1557, %v2745
        %v2840 = vadd.f32 %v1558, %v2750
        %v2841 = vadd.f32 %v1559, %v2755
        %v2842 = vadd.f32 %v1560, %v2760
        %v2843 = vadd.f32 %v1561, %v2765
        %v2844 = vadd.f32 %v1562, %v2770
        %v2845 = vadd.f32 %v1563, %v2775
        %v2846 = vadd.f32 %v1564, %v2780
        %v2847 = vld [vmem:[#allocation5 + $0xc] sm:$0x1]
        %v2848 = vlaneseq
        %v2849 = vshrl.u32 %v2848, 7
        %v2850 = vsub.s32 0, %v2849
        %v2851 = vrot.slane %v2847, %v2850
        %v2852 = vmul.f32 %v2783, %v2851
        %v2853 = vmul.f32 %v2784, %v2851
        %v2854 = vmul.f32 %v2785, %v2851
        %v2855 = vmul.f32 %v2786, %v2851
        %v2856 = vmul.f32 %v2787, %v2851
        %v2857 = vmul.f32 %v2788, %v2851
        %v2858 = vmul.f32 %v2789, %v2851
        %v2859 = vmul.f32 %v2790, %v2851
        %v2860 = vmul.f32 %v2791, %v2851
        %v2861 = vmul.f32 %v2792, %v2851
        %v2862 = vmul.f32 %v2793, %v2851
        %v2863 = vmul.f32 %v2794, %v2851
        %v2864 = vmul.f32 %v2795, %v2851
        %v2865 = vmul.f32 %v2796, %v2851
        %v2866 = vmul.f32 %v2797, %v2851
        %v2867 = vmul.f32 %v2798, %v2851
        %v2868 = vmul.f32 %v2799, %v2851
        %v2869 = vmul.f32 %v2800, %v2851
        %v2870 = vmul.f32 %v2801, %v2851
        %v2871 = vmul.f32 %v2802, %v2851
        %v2872 = vmul.f32 %v2803, %v2851
        %v2873 = vmul.f32 %v2804, %v2851
        %v2874 = vmul.f32 %v2805, %v2851
        %v2875 = vmul.f32 %v2806, %v2851
        %v2876 = vmul.f32 %v2807, %v2851
        %v2877 = vmul.f32 %v2808, %v2851
        %v2878 = vmul.f32 %v2809, %v2851
        %v2879 = vmul.f32 %v2810, %v2851
        %v2880 = vmul.f32 %v2811, %v2851
        %v2881 = vmul.f32 %v2812, %v2851
        %v2882 = vmul.f32 %v2813, %v2851
        %v2883 = vmul.f32 %v2814, %v2851
        %v2884 = vmul.f32 %v2815, %v2851
        %v2885 = vmul.f32 %v2816, %v2851
        %v2886 = vmul.f32 %v2817, %v2851
        %v2887 = vmul.f32 %v2818, %v2851
        %v2888 = vmul.f32 %v2819, %v2851
        %v2889 = vmul.f32 %v2820, %v2851
        %v2890 = vmul.f32 %v2821, %v2851
        %v2891 = vmul.f32 %v2822, %v2851
        %v2892 = vmul.f32 %v2823, %v2851
        %v2893 = vmul.f32 %v2824, %v2851
        %v2894 = vmul.f32 %v2825, %v2851
        %v2895 = vmul.f32 %v2826, %v2851
        %v2896 = vmul.f32 %v2827, %v2851
        %v2897 = vmul.f32 %v2828, %v2851
        %v2898 = vmul.f32 %v2829, %v2851
        %v2899 = vmul.f32 %v2830, %v2851
        %v2900 = vmul.f32 %v2831, %v2851
        %v2901 = vmul.f32 %v2832, %v2851
        %v2902 = vmul.f32 %v2833, %v2851
        %v2903 = vmul.f32 %v2834, %v2851
        %v2904 = vmul.f32 %v2835, %v2851
        %v2905 = vmul.f32 %v2836, %v2851
        %v2906 = vmul.f32 %v2837, %v2851
        %v2907 = vmul.f32 %v2838, %v2851
        %v2908 = vmul.f32 %v2839, %v2851
        %v2909 = vmul.f32 %v2840, %v2851
        %v2910 = vmul.f32 %v2841, %v2851
        %v2911 = vmul.f32 %v2842, %v2851
        %v2912 = vmul.f32 %v2843, %v2851
        %v2913 = vmul.f32 %v2844, %v2851
        %v2914 = vmul.f32 %v2845, %v2851
        %v2915 = vmul.f32 %v2846, %v2851
        %v2916 = vld [vmem:[#allocation5 + $0xd] sm:$0x1]
        %v2917 = vlaneseq
        %v2918 = vshrl.u32 %v2917, 7
        %v2919 = vsub.s32 0, %v2918
        %v2920 = vrot.slane %v2916, %v2919
        %v2921 = vadd.f32 %v2852, %v2920
        %v2922 = vadd.f32 %v2853, %v2920
        %v2923 = vadd.f32 %v2854, %v2920
        %v2924 = vadd.f32 %v2855, %v2920
        %v2925 = vadd.f32 %v2856, %v2920
        %v2926 = vadd.f32 %v2857, %v2920
        %v2927 = vadd.f32 %v2858, %v2920
        %v2928 = vadd.f32 %v2859, %v2920
        %v2929 = vadd.f32 %v2860, %v2920
        %v2930 = vadd.f32 %v2861, %v2920
        %v2931 = vadd.f32 %v2862, %v2920
        %v2932 = vadd.f32 %v2863, %v2920
        %v2933 = vadd.f32 %v2864, %v2920
        %v2934 = vadd.f32 %v2865, %v2920
        %v2935 = vadd.f32 %v2866, %v2920
        %v2936 = vadd.f32 %v2867, %v2920
        %v2937 = vadd.f32 %v2868, %v2920
        %v2938 = vadd.f32 %v2869, %v2920
        %v2939 = vadd.f32 %v2870, %v2920
        %v2940 = vadd.f32 %v2871, %v2920
        %v2941 = vadd.f32 %v2872, %v2920
        %v2942 = vadd.f32 %v2873, %v2920
        %v2943 = vadd.f32 %v2874, %v2920
        %v2944 = vadd.f32 %v2875, %v2920
        %v2945 = vadd.f32 %v2876, %v2920
        %v2946 = vadd.f32 %v2877, %v2920
        %v2947 = vadd.f32 %v2878, %v2920
        %v2948 = vadd.f32 %v2879, %v2920
        %v2949 = vadd.f32 %v2880, %v2920
        %v2950 = vadd.f32 %v2881, %v2920
        %v2951 = vadd.f32 %v2882, %v2920
        %v2952 = vadd.f32 %v2883, %v2920
        %v2953 = vadd.f32 %v2884, %v2920
        %v2954 = vadd.f32 %v2885, %v2920
        %v2955 = vadd.f32 %v2886, %v2920
        %v2956 = vadd.f32 %v2887, %v2920
        %v2957 = vadd.f32 %v2888, %v2920
        %v2958 = vadd.f32 %v2889, %v2920
        %v2959 = vadd.f32 %v2890, %v2920
        %v2960 = vadd.f32 %v2891, %v2920
        %v2961 = vadd.f32 %v2892, %v2920
        %v2962 = vadd.f32 %v2893, %v2920
        %v2963 = vadd.f32 %v2894, %v2920
        %v2964 = vadd.f32 %v2895, %v2920
        %v2965 = vadd.f32 %v2896, %v2920
        %v2966 = vadd.f32 %v2897, %v2920
        %v2967 = vadd.f32 %v2898, %v2920
        %v2968 = vadd.f32 %v2899, %v2920
        %v2969 = vadd.f32 %v2900, %v2920
        %v2970 = vadd.f32 %v2901, %v2920
        %v2971 = vadd.f32 %v2902, %v2920
        %v2972 = vadd.f32 %v2903, %v2920
        %v2973 = vadd.f32 %v2904, %v2920
        %v2974 = vadd.f32 %v2905, %v2920
        %v2975 = vadd.f32 %v2906, %v2920
        %v2976 = vadd.f32 %v2907, %v2920
        %v2977 = vadd.f32 %v2908, %v2920
        %v2978 = vadd.f32 %v2909, %v2920
        %v2979 = vadd.f32 %v2910, %v2920
        %v2980 = vadd.f32 %v2911, %v2920
        %v2981 = vadd.f32 %v2912, %v2920
        %v2982 = vadd.f32 %v2913, %v2920
        %v2983 = vadd.f32 %v2914, %v2920
        %v2984 = vadd.f32 %v2915, %v2920
        %v2985 = vtanh.pop %v2921
        %v2986 = vtanh.pop %v2922
        %v2987 = vtanh.pop %v2923
        %v2988 = vtanh.pop %v2924
        %v2989 = vtanh.pop %v2925
        %v2990 = vtanh.pop %v2926
        %v2991 = vtanh.pop %v2927
        %v2992 = vtanh.pop %v2928
        %v2993 = vtanh.pop %v2929
        %v2994 = vtanh.pop %v2930
        %v2995 = vtanh.pop %v2931
        %v2996 = vtanh.pop %v2932
        %v2997 = vtanh.pop %v2933
        %v2998 = vtanh.pop %v2934
        %v2999 = vtanh.pop %v2935
        %v3000 = vtanh.pop %v2936
        %v3001 = vtanh.pop %v2937
        %v3002 = vtanh.pop %v2938
        %v3003 = vtanh.pop %v2939
        %v3004 = vtanh.pop %v2940
        %v3005 = vtanh.pop %v2941
        %v3006 = vtanh.pop %v2942
        %v3007 = vtanh.pop %v2943
        %v3008 = vtanh.pop %v2944
        %v3009 = vtanh.pop %v2945
        %v3010 = vtanh.pop %v2946
        %v3011 = vtanh.pop %v2947
        %v3012 = vtanh.pop %v2948
        %v3013 = vtanh.pop %v2949
        %v3014 = vtanh.pop %v2950
        %v3015 = vtanh.pop %v2951
        %v3016 = vtanh.pop %v2952
        %v3017 = vtanh.pop %v2953
        %v3018 = vtanh.pop %v2954
        %v3019 = vtanh.pop %v2955
        %v3020 = vtanh.pop %v2956
        %v3021 = vtanh.pop %v2957
        %v3022 = vtanh.pop %v2958
        %v3023 = vtanh.pop %v2959
        %v3024 = vtanh.pop %v2960
        %v3025 = vtanh.pop %v2961
        %v3026 = vtanh.pop %v2962
        %v3027 = vtanh.pop %v2963
        %v3028 = vtanh.pop %v2964
        %v3029 = vtanh.pop %v2965
        %v3030 = vtanh.pop %v2966
        %v3031 = vtanh.pop %v2967
        %v3032 = vtanh.pop %v2968
        %v3033 = vtanh.pop %v2969
        %v3034 = vtanh.pop %v2970
        %v3035 = vtanh.pop %v2971
        %v3036 = vtanh.pop %v2972
        %v3037 = vtanh.pop %v2973
        %v3038 = vtanh.pop %v2974
        %v3039 = vtanh.pop %v2975
        %v3040 = vtanh.pop %v2976
        %v3041 = vtanh.pop %v2977
        %v3042 = vtanh.pop %v2978
        %v3043 = vtanh.pop %v2979
        %v3044 = vtanh.pop %v2980
        %v3045 = vtanh.pop %v2981
        %v3046 = vtanh.pop %v2982
        %v3047 = vtanh.pop %v2983
        %v3048 = vtanh.pop %v2984
        %s3049 = scalar_lea.vmem [#allocation7], 512
        %v3050 = vld [vmem:[%s3049] sm:$0xff]
        %v3051 = vld [vmem:[%s3049 + $0x8] sm:$0xff]
        %v3052 = vld [vmem:[%s3049 + $0x10] sm:$0xff]
        %v3053 = vld [vmem:[%s3049 + $0x18] sm:$0xff]
        %v3054 = vld [vmem:[%s3049 + $0x20] sm:$0xff]
        %v3055 = vld [vmem:[%s3049 + $0x28] sm:$0xff]
        %v3056 = vld [vmem:[%s3049 + $0x30] sm:$0xff]
        %v3057 = vld [vmem:[%s3049 + $0x38] sm:$0xff]
        %v3058 = vld [vmem:[%s3049 + $0x40] sm:$0xff]
        %v3059 = vld [vmem:[%s3049 + $0x48] sm:$0xff]
        %v3060 = vld [vmem:[%s3049 + $0x50] sm:$0xff]
        %v3061 = vld [vmem:[%s3049 + $0x58] sm:$0xff]
        %v3062 = vld [vmem:[%s3049 + $0x60] sm:$0xff]
        %v3063 = vld [vmem:[%s3049 + $0x68] sm:$0xff]
        %v3064 = vld [vmem:[%s3049 + $0x70] sm:$0xff]
        %v3065 = vld [vmem:[%s3049 + $0x78] sm:$0xff]
        %v3066 = vld [vmem:[#allocation5 + $0xe] sm:$0x1]
        %v3067 = vlaneseq
        %v3068 = vshrl.u32 %v3067, 7
        %v3069 = vsub.s32 0, %v3068
        %v3070 = vrot.slane %v3066, %v3069
        %3071 = vmatprep.subr.mxu0 0.0
        %3072 = vmatpush1.msra.mxu0 %v3065
        %3073 = vmatprep.subr.mxu0 0.0
        %3074 = vmatpush1.msra.mxu0 %v3064
        %3075 = vmatprep.subr.mxu0 0.0
        %3076 = vmatpush1.msra.mxu0 %v3063
        %3077 = vmatprep.subr.mxu0 0.0
        %3078 = vmatpush1.msra.mxu0 %v3062
        %3079 = vmatprep.subr.mxu0 0.0
        %3080 = vmatpush1.msra.mxu0 %v3061
        %3081 = vmatprep.subr.mxu0 0.0
        %3082 = vmatpush1.msra.mxu0 %v3060
        %3083 = vmatprep.subr.mxu0 0.0
        %3084 = vmatpush1.msra.mxu0 %v3059
        %3085 = vmatprep.subr.mxu0 0.0
        %3086 = vmatpush1.msra.mxu0 %v3058
        %3087 = vmatprep.subr.mxu0 0.0
        %3088 = vmatpush1.msra.mxu0 %v3057
        %3089 = vmatprep.subr.mxu0 0.0
        %3090 = vmatpush1.msra.mxu0 %v3056
        %3091 = vmatprep.subr.mxu0 0.0
        %3092 = vmatpush1.msra.mxu0 %v3055
        %3093 = vmatprep.subr.mxu0 0.0
        %3094 = vmatpush1.msra.mxu0 %v3054
        %3095 = vmatprep.subr.mxu0 0.0
        %3096 = vmatpush1.msra.mxu0 %v3053
        %3097 = vmatprep.subr.mxu0 0.0
        %3098 = vmatpush1.msra.mxu0 %v3052
        %3099 = vmatprep.subr.mxu0 0.0
        %3100 = vmatpush1.msra.mxu0 %v3051
        %3101 = vmatprep.subr.mxu0 0.0
        %3102 = vmatpush1.msra.mxu0 %v3050
        %3103 = vmatprep.subr.mxu0 0.0
        %3104 = vmatpush2.msra.mxu0 0.0
        %3105 = vmatprep.subr.mxu0 0.0
        %3106 = vmatpush2.msra.mxu0 0.0
        %3107 = vmatprep.subr.mxu0 0.0
        %3108 = vmatpush2.msra.mxu0 0.0
        %3109 = vmatprep.subr.mxu0 0.0
        %3110 = vmatpush2.msra.mxu0 0.0
        %3111 = vmatprep.subr.mxu0 0.0
        %3112 = vmatpush2.msra.mxu0 0.0
        %3113 = vmatprep.subr.mxu0 0.0
        %3114 = vmatpush2.msra.mxu0 0.0
        %3115 = vmatprep.subr.mxu0 0.0
        %3116 = vmatpush2.msra.mxu0 0.0
        %3117 = vmatprep.subr.mxu0 0.0
        %3118 = vmatpush2.msra.mxu0 0.0
        %3119 = vmatprep.subr.mxu0 0.0
        %3120 = vmatpush2.msra.mxu0 0.0
        %3121 = vmatprep.subr.mxu0 0.0
        %3122 = vmatpush2.msra.mxu0 0.0
        %3123 = vmatprep.subr.mxu0 0.0
        %3124 = vmatpush2.msra.mxu0 0.0
        %3125 = vmatprep.subr.mxu0 0.0
        %3126 = vmatpush2.msra.mxu0 0.0
        %3127 = vmatprep.subr.mxu0 0.0
        %3128 = vmatpush2.msra.mxu0 0.0
        %3129 = vmatprep.subr.mxu0 0.0
        %3130 = vmatpush2.msra.mxu0 0.0
        %3131 = vmatprep.subr.mxu0 0.0
        %3132 = vmatpush2.msra.mxu0 0.0
        %3133 = vmatprep.subr.mxu0 0.0
        %3134 = vmatpush2.msra.mxu0 0.0
        %3135 = vmatprep.mubr.f32.mxu0 0.0
        %3136 = vmatmul.mubr.f32.gmra.mxu0 %v2985
        %v3137 = vpop.f32.mrf.mxu0
        %v3138 = vadd.f32 %v3070, %v3137
        %v3139 = vpop.f32.mrf.mxu0
        %3140 = vmatprep.mubr.f32.mxu0 0.0
        %3141 = vmatmul.mubr.f32.gmra.mxu0 %v2986
        %v3142 = vpop.f32.mrf.mxu0
        %v3143 = vadd.f32 %v3070, %v3142
        %v3144 = vpop.f32.mrf.mxu0
        %3145 = vmatprep.mubr.f32.mxu0 0.0
        %3146 = vmatmul.mubr.f32.gmra.mxu0 %v2987
        %v3147 = vpop.f32.mrf.mxu0
        %v3148 = vadd.f32 %v3070, %v3147
        %v3149 = vpop.f32.mrf.mxu0
        %3150 = vmatprep.mubr.f32.mxu0 0.0
        %3151 = vmatmul.mubr.f32.gmra.mxu0 %v2988
        %v3152 = vpop.f32.mrf.mxu0
        %v3153 = vadd.f32 %v3070, %v3152
        %v3154 = vpop.f32.mrf.mxu0
        %3155 = vmatprep.mubr.f32.mxu0 0.0
        %3156 = vmatmul.mubr.f32.gmra.mxu0 %v2989
        %v3157 = vpop.f32.mrf.mxu0
        %v3158 = vadd.f32 %v3070, %v3157
        %v3159 = vpop.f32.mrf.mxu0
        %3160 = vmatprep.mubr.f32.mxu0 0.0
        %3161 = vmatmul.mubr.f32.gmra.mxu0 %v2990
        %v3162 = vpop.f32.mrf.mxu0
        %v3163 = vadd.f32 %v3070, %v3162
        %v3164 = vpop.f32.mrf.mxu0
        %3165 = vmatprep.mubr.f32.mxu0 0.0
        %3166 = vmatmul.mubr.f32.gmra.mxu0 %v2991
        %v3167 = vpop.f32.mrf.mxu0
        %v3168 = vadd.f32 %v3070, %v3167
        %v3169 = vpop.f32.mrf.mxu0
        %3170 = vmatprep.mubr.f32.mxu0 0.0
        %3171 = vmatmul.mubr.f32.gmra.mxu0 %v2992
        %v3172 = vpop.f32.mrf.mxu0
        %v3173 = vadd.f32 %v3070, %v3172
        %v3174 = vpop.f32.mrf.mxu0
        %3175 = vmatprep.mubr.f32.mxu0 0.0
        %3176 = vmatmul.mubr.f32.gmra.mxu0 %v2993
        %v3177 = vpop.f32.mrf.mxu0
        %v3178 = vadd.f32 %v3070, %v3177
        %v3179 = vpop.f32.mrf.mxu0
        %3180 = vmatprep.mubr.f32.mxu0 0.0
        %3181 = vmatmul.mubr.f32.gmra.mxu0 %v2994
        %v3182 = vpop.f32.mrf.mxu0
        %v3183 = vadd.f32 %v3070, %v3182
        %v3184 = vpop.f32.mrf.mxu0
        %3185 = vmatprep.mubr.f32.mxu0 0.0
        %3186 = vmatmul.mubr.f32.gmra.mxu0 %v2995
        %v3187 = vpop.f32.mrf.mxu0
        %v3188 = vadd.f32 %v3070, %v3187
        %v3189 = vpop.f32.mrf.mxu0
        %3190 = vmatprep.mubr.f32.mxu0 0.0
        %3191 = vmatmul.mubr.f32.gmra.mxu0 %v2996
        %v3192 = vpop.f32.mrf.mxu0
        %v3193 = vadd.f32 %v3070, %v3192
        %v3194 = vpop.f32.mrf.mxu0
        %3195 = vmatprep.mubr.f32.mxu0 0.0
        %3196 = vmatmul.mubr.f32.gmra.mxu0 %v2997
        %v3197 = vpop.f32.mrf.mxu0
        %v3198 = vadd.f32 %v3070, %v3197
        %v3199 = vpop.f32.mrf.mxu0
        %3200 = vmatprep.mubr.f32.mxu0 0.0
        %3201 = vmatmul.mubr.f32.gmra.mxu0 %v2998
        %v3202 = vpop.f32.mrf.mxu0
        %v3203 = vadd.f32 %v3070, %v3202
        %v3204 = vpop.f32.mrf.mxu0
        %3205 = vmatprep.mubr.f32.mxu0 0.0
        %3206 = vmatmul.mubr.f32.gmra.mxu0 %v2999
        %v3207 = vpop.f32.mrf.mxu0
        %v3208 = vadd.f32 %v3070, %v3207
        %v3209 = vpop.f32.mrf.mxu0
        %3210 = vmatprep.mubr.f32.mxu0 0.0
        %3211 = vmatmul.mubr.f32.gmra.mxu0 %v3000
        %v3212 = vpop.f32.mrf.mxu0
        %v3213 = vadd.f32 %v3070, %v3212
        %v3214 = vpop.f32.mrf.mxu0
        %3215 = vmatprep.mubr.f32.mxu0 0.0
        %3216 = vmatmul.mubr.f32.gmra.mxu0 %v3001
        %v3217 = vpop.f32.mrf.mxu0
        %v3218 = vadd.f32 %v3070, %v3217
        %v3219 = vpop.f32.mrf.mxu0
        %3220 = vmatprep.mubr.f32.mxu0 0.0
        %3221 = vmatmul.mubr.f32.gmra.mxu0 %v3002
        %v3222 = vpop.f32.mrf.mxu0
        %v3223 = vadd.f32 %v3070, %v3222
        %v3224 = vpop.f32.mrf.mxu0
        %3225 = vmatprep.mubr.f32.mxu0 0.0
        %3226 = vmatmul.mubr.f32.gmra.mxu0 %v3003
        %v3227 = vpop.f32.mrf.mxu0
        %v3228 = vadd.f32 %v3070, %v3227
        %v3229 = vpop.f32.mrf.mxu0
        %3230 = vmatprep.mubr.f32.mxu0 0.0
        %3231 = vmatmul.mubr.f32.gmra.mxu0 %v3004
        %v3232 = vpop.f32.mrf.mxu0
        %v3233 = vadd.f32 %v3070, %v3232
        %v3234 = vpop.f32.mrf.mxu0
        %3235 = vmatprep.mubr.f32.mxu0 0.0
        %3236 = vmatmul.mubr.f32.gmra.mxu0 %v3005
        %v3237 = vpop.f32.mrf.mxu0
        %v3238 = vadd.f32 %v3070, %v3237
        %v3239 = vpop.f32.mrf.mxu0
        %3240 = vmatprep.mubr.f32.mxu0 0.0
        %3241 = vmatmul.mubr.f32.gmra.mxu0 %v3006
        %v3242 = vpop.f32.mrf.mxu0
        %v3243 = vadd.f32 %v3070, %v3242
        %v3244 = vpop.f32.mrf.mxu0
        %3245 = vmatprep.mubr.f32.mxu0 0.0
        %3246 = vmatmul.mubr.f32.gmra.mxu0 %v3007
        %v3247 = vpop.f32.mrf.mxu0
        %v3248 = vadd.f32 %v3070, %v3247
        %v3249 = vpop.f32.mrf.mxu0
        %3250 = vmatprep.mubr.f32.mxu0 0.0
        %3251 = vmatmul.mubr.f32.gmra.mxu0 %v3008
        %v3252 = vpop.f32.mrf.mxu0
        %v3253 = vadd.f32 %v3070, %v3252
        %v3254 = vpop.f32.mrf.mxu0
        %3255 = vmatprep.mubr.f32.mxu0 0.0
        %3256 = vmatmul.mubr.f32.gmra.mxu0 %v3009
        %v3257 = vpop.f32.mrf.mxu0
        %v3258 = vadd.f32 %v3070, %v3257
        %v3259 = vpop.f32.mrf.mxu0
        %3260 = vmatprep.mubr.f32.mxu0 0.0
        %3261 = vmatmul.mubr.f32.gmra.mxu0 %v3010
        %v3262 = vpop.f32.mrf.mxu0
        %v3263 = vadd.f32 %v3070, %v3262
        %v3264 = vpop.f32.mrf.mxu0
        %3265 = vmatprep.mubr.f32.mxu0 0.0
        %3266 = vmatmul.mubr.f32.gmra.mxu0 %v3011
        %v3267 = vpop.f32.mrf.mxu0
        %v3268 = vadd.f32 %v3070, %v3267
        %v3269 = vpop.f32.mrf.mxu0
        %3270 = vmatprep.mubr.f32.mxu0 0.0
        %3271 = vmatmul.mubr.f32.gmra.mxu0 %v3012
        %v3272 = vpop.f32.mrf.mxu0
        %v3273 = vadd.f32 %v3070, %v3272
        %v3274 = vpop.f32.mrf.mxu0
        %3275 = vmatprep.mubr.f32.mxu0 0.0
        %3276 = vmatmul.mubr.f32.gmra.mxu0 %v3013
        %v3277 = vpop.f32.mrf.mxu0
        %v3278 = vadd.f32 %v3070, %v3277
        %v3279 = vpop.f32.mrf.mxu0
        %3280 = vmatprep.mubr.f32.mxu0 0.0
        %3281 = vmatmul.mubr.f32.gmra.mxu0 %v3014
        %v3282 = vpop.f32.mrf.mxu0
        %v3283 = vadd.f32 %v3070, %v3282
        %v3284 = vpop.f32.mrf.mxu0
        %3285 = vmatprep.mubr.f32.mxu0 0.0
        %3286 = vmatmul.mubr.f32.gmra.mxu0 %v3015
        %v3287 = vpop.f32.mrf.mxu0
        %v3288 = vadd.f32 %v3070, %v3287
        %v3289 = vpop.f32.mrf.mxu0
        %3290 = vmatprep.mubr.f32.mxu0 0.0
        %3291 = vmatmul.mubr.f32.gmra.mxu0 %v3016
        %v3292 = vpop.f32.mrf.mxu0
        %v3293 = vadd.f32 %v3070, %v3292
        %v3294 = vpop.f32.mrf.mxu0
        %3295 = vmatprep.mubr.f32.mxu0 0.0
        %3296 = vmatmul.mubr.f32.gmra.mxu0 %v3017
        %v3297 = vpop.f32.mrf.mxu0
        %v3298 = vadd.f32 %v3070, %v3297
        %v3299 = vpop.f32.mrf.mxu0
        %3300 = vmatprep.mubr.f32.mxu0 0.0
        %3301 = vmatmul.mubr.f32.gmra.mxu0 %v3018
        %v3302 = vpop.f32.mrf.mxu0
        %v3303 = vadd.f32 %v3070, %v3302
        %v3304 = vpop.f32.mrf.mxu0
        %3305 = vmatprep.mubr.f32.mxu0 0.0
        %3306 = vmatmul.mubr.f32.gmra.mxu0 %v3019
        %v3307 = vpop.f32.mrf.mxu0
        %v3308 = vadd.f32 %v3070, %v3307
        %v3309 = vpop.f32.mrf.mxu0
        %3310 = vmatprep.mubr.f32.mxu0 0.0
        %3311 = vmatmul.mubr.f32.gmra.mxu0 %v3020
        %v3312 = vpop.f32.mrf.mxu0
        %v3313 = vadd.f32 %v3070, %v3312
        %v3314 = vpop.f32.mrf.mxu0
        %3315 = vmatprep.mubr.f32.mxu0 0.0
        %3316 = vmatmul.mubr.f32.gmra.mxu0 %v3021
        %v3317 = vpop.f32.mrf.mxu0
        %v3318 = vadd.f32 %v3070, %v3317
        %v3319 = vpop.f32.mrf.mxu0
        %3320 = vmatprep.mubr.f32.mxu0 0.0
        %3321 = vmatmul.mubr.f32.gmra.mxu0 %v3022
        %v3322 = vpop.f32.mrf.mxu0
        %v3323 = vadd.f32 %v3070, %v3322
        %v3324 = vpop.f32.mrf.mxu0
        %3325 = vmatprep.mubr.f32.mxu0 0.0
        %3326 = vmatmul.mubr.f32.gmra.mxu0 %v3023
        %v3327 = vpop.f32.mrf.mxu0
        %v3328 = vadd.f32 %v3070, %v3327
        %v3329 = vpop.f32.mrf.mxu0
        %3330 = vmatprep.mubr.f32.mxu0 0.0
        %3331 = vmatmul.mubr.f32.gmra.mxu0 %v3024
        %v3332 = vpop.f32.mrf.mxu0
        %v3333 = vadd.f32 %v3070, %v3332
        %v3334 = vpop.f32.mrf.mxu0
        %3335 = vmatprep.mubr.f32.mxu0 0.0
        %3336 = vmatmul.mubr.f32.gmra.mxu0 %v3025
        %v3337 = vpop.f32.mrf.mxu0
        %v3338 = vadd.f32 %v3070, %v3337
        %v3339 = vpop.f32.mrf.mxu0
        %3340 = vmatprep.mubr.f32.mxu0 0.0
        %3341 = vmatmul.mubr.f32.gmra.mxu0 %v3026
        %v3342 = vpop.f32.mrf.mxu0
        %v3343 = vadd.f32 %v3070, %v3342
        %v3344 = vpop.f32.mrf.mxu0
        %3345 = vmatprep.mubr.f32.mxu0 0.0
        %3346 = vmatmul.mubr.f32.gmra.mxu0 %v3027
        %v3347 = vpop.f32.mrf.mxu0
        %v3348 = vadd.f32 %v3070, %v3347
        %v3349 = vpop.f32.mrf.mxu0
        %3350 = vmatprep.mubr.f32.mxu0 0.0
        %3351 = vmatmul.mubr.f32.gmra.mxu0 %v3028
        %v3352 = vpop.f32.mrf.mxu0
        %v3353 = vadd.f32 %v3070, %v3352
        %v3354 = vpop.f32.mrf.mxu0
        %3355 = vmatprep.mubr.f32.mxu0 0.0
        %3356 = vmatmul.mubr.f32.gmra.mxu0 %v3029
        %v3357 = vpop.f32.mrf.mxu0
        %v3358 = vadd.f32 %v3070, %v3357
        %v3359 = vpop.f32.mrf.mxu0
        %3360 = vmatprep.mubr.f32.mxu0 0.0
        %3361 = vmatmul.mubr.f32.gmra.mxu0 %v3030
        %v3362 = vpop.f32.mrf.mxu0
        %v3363 = vadd.f32 %v3070, %v3362
        %v3364 = vpop.f32.mrf.mxu0
        %3365 = vmatprep.mubr.f32.mxu0 0.0
        %3366 = vmatmul.mubr.f32.gmra.mxu0 %v3031
        %v3367 = vpop.f32.mrf.mxu0
        %v3368 = vadd.f32 %v3070, %v3367
        %v3369 = vpop.f32.mrf.mxu0
        %3370 = vmatprep.mubr.f32.mxu0 0.0
        %3371 = vmatmul.mubr.f32.gmra.mxu0 %v3032
        %v3372 = vpop.f32.mrf.mxu0
        %v3373 = vadd.f32 %v3070, %v3372
        %v3374 = vpop.f32.mrf.mxu0
        %3375 = vmatprep.mubr.f32.mxu0 0.0
        %3376 = vmatmul.mubr.f32.gmra.mxu0 %v3033
        %v3377 = vpop.f32.mrf.mxu0
        %v3378 = vadd.f32 %v3070, %v3377
        %v3379 = vpop.f32.mrf.mxu0
        %3380 = vmatprep.mubr.f32.mxu0 0.0
        %3381 = vmatmul.mubr.f32.gmra.mxu0 %v3034
        %v3382 = vpop.f32.mrf.mxu0
        %v3383 = vadd.f32 %v3070, %v3382
        %v3384 = vpop.f32.mrf.mxu0
        %3385 = vmatprep.mubr.f32.mxu0 0.0
        %3386 = vmatmul.mubr.f32.gmra.mxu0 %v3035
        %v3387 = vpop.f32.mrf.mxu0
        %v3388 = vadd.f32 %v3070, %v3387
        %v3389 = vpop.f32.mrf.mxu0
        %3390 = vmatprep.mubr.f32.mxu0 0.0
        %3391 = vmatmul.mubr.f32.gmra.mxu0 %v3036
        %v3392 = vpop.f32.mrf.mxu0
        %v3393 = vadd.f32 %v3070, %v3392
        %v3394 = vpop.f32.mrf.mxu0
        %3395 = vmatprep.mubr.f32.mxu0 0.0
        %3396 = vmatmul.mubr.f32.gmra.mxu0 %v3037
        %v3397 = vpop.f32.mrf.mxu0
        %v3398 = vadd.f32 %v3070, %v3397
        %v3399 = vpop.f32.mrf.mxu0
        %3400 = vmatprep.mubr.f32.mxu0 0.0
        %3401 = vmatmul.mubr.f32.gmra.mxu0 %v3038
        %v3402 = vpop.f32.mrf.mxu0
        %v3403 = vadd.f32 %v3070, %v3402
        %v3404 = vpop.f32.mrf.mxu0
        %3405 = vmatprep.mubr.f32.mxu0 0.0
        %3406 = vmatmul.mubr.f32.gmra.mxu0 %v3039
        %v3407 = vpop.f32.mrf.mxu0
        %v3408 = vadd.f32 %v3070, %v3407
        %v3409 = vpop.f32.mrf.mxu0
        %3410 = vmatprep.mubr.f32.mxu0 0.0
        %3411 = vmatmul.mubr.f32.gmra.mxu0 %v3040
        %v3412 = vpop.f32.mrf.mxu0
        %v3413 = vadd.f32 %v3070, %v3412
        %v3414 = vpop.f32.mrf.mxu0
        %3415 = vmatprep.mubr.f32.mxu0 0.0
        %3416 = vmatmul.mubr.f32.gmra.mxu0 %v3041
        %v3417 = vpop.f32.mrf.mxu0
        %v3418 = vadd.f32 %v3070, %v3417
        %v3419 = vpop.f32.mrf.mxu0
        %3420 = vmatprep.mubr.f32.mxu0 0.0
        %3421 = vmatmul.mubr.f32.gmra.mxu0 %v3042
        %v3422 = vpop.f32.mrf.mxu0
        %v3423 = vadd.f32 %v3070, %v3422
        %v3424 = vpop.f32.mrf.mxu0
        %3425 = vmatprep.mubr.f32.mxu0 0.0
        %3426 = vmatmul.mubr.f32.gmra.mxu0 %v3043
        %v3427 = vpop.f32.mrf.mxu0
        %v3428 = vadd.f32 %v3070, %v3427
        %v3429 = vpop.f32.mrf.mxu0
        %3430 = vmatprep.mubr.f32.mxu0 0.0
        %3431 = vmatmul.mubr.f32.gmra.mxu0 %v3044
        %v3432 = vpop.f32.mrf.mxu0
        %v3433 = vadd.f32 %v3070, %v3432
        %v3434 = vpop.f32.mrf.mxu0
        %3435 = vmatprep.mubr.f32.mxu0 0.0
        %3436 = vmatmul.mubr.f32.gmra.mxu0 %v3045
        %v3437 = vpop.f32.mrf.mxu0
        %v3438 = vadd.f32 %v3070, %v3437
        %v3439 = vpop.f32.mrf.mxu0
        %3440 = vmatprep.mubr.f32.mxu0 0.0
        %3441 = vmatmul.mubr.f32.gmra.mxu0 %v3046
        %v3442 = vpop.f32.mrf.mxu0
        %v3443 = vadd.f32 %v3070, %v3442
        %v3444 = vpop.f32.mrf.mxu0
        %3445 = vmatprep.mubr.f32.mxu0 0.0
        %3446 = vmatmul.mubr.f32.gmra.mxu0 %v3047
        %v3447 = vpop.f32.mrf.mxu0
        %v3448 = vadd.f32 %v3070, %v3447
        %v3449 = vpop.f32.mrf.mxu0
        %3450 = vmatprep.mubr.f32.mxu0 0.0
        %3451 = vmatmul.mubr.f32.gmra.mxu0 %v3048
        %v3452 = vpop.f32.mrf.mxu0
        %v3453 = vadd.f32 %v3070, %v3452
        %v3454 = vpop.f32.mrf.mxu0
        %3455 = vdwg.mxu0
        %v3456 = vld [vmem:[#allocation5 + $0xf] sm:$0x1]
        %v3457 = vlaneseq
        %v3458 = vshrl.u32 %v3457, 7
        %v3459 = vsub.s32 0, %v3458
        %v3460 = vrot.slane %v3456, %v3459
        %v3461 = vmul.f32 %v3138, %v3460
        %v3462 = vmul.f32 %v3143, %v3460
        %v3463 = vmul.f32 %v3148, %v3460
        %v3464 = vmul.f32 %v3153, %v3460
        %v3465 = vmul.f32 %v3158, %v3460
        %v3466 = vmul.f32 %v3163, %v3460
        %v3467 = vmul.f32 %v3168, %v3460
        %v3468 = vmul.f32 %v3173, %v3460
        %v3469 = vmul.f32 %v3178, %v3460
        %v3470 = vmul.f32 %v3183, %v3460
        %v3471 = vmul.f32 %v3188, %v3460
        %v3472 = vmul.f32 %v3193, %v3460
        %v3473 = vmul.f32 %v3198, %v3460
        %v3474 = vmul.f32 %v3203, %v3460
        %v3475 = vmul.f32 %v3208, %v3460
        %v3476 = vmul.f32 %v3213, %v3460
        %v3477 = vmul.f32 %v3218, %v3460
        %v3478 = vmul.f32 %v3223, %v3460
        %v3479 = vmul.f32 %v3228, %v3460
        %v3480 = vmul.f32 %v3233, %v3460
        %v3481 = vmul.f32 %v3238, %v3460
        %v3482 = vmul.f32 %v3243, %v3460
        %v3483 = vmul.f32 %v3248, %v3460
        %v3484 = vmul.f32 %v3253, %v3460
        %v3485 = vmul.f32 %v3258, %v3460
        %v3486 = vmul.f32 %v3263, %v3460
        %v3487 = vmul.f32 %v3268, %v3460
        %v3488 = vmul.f32 %v3273, %v3460
        %v3489 = vmul.f32 %v3278, %v3460
        %v3490 = vmul.f32 %v3283, %v3460
        %v3491 = vmul.f32 %v3288, %v3460
        %v3492 = vmul.f32 %v3293, %v3460
        %v3493 = vmul.f32 %v3298, %v3460
        %v3494 = vmul.f32 %v3303, %v3460
        %v3495 = vmul.f32 %v3308, %v3460
        %v3496 = vmul.f32 %v3313, %v3460
        %v3497 = vmul.f32 %v3318, %v3460
        %v3498 = vmul.f32 %v3323, %v3460
        %v3499 = vmul.f32 %v3328, %v3460
        %v3500 = vmul.f32 %v3333, %v3460
        %v3501 = vmul.f32 %v3338, %v3460
        %v3502 = vmul.f32 %v3343, %v3460
        %v3503 = vmul.f32 %v3348, %v3460
        %v3504 = vmul.f32 %v3353, %v3460
        %v3505 = vmul.f32 %v3358, %v3460
        %v3506 = vmul.f32 %v3363, %v3460
        %v3507 = vmul.f32 %v3368, %v3460
        %v3508 = vmul.f32 %v3373, %v3460
        %v3509 = vmul.f32 %v3378, %v3460
        %v3510 = vmul.f32 %v3383, %v3460
        %v3511 = vmul.f32 %v3388, %v3460
        %v3512 = vmul.f32 %v3393, %v3460
        %v3513 = vmul.f32 %v3398, %v3460
        %v3514 = vmul.f32 %v3403, %v3460
        %v3515 = vmul.f32 %v3408, %v3460
        %v3516 = vmul.f32 %v3413, %v3460
        %v3517 = vmul.f32 %v3418, %v3460
        %v3518 = vmul.f32 %v3423, %v3460
        %v3519 = vmul.f32 %v3428, %v3460
        %v3520 = vmul.f32 %v3433, %v3460
        %v3521 = vmul.f32 %v3438, %v3460
        %v3522 = vmul.f32 %v3443, %v3460
        %v3523 = vmul.f32 %v3448, %v3460
        %v3524 = vmul.f32 %v3453, %v3460
        %v3525 = vld [vmem:[#allocation5 + $0x10] sm:$0x1]
        %v3526 = vlaneseq
        %v3527 = vshrl.u32 %v3526, 7
        %v3528 = vsub.s32 0, %v3527
        %v3529 = vrot.slane %v3525, %v3528
        %v3530 = vadd.f32 %v3461, %v3529
        %v3531 = vadd.f32 %v3462, %v3529
        %v3532 = vadd.f32 %v3463, %v3529
        %v3533 = vadd.f32 %v3464, %v3529
        %v3534 = vadd.f32 %v3465, %v3529
        %v3535 = vadd.f32 %v3466, %v3529
        %v3536 = vadd.f32 %v3467, %v3529
        %v3537 = vadd.f32 %v3468, %v3529
        %v3538 = vadd.f32 %v3469, %v3529
        %v3539 = vadd.f32 %v3470, %v3529
        %v3540 = vadd.f32 %v3471, %v3529
        %v3541 = vadd.f32 %v3472, %v3529
        %v3542 = vadd.f32 %v3473, %v3529
        %v3543 = vadd.f32 %v3474, %v3529
        %v3544 = vadd.f32 %v3475, %v3529
        %v3545 = vadd.f32 %v3476, %v3529
        %v3546 = vadd.f32 %v3477, %v3529
        %v3547 = vadd.f32 %v3478, %v3529
        %v3548 = vadd.f32 %v3479, %v3529
        %v3549 = vadd.f32 %v3480, %v3529
        %v3550 = vadd.f32 %v3481, %v3529
        %v3551 = vadd.f32 %v3482, %v3529
        %v3552 = vadd.f32 %v3483, %v3529
        %v3553 = vadd.f32 %v3484, %v3529
        %v3554 = vadd.f32 %v3485, %v3529
        %v3555 = vadd.f32 %v3486, %v3529
        %v3556 = vadd.f32 %v3487, %v3529
        %v3557 = vadd.f32 %v3488, %v3529
        %v3558 = vadd.f32 %v3489, %v3529
        %v3559 = vadd.f32 %v3490, %v3529
        %v3560 = vadd.f32 %v3491, %v3529
        %v3561 = vadd.f32 %v3492, %v3529
        %v3562 = vadd.f32 %v3493, %v3529
        %v3563 = vadd.f32 %v3494, %v3529
        %v3564 = vadd.f32 %v3495, %v3529
        %v3565 = vadd.f32 %v3496, %v3529
        %v3566 = vadd.f32 %v3497, %v3529
        %v3567 = vadd.f32 %v3498, %v3529
        %v3568 = vadd.f32 %v3499, %v3529
        %v3569 = vadd.f32 %v3500, %v3529
        %v3570 = vadd.f32 %v3501, %v3529
        %v3571 = vadd.f32 %v3502, %v3529
        %v3572 = vadd.f32 %v3503, %v3529
        %v3573 = vadd.f32 %v3504, %v3529
        %v3574 = vadd.f32 %v3505, %v3529
        %v3575 = vadd.f32 %v3506, %v3529
        %v3576 = vadd.f32 %v3507, %v3529
        %v3577 = vadd.f32 %v3508, %v3529
        %v3578 = vadd.f32 %v3509, %v3529
        %v3579 = vadd.f32 %v3510, %v3529
        %v3580 = vadd.f32 %v3511, %v3529
        %v3581 = vadd.f32 %v3512, %v3529
        %v3582 = vadd.f32 %v3513, %v3529
        %v3583 = vadd.f32 %v3514, %v3529
        %v3584 = vadd.f32 %v3515, %v3529
        %v3585 = vadd.f32 %v3516, %v3529
        %v3586 = vadd.f32 %v3517, %v3529
        %v3587 = vadd.f32 %v3518, %v3529
        %v3588 = vadd.f32 %v3519, %v3529
        %v3589 = vadd.f32 %v3520, %v3529
        %v3590 = vadd.f32 %v3521, %v3529
        %v3591 = vadd.f32 %v3522, %v3529
        %v3592 = vadd.f32 %v3523, %v3529
        %v3593 = vadd.f32 %v3524, %v3529
        %v3594 = vtanh.pop %v3530
        %v3595 = vtanh.pop %v3531
        %v3596 = vtanh.pop %v3532
        %v3597 = vtanh.pop %v3533
        %v3598 = vtanh.pop %v3534
        %v3599 = vtanh.pop %v3535
        %v3600 = vtanh.pop %v3536
        %v3601 = vtanh.pop %v3537
        %v3602 = vtanh.pop %v3538
        %v3603 = vtanh.pop %v3539
        %v3604 = vtanh.pop %v3540
        %v3605 = vtanh.pop %v3541
        %v3606 = vtanh.pop %v3542
        %v3607 = vtanh.pop %v3543
        %v3608 = vtanh.pop %v3544
        %v3609 = vtanh.pop %v3545
        %v3610 = vtanh.pop %v3546
        %v3611 = vtanh.pop %v3547
        %v3612 = vtanh.pop %v3548
        %v3613 = vtanh.pop %v3549
        %v3614 = vtanh.pop %v3550
        %v3615 = vtanh.pop %v3551
        %v3616 = vtanh.pop %v3552
        %v3617 = vtanh.pop %v3553
        %v3618 = vtanh.pop %v3554
        %v3619 = vtanh.pop %v3555
        %v3620 = vtanh.pop %v3556
        %v3621 = vtanh.pop %v3557
        %v3622 = vtanh.pop %v3558
        %v3623 = vtanh.pop %v3559
        %v3624 = vtanh.pop %v3560
        %v3625 = vtanh.pop %v3561
        %v3626 = vtanh.pop %v3562
        %v3627 = vtanh.pop %v3563
        %v3628 = vtanh.pop %v3564
        %v3629 = vtanh.pop %v3565
        %v3630 = vtanh.pop %v3566
        %v3631 = vtanh.pop %v3567
        %v3632 = vtanh.pop %v3568
        %v3633 = vtanh.pop %v3569
        %v3634 = vtanh.pop %v3570
        %v3635 = vtanh.pop %v3571
        %v3636 = vtanh.pop %v3572
        %v3637 = vtanh.pop %v3573
        %v3638 = vtanh.pop %v3574
        %v3639 = vtanh.pop %v3575
        %v3640 = vtanh.pop %v3576
        %v3641 = vtanh.pop %v3577
        %v3642 = vtanh.pop %v3578
        %v3643 = vtanh.pop %v3579
        %v3644 = vtanh.pop %v3580
        %v3645 = vtanh.pop %v3581
        %v3646 = vtanh.pop %v3582
        %v3647 = vtanh.pop %v3583
        %v3648 = vtanh.pop %v3584
        %v3649 = vtanh.pop %v3585
        %v3650 = vtanh.pop %v3586
        %v3651 = vtanh.pop %v3587
        %v3652 = vtanh.pop %v3588
        %v3653 = vtanh.pop %v3589
        %v3654 = vtanh.pop %v3590
        %v3655 = vtanh.pop %v3591
        %v3656 = vtanh.pop %v3592
        %v3657 = vtanh.pop %v3593
        %s3658 = scalar_lea.vmem [#allocation7], 640
        %v3659 = vld [vmem:[%s3658] sm:$0xff]
        %v3660 = vld [vmem:[%s3658 + $0x8] sm:$0xff]
        %v3661 = vld [vmem:[%s3658 + $0x10] sm:$0xff]
        %v3662 = vld [vmem:[%s3658 + $0x18] sm:$0xff]
        %v3663 = vld [vmem:[%s3658 + $0x20] sm:$0xff]
        %v3664 = vld [vmem:[%s3658 + $0x28] sm:$0xff]
        %v3665 = vld [vmem:[%s3658 + $0x30] sm:$0xff]
        %v3666 = vld [vmem:[%s3658 + $0x38] sm:$0xff]
        %v3667 = vld [vmem:[%s3658 + $0x40] sm:$0xff]
        %v3668 = vld [vmem:[%s3658 + $0x48] sm:$0xff]
        %v3669 = vld [vmem:[%s3658 + $0x50] sm:$0xff]
        %v3670 = vld [vmem:[%s3658 + $0x58] sm:$0xff]
        %v3671 = vld [vmem:[%s3658 + $0x60] sm:$0xff]
        %v3672 = vld [vmem:[%s3658 + $0x68] sm:$0xff]
        %v3673 = vld [vmem:[%s3658 + $0x70] sm:$0xff]
        %v3674 = vld [vmem:[%s3658 + $0x78] sm:$0xff]
        %v3675 = vld [vmem:[#allocation5 + $0x11] sm:$0x1]
        %v3676 = vlaneseq
        %v3677 = vshrl.u32 %v3676, 7
        %v3678 = vsub.s32 0, %v3677
        %v3679 = vrot.slane %v3675, %v3678
        %3680 = vmatprep.subr.mxu0 0.0
        %3681 = vmatpush1.msra.mxu0 %v3674
        %3682 = vmatprep.subr.mxu0 0.0
        %3683 = vmatpush1.msra.mxu0 %v3673
        %3684 = vmatprep.subr.mxu0 0.0
        %3685 = vmatpush1.msra.mxu0 %v3672
        %3686 = vmatprep.subr.mxu0 0.0
        %3687 = vmatpush1.msra.mxu0 %v3671
        %3688 = vmatprep.subr.mxu0 0.0
        %3689 = vmatpush1.msra.mxu0 %v3670
        %3690 = vmatprep.subr.mxu0 0.0
        %3691 = vmatpush1.msra.mxu0 %v3669
        %3692 = vmatprep.subr.mxu0 0.0
        %3693 = vmatpush1.msra.mxu0 %v3668
        %3694 = vmatprep.subr.mxu0 0.0
        %3695 = vmatpush1.msra.mxu0 %v3667
        %3696 = vmatprep.subr.mxu0 0.0
        %3697 = vmatpush1.msra.mxu0 %v3666
        %3698 = vmatprep.subr.mxu0 0.0
        %3699 = vmatpush1.msra.mxu0 %v3665
        %3700 = vmatprep.subr.mxu0 0.0
        %3701 = vmatpush1.msra.mxu0 %v3664
        %3702 = vmatprep.subr.mxu0 0.0
        %3703 = vmatpush1.msra.mxu0 %v3663
        %3704 = vmatprep.subr.mxu0 0.0
        %3705 = vmatpush1.msra.mxu0 %v3662
        %3706 = vmatprep.subr.mxu0 0.0
        %3707 = vmatpush1.msra.mxu0 %v3661
        %3708 = vmatprep.subr.mxu0 0.0
        %3709 = vmatpush1.msra.mxu0 %v3660
        %3710 = vmatprep.subr.mxu0 0.0
        %3711 = vmatpush1.msra.mxu0 %v3659
        %3712 = vmatprep.subr.mxu0 0.0
        %3713 = vmatpush2.msra.mxu0 0.0
        %3714 = vmatprep.subr.mxu0 0.0
        %3715 = vmatpush2.msra.mxu0 0.0
        %3716 = vmatprep.subr.mxu0 0.0
        %3717 = vmatpush2.msra.mxu0 0.0
        %3718 = vmatprep.subr.mxu0 0.0
        %3719 = vmatpush2.msra.mxu0 0.0
        %3720 = vmatprep.subr.mxu0 0.0
        %3721 = vmatpush2.msra.mxu0 0.0
        %3722 = vmatprep.subr.mxu0 0.0
        %3723 = vmatpush2.msra.mxu0 0.0
        %3724 = vmatprep.subr.mxu0 0.0
        %3725 = vmatpush2.msra.mxu0 0.0
        %3726 = vmatprep.subr.mxu0 0.0
        %3727 = vmatpush2.msra.mxu0 0.0
        %3728 = vmatprep.subr.mxu0 0.0
        %3729 = vmatpush2.msra.mxu0 0.0
        %3730 = vmatprep.subr.mxu0 0.0
        %3731 = vmatpush2.msra.mxu0 0.0
        %3732 = vmatprep.subr.mxu0 0.0
        %3733 = vmatpush2.msra.mxu0 0.0
        %3734 = vmatprep.subr.mxu0 0.0
        %3735 = vmatpush2.msra.mxu0 0.0
        %3736 = vmatprep.subr.mxu0 0.0
        %3737 = vmatpush2.msra.mxu0 0.0
        %3738 = vmatprep.subr.mxu0 0.0
        %3739 = vmatpush2.msra.mxu0 0.0
        %3740 = vmatprep.subr.mxu0 0.0
        %3741 = vmatpush2.msra.mxu0 0.0
        %3742 = vmatprep.subr.mxu0 0.0
        %3743 = vmatpush2.msra.mxu0 0.0
        %3744 = vmatprep.mubr.f32.mxu0 0.0
        %3745 = vmatmul.mubr.f32.gmra.mxu0 %v3594
        %v3746 = vpop.f32.mrf.mxu0
        %v3747 = vadd.f32 %v3679, %v3746
        %v3748 = vpop.f32.mrf.mxu0
        %3749 = vmatprep.mubr.f32.mxu0 0.0
        %3750 = vmatmul.mubr.f32.gmra.mxu0 %v3595
        %v3751 = vpop.f32.mrf.mxu0
        %v3752 = vadd.f32 %v3679, %v3751
        %v3753 = vpop.f32.mrf.mxu0
        %3754 = vmatprep.mubr.f32.mxu0 0.0
        %3755 = vmatmul.mubr.f32.gmra.mxu0 %v3596
        %v3756 = vpop.f32.mrf.mxu0
        %v3757 = vadd.f32 %v3679, %v3756
        %v3758 = vpop.f32.mrf.mxu0
        %3759 = vmatprep.mubr.f32.mxu0 0.0
        %3760 = vmatmul.mubr.f32.gmra.mxu0 %v3597
        %v3761 = vpop.f32.mrf.mxu0
        %v3762 = vadd.f32 %v3679, %v3761
        %v3763 = vpop.f32.mrf.mxu0
        %3764 = vmatprep.mubr.f32.mxu0 0.0
        %3765 = vmatmul.mubr.f32.gmra.mxu0 %v3598
        %v3766 = vpop.f32.mrf.mxu0
        %v3767 = vadd.f32 %v3679, %v3766
        %v3768 = vpop.f32.mrf.mxu0
        %3769 = vmatprep.mubr.f32.mxu0 0.0
        %3770 = vmatmul.mubr.f32.gmra.mxu0 %v3599
        %v3771 = vpop.f32.mrf.mxu0
        %v3772 = vadd.f32 %v3679, %v3771
        %v3773 = vpop.f32.mrf.mxu0
        %3774 = vmatprep.mubr.f32.mxu0 0.0
        %3775 = vmatmul.mubr.f32.gmra.mxu0 %v3600
        %v3776 = vpop.f32.mrf.mxu0
        %v3777 = vadd.f32 %v3679, %v3776
        %v3778 = vpop.f32.mrf.mxu0
        %3779 = vmatprep.mubr.f32.mxu0 0.0
        %3780 = vmatmul.mubr.f32.gmra.mxu0 %v3601
        %v3781 = vpop.f32.mrf.mxu0
        %v3782 = vadd.f32 %v3679, %v3781
        %v3783 = vpop.f32.mrf.mxu0
        %3784 = vmatprep.mubr.f32.mxu0 0.0
        %3785 = vmatmul.mubr.f32.gmra.mxu0 %v3602
        %v3786 = vpop.f32.mrf.mxu0
        %v3787 = vadd.f32 %v3679, %v3786
        %v3788 = vpop.f32.mrf.mxu0
        %3789 = vmatprep.mubr.f32.mxu0 0.0
        %3790 = vmatmul.mubr.f32.gmra.mxu0 %v3603
        %v3791 = vpop.f32.mrf.mxu0
        %v3792 = vadd.f32 %v3679, %v3791
        %v3793 = vpop.f32.mrf.mxu0
        %3794 = vmatprep.mubr.f32.mxu0 0.0
        %3795 = vmatmul.mubr.f32.gmra.mxu0 %v3604
        %v3796 = vpop.f32.mrf.mxu0
        %v3797 = vadd.f32 %v3679, %v3796
        %v3798 = vpop.f32.mrf.mxu0
        %3799 = vmatprep.mubr.f32.mxu0 0.0
        %3800 = vmatmul.mubr.f32.gmra.mxu0 %v3605
        %v3801 = vpop.f32.mrf.mxu0
        %v3802 = vadd.f32 %v3679, %v3801
        %v3803 = vpop.f32.mrf.mxu0
        %3804 = vmatprep.mubr.f32.mxu0 0.0
        %3805 = vmatmul.mubr.f32.gmra.mxu0 %v3606
        %v3806 = vpop.f32.mrf.mxu0
        %v3807 = vadd.f32 %v3679, %v3806
        %v3808 = vpop.f32.mrf.mxu0
        %3809 = vmatprep.mubr.f32.mxu0 0.0
        %3810 = vmatmul.mubr.f32.gmra.mxu0 %v3607
        %v3811 = vpop.f32.mrf.mxu0
        %v3812 = vadd.f32 %v3679, %v3811
        %v3813 = vpop.f32.mrf.mxu0
        %3814 = vmatprep.mubr.f32.mxu0 0.0
        %3815 = vmatmul.mubr.f32.gmra.mxu0 %v3608
        %v3816 = vpop.f32.mrf.mxu0
        %v3817 = vadd.f32 %v3679, %v3816
        %v3818 = vpop.f32.mrf.mxu0
        %3819 = vmatprep.mubr.f32.mxu0 0.0
        %3820 = vmatmul.mubr.f32.gmra.mxu0 %v3609
        %v3821 = vpop.f32.mrf.mxu0
        %v3822 = vadd.f32 %v3679, %v3821
        %v3823 = vpop.f32.mrf.mxu0
        %3824 = vmatprep.mubr.f32.mxu0 0.0
        %3825 = vmatmul.mubr.f32.gmra.mxu0 %v3610
        %v3826 = vpop.f32.mrf.mxu0
        %v3827 = vadd.f32 %v3679, %v3826
        %v3828 = vpop.f32.mrf.mxu0
        %3829 = vmatprep.mubr.f32.mxu0 0.0
        %3830 = vmatmul.mubr.f32.gmra.mxu0 %v3611
        %v3831 = vpop.f32.mrf.mxu0
        %v3832 = vadd.f32 %v3679, %v3831
        %v3833 = vpop.f32.mrf.mxu0
        %3834 = vmatprep.mubr.f32.mxu0 0.0
        %3835 = vmatmul.mubr.f32.gmra.mxu0 %v3612
        %v3836 = vpop.f32.mrf.mxu0
        %v3837 = vadd.f32 %v3679, %v3836
        %v3838 = vpop.f32.mrf.mxu0
        %3839 = vmatprep.mubr.f32.mxu0 0.0
        %3840 = vmatmul.mubr.f32.gmra.mxu0 %v3613
        %v3841 = vpop.f32.mrf.mxu0
        %v3842 = vadd.f32 %v3679, %v3841
        %v3843 = vpop.f32.mrf.mxu0
        %3844 = vmatprep.mubr.f32.mxu0 0.0
        %3845 = vmatmul.mubr.f32.gmra.mxu0 %v3614
        %v3846 = vpop.f32.mrf.mxu0
        %v3847 = vadd.f32 %v3679, %v3846
        %v3848 = vpop.f32.mrf.mxu0
        %3849 = vmatprep.mubr.f32.mxu0 0.0
        %3850 = vmatmul.mubr.f32.gmra.mxu0 %v3615
        %v3851 = vpop.f32.mrf.mxu0
        %v3852 = vadd.f32 %v3679, %v3851
        %v3853 = vpop.f32.mrf.mxu0
        %3854 = vmatprep.mubr.f32.mxu0 0.0
        %3855 = vmatmul.mubr.f32.gmra.mxu0 %v3616
        %v3856 = vpop.f32.mrf.mxu0
        %v3857 = vadd.f32 %v3679, %v3856
        %v3858 = vpop.f32.mrf.mxu0
        %3859 = vmatprep.mubr.f32.mxu0 0.0
        %3860 = vmatmul.mubr.f32.gmra.mxu0 %v3617
        %v3861 = vpop.f32.mrf.mxu0
        %v3862 = vadd.f32 %v3679, %v3861
        %v3863 = vpop.f32.mrf.mxu0
        %3864 = vmatprep.mubr.f32.mxu0 0.0
        %3865 = vmatmul.mubr.f32.gmra.mxu0 %v3618
        %v3866 = vpop.f32.mrf.mxu0
        %v3867 = vadd.f32 %v3679, %v3866
        %v3868 = vpop.f32.mrf.mxu0
        %3869 = vmatprep.mubr.f32.mxu0 0.0
        %3870 = vmatmul.mubr.f32.gmra.mxu0 %v3619
        %v3871 = vpop.f32.mrf.mxu0
        %v3872 = vadd.f32 %v3679, %v3871
        %v3873 = vpop.f32.mrf.mxu0
        %3874 = vmatprep.mubr.f32.mxu0 0.0
        %3875 = vmatmul.mubr.f32.gmra.mxu0 %v3620
        %v3876 = vpop.f32.mrf.mxu0
        %v3877 = vadd.f32 %v3679, %v3876
        %v3878 = vpop.f32.mrf.mxu0
        %3879 = vmatprep.mubr.f32.mxu0 0.0
        %3880 = vmatmul.mubr.f32.gmra.mxu0 %v3621
        %v3881 = vpop.f32.mrf.mxu0
        %v3882 = vadd.f32 %v3679, %v3881
        %v3883 = vpop.f32.mrf.mxu0
        %3884 = vmatprep.mubr.f32.mxu0 0.0
        %3885 = vmatmul.mubr.f32.gmra.mxu0 %v3622
        %v3886 = vpop.f32.mrf.mxu0
        %v3887 = vadd.f32 %v3679, %v3886
        %v3888 = vpop.f32.mrf.mxu0
        %3889 = vmatprep.mubr.f32.mxu0 0.0
        %3890 = vmatmul.mubr.f32.gmra.mxu0 %v3623
        %v3891 = vpop.f32.mrf.mxu0
        %v3892 = vadd.f32 %v3679, %v3891
        %v3893 = vpop.f32.mrf.mxu0
        %3894 = vmatprep.mubr.f32.mxu0 0.0
        %3895 = vmatmul.mubr.f32.gmra.mxu0 %v3624
        %v3896 = vpop.f32.mrf.mxu0
        %v3897 = vadd.f32 %v3679, %v3896
        %v3898 = vpop.f32.mrf.mxu0
        %3899 = vmatprep.mubr.f32.mxu0 0.0
        %3900 = vmatmul.mubr.f32.gmra.mxu0 %v3625
        %v3901 = vpop.f32.mrf.mxu0
        %v3902 = vadd.f32 %v3679, %v3901
        %v3903 = vpop.f32.mrf.mxu0
        %3904 = vmatprep.mubr.f32.mxu0 0.0
        %3905 = vmatmul.mubr.f32.gmra.mxu0 %v3626
        %v3906 = vpop.f32.mrf.mxu0
        %v3907 = vadd.f32 %v3679, %v3906
        %v3908 = vpop.f32.mrf.mxu0
        %3909 = vmatprep.mubr.f32.mxu0 0.0
        %3910 = vmatmul.mubr.f32.gmra.mxu0 %v3627
        %v3911 = vpop.f32.mrf.mxu0
        %v3912 = vadd.f32 %v3679, %v3911
        %v3913 = vpop.f32.mrf.mxu0
        %3914 = vmatprep.mubr.f32.mxu0 0.0
        %3915 = vmatmul.mubr.f32.gmra.mxu0 %v3628
        %v3916 = vpop.f32.mrf.mxu0
        %v3917 = vadd.f32 %v3679, %v3916
        %v3918 = vpop.f32.mrf.mxu0
        %3919 = vmatprep.mubr.f32.mxu0 0.0
        %3920 = vmatmul.mubr.f32.gmra.mxu0 %v3629
        %v3921 = vpop.f32.mrf.mxu0
        %v3922 = vadd.f32 %v3679, %v3921
        %v3923 = vpop.f32.mrf.mxu0
        %3924 = vmatprep.mubr.f32.mxu0 0.0
        %3925 = vmatmul.mubr.f32.gmra.mxu0 %v3630
        %v3926 = vpop.f32.mrf.mxu0
        %v3927 = vadd.f32 %v3679, %v3926
        %v3928 = vpop.f32.mrf.mxu0
        %3929 = vmatprep.mubr.f32.mxu0 0.0
        %3930 = vmatmul.mubr.f32.gmra.mxu0 %v3631
        %v3931 = vpop.f32.mrf.mxu0
        %v3932 = vadd.f32 %v3679, %v3931
        %v3933 = vpop.f32.mrf.mxu0
        %3934 = vmatprep.mubr.f32.mxu0 0.0
        %3935 = vmatmul.mubr.f32.gmra.mxu0 %v3632
        %v3936 = vpop.f32.mrf.mxu0
        %v3937 = vadd.f32 %v3679, %v3936
        %v3938 = vpop.f32.mrf.mxu0
        %3939 = vmatprep.mubr.f32.mxu0 0.0
        %3940 = vmatmul.mubr.f32.gmra.mxu0 %v3633
        %v3941 = vpop.f32.mrf.mxu0
        %v3942 = vadd.f32 %v3679, %v3941
        %v3943 = vpop.f32.mrf.mxu0
        %3944 = vmatprep.mubr.f32.mxu0 0.0
        %3945 = vmatmul.mubr.f32.gmra.mxu0 %v3634
        %v3946 = vpop.f32.mrf.mxu0
        %v3947 = vadd.f32 %v3679, %v3946
        %v3948 = vpop.f32.mrf.mxu0
        %3949 = vmatprep.mubr.f32.mxu0 0.0
        %3950 = vmatmul.mubr.f32.gmra.mxu0 %v3635
        %v3951 = vpop.f32.mrf.mxu0
        %v3952 = vadd.f32 %v3679, %v3951
        %v3953 = vpop.f32.mrf.mxu0
        %3954 = vmatprep.mubr.f32.mxu0 0.0
        %3955 = vmatmul.mubr.f32.gmra.mxu0 %v3636
        %v3956 = vpop.f32.mrf.mxu0
        %v3957 = vadd.f32 %v3679, %v3956
        %v3958 = vpop.f32.mrf.mxu0
        %3959 = vmatprep.mubr.f32.mxu0 0.0
        %3960 = vmatmul.mubr.f32.gmra.mxu0 %v3637
        %v3961 = vpop.f32.mrf.mxu0
        %v3962 = vadd.f32 %v3679, %v3961
        %v3963 = vpop.f32.mrf.mxu0
        %3964 = vmatprep.mubr.f32.mxu0 0.0
        %3965 = vmatmul.mubr.f32.gmra.mxu0 %v3638
        %v3966 = vpop.f32.mrf.mxu0
        %v3967 = vadd.f32 %v3679, %v3966
        %v3968 = vpop.f32.mrf.mxu0
        %3969 = vmatprep.mubr.f32.mxu0 0.0
        %3970 = vmatmul.mubr.f32.gmra.mxu0 %v3639
        %v3971 = vpop.f32.mrf.mxu0
        %v3972 = vadd.f32 %v3679, %v3971
        %v3973 = vpop.f32.mrf.mxu0
        %3974 = vmatprep.mubr.f32.mxu0 0.0
        %3975 = vmatmul.mubr.f32.gmra.mxu0 %v3640
        %v3976 = vpop.f32.mrf.mxu0
        %v3977 = vadd.f32 %v3679, %v3976
        %v3978 = vpop.f32.mrf.mxu0
        %3979 = vmatprep.mubr.f32.mxu0 0.0
        %3980 = vmatmul.mubr.f32.gmra.mxu0 %v3641
        %v3981 = vpop.f32.mrf.mxu0
        %v3982 = vadd.f32 %v3679, %v3981
        %v3983 = vpop.f32.mrf.mxu0
        %3984 = vmatprep.mubr.f32.mxu0 0.0
        %3985 = vmatmul.mubr.f32.gmra.mxu0 %v3642
        %v3986 = vpop.f32.mrf.mxu0
        %v3987 = vadd.f32 %v3679, %v3986
        %v3988 = vpop.f32.mrf.mxu0
        %3989 = vmatprep.mubr.f32.mxu0 0.0
        %3990 = vmatmul.mubr.f32.gmra.mxu0 %v3643
        %v3991 = vpop.f32.mrf.mxu0
        %v3992 = vadd.f32 %v3679, %v3991
        %v3993 = vpop.f32.mrf.mxu0
        %3994 = vmatprep.mubr.f32.mxu0 0.0
        %3995 = vmatmul.mubr.f32.gmra.mxu0 %v3644
        %v3996 = vpop.f32.mrf.mxu0
        %v3997 = vadd.f32 %v3679, %v3996
        %v3998 = vpop.f32.mrf.mxu0
        %3999 = vmatprep.mubr.f32.mxu0 0.0
        %4000 = vmatmul.mubr.f32.gmra.mxu0 %v3645
        %v4001 = vpop.f32.mrf.mxu0
        %v4002 = vadd.f32 %v3679, %v4001
        %v4003 = vpop.f32.mrf.mxu0
        %4004 = vmatprep.mubr.f32.mxu0 0.0
        %4005 = vmatmul.mubr.f32.gmra.mxu0 %v3646
        %v4006 = vpop.f32.mrf.mxu0
        %v4007 = vadd.f32 %v3679, %v4006
        %v4008 = vpop.f32.mrf.mxu0
        %4009 = vmatprep.mubr.f32.mxu0 0.0
        %4010 = vmatmul.mubr.f32.gmra.mxu0 %v3647
        %v4011 = vpop.f32.mrf.mxu0
        %v4012 = vadd.f32 %v3679, %v4011
        %v4013 = vpop.f32.mrf.mxu0
        %4014 = vmatprep.mubr.f32.mxu0 0.0
        %4015 = vmatmul.mubr.f32.gmra.mxu0 %v3648
        %v4016 = vpop.f32.mrf.mxu0
        %v4017 = vadd.f32 %v3679, %v4016
        %v4018 = vpop.f32.mrf.mxu0
        %4019 = vmatprep.mubr.f32.mxu0 0.0
        %4020 = vmatmul.mubr.f32.gmra.mxu0 %v3649
        %v4021 = vpop.f32.mrf.mxu0
        %v4022 = vadd.f32 %v3679, %v4021
        %v4023 = vpop.f32.mrf.mxu0
        %4024 = vmatprep.mubr.f32.mxu0 0.0
        %4025 = vmatmul.mubr.f32.gmra.mxu0 %v3650
        %v4026 = vpop.f32.mrf.mxu0
        %v4027 = vadd.f32 %v3679, %v4026
        %v4028 = vpop.f32.mrf.mxu0
        %4029 = vmatprep.mubr.f32.mxu0 0.0
        %4030 = vmatmul.mubr.f32.gmra.mxu0 %v3651
        %v4031 = vpop.f32.mrf.mxu0
        %v4032 = vadd.f32 %v3679, %v4031
        %v4033 = vpop.f32.mrf.mxu0
        %4034 = vmatprep.mubr.f32.mxu0 0.0
        %4035 = vmatmul.mubr.f32.gmra.mxu0 %v3652
        %v4036 = vpop.f32.mrf.mxu0
        %v4037 = vadd.f32 %v3679, %v4036
        %v4038 = vpop.f32.mrf.mxu0
        %4039 = vmatprep.mubr.f32.mxu0 0.0
        %4040 = vmatmul.mubr.f32.gmra.mxu0 %v3653
        %v4041 = vpop.f32.mrf.mxu0
        %v4042 = vadd.f32 %v3679, %v4041
        %v4043 = vpop.f32.mrf.mxu0
        %4044 = vmatprep.mubr.f32.mxu0 0.0
        %4045 = vmatmul.mubr.f32.gmra.mxu0 %v3654
        %v4046 = vpop.f32.mrf.mxu0
        %v4047 = vadd.f32 %v3679, %v4046
        %v4048 = vpop.f32.mrf.mxu0
        %4049 = vmatprep.mubr.f32.mxu0 0.0
        %4050 = vmatmul.mubr.f32.gmra.mxu0 %v3655
        %v4051 = vpop.f32.mrf.mxu0
        %v4052 = vadd.f32 %v3679, %v4051
        %v4053 = vpop.f32.mrf.mxu0
        %4054 = vmatprep.mubr.f32.mxu0 0.0
        %4055 = vmatmul.mubr.f32.gmra.mxu0 %v3656
        %v4056 = vpop.f32.mrf.mxu0
        %v4057 = vadd.f32 %v3679, %v4056
        %v4058 = vpop.f32.mrf.mxu0
        %4059 = vmatprep.mubr.f32.mxu0 0.0
        %4060 = vmatmul.mubr.f32.gmra.mxu0 %v3657
        %v4061 = vpop.f32.mrf.mxu0
        %v4062 = vadd.f32 %v3679, %v4061
        %v4063 = vpop.f32.mrf.mxu0
        %4064 = vdwg.mxu0
        %v4065 = vld [vmem:[#allocation5 + $0x12] sm:$0x1]
        %v4066 = vlaneseq
        %v4067 = vshrl.u32 %v4066, 7
        %v4068 = vsub.s32 0, %v4067
        %v4069 = vrot.slane %v4065, %v4068
        %v4070 = vmul.f32 %v3747, %v4069
        %v4071 = vmul.f32 %v3752, %v4069
        %v4072 = vmul.f32 %v3757, %v4069
        %v4073 = vmul.f32 %v3762, %v4069
        %v4074 = vmul.f32 %v3767, %v4069
        %v4075 = vmul.f32 %v3772, %v4069
        %v4076 = vmul.f32 %v3777, %v4069
        %v4077 = vmul.f32 %v3782, %v4069
        %v4078 = vmul.f32 %v3787, %v4069
        %v4079 = vmul.f32 %v3792, %v4069
        %v4080 = vmul.f32 %v3797, %v4069
        %v4081 = vmul.f32 %v3802, %v4069
        %v4082 = vmul.f32 %v3807, %v4069
        %v4083 = vmul.f32 %v3812, %v4069
        %v4084 = vmul.f32 %v3817, %v4069
        %v4085 = vmul.f32 %v3822, %v4069
        %v4086 = vmul.f32 %v3827, %v4069
        %v4087 = vmul.f32 %v3832, %v4069
        %v4088 = vmul.f32 %v3837, %v4069
        %v4089 = vmul.f32 %v3842, %v4069
        %v4090 = vmul.f32 %v3847, %v4069
        %v4091 = vmul.f32 %v3852, %v4069
        %v4092 = vmul.f32 %v3857, %v4069
        %v4093 = vmul.f32 %v3862, %v4069
        %v4094 = vmul.f32 %v3867, %v4069
        %v4095 = vmul.f32 %v3872, %v4069
        %v4096 = vmul.f32 %v3877, %v4069
        %v4097 = vmul.f32 %v3882, %v4069
        %v4098 = vmul.f32 %v3887, %v4069
        %v4099 = vmul.f32 %v3892, %v4069
        %v4100 = vmul.f32 %v3897, %v4069
        %v4101 = vmul.f32 %v3902, %v4069
        %v4102 = vmul.f32 %v3907, %v4069
        %v4103 = vmul.f32 %v3912, %v4069
        %v4104 = vmul.f32 %v3917, %v4069
        %v4105 = vmul.f32 %v3922, %v4069
        %v4106 = vmul.f32 %v3927, %v4069
        %v4107 = vmul.f32 %v3932, %v4069
        %v4108 = vmul.f32 %v3937, %v4069
        %v4109 = vmul.f32 %v3942, %v4069
        %v4110 = vmul.f32 %v3947, %v4069
        %v4111 = vmul.f32 %v3952, %v4069
        %v4112 = vmul.f32 %v3957, %v4069
        %v4113 = vmul.f32 %v3962, %v4069
        %v4114 = vmul.f32 %v3967, %v4069
        %v4115 = vmul.f32 %v3972, %v4069
        %v4116 = vmul.f32 %v3977, %v4069
        %v4117 = vmul.f32 %v3982, %v4069
        %v4118 = vmul.f32 %v3987, %v4069
        %v4119 = vmul.f32 %v3992, %v4069
        %v4120 = vmul.f32 %v3997, %v4069
        %v4121 = vmul.f32 %v4002, %v4069
        %v4122 = vmul.f32 %v4007, %v4069
        %v4123 = vmul.f32 %v4012, %v4069
        %v4124 = vmul.f32 %v4017, %v4069
        %v4125 = vmul.f32 %v4022, %v4069
        %v4126 = vmul.f32 %v4027, %v4069
        %v4127 = vmul.f32 %v4032, %v4069
        %v4128 = vmul.f32 %v4037, %v4069
        %v4129 = vmul.f32 %v4042, %v4069
        %v4130 = vmul.f32 %v4047, %v4069
        %v4131 = vmul.f32 %v4052, %v4069
        %v4132 = vmul.f32 %v4057, %v4069
        %v4133 = vmul.f32 %v4062, %v4069
        %v4134 = vld [vmem:[#allocation5 + $0x13] sm:$0x1]
        %v4135 = vlaneseq
        %v4136 = vshrl.u32 %v4135, 7
        %v4137 = vsub.s32 0, %v4136
        %v4138 = vrot.slane %v4134, %v4137
        %v4139 = vadd.f32 %v4070, %v4138
        %v4140 = vadd.f32 %v4071, %v4138
        %v4141 = vadd.f32 %v4072, %v4138
        %v4142 = vadd.f32 %v4073, %v4138
        %v4143 = vadd.f32 %v4074, %v4138
        %v4144 = vadd.f32 %v4075, %v4138
        %v4145 = vadd.f32 %v4076, %v4138
        %v4146 = vadd.f32 %v4077, %v4138
        %v4147 = vadd.f32 %v4078, %v4138
        %v4148 = vadd.f32 %v4079, %v4138
        %v4149 = vadd.f32 %v4080, %v4138
        %v4150 = vadd.f32 %v4081, %v4138
        %v4151 = vadd.f32 %v4082, %v4138
        %v4152 = vadd.f32 %v4083, %v4138
        %v4153 = vadd.f32 %v4084, %v4138
        %v4154 = vadd.f32 %v4085, %v4138
        %v4155 = vadd.f32 %v4086, %v4138
        %v4156 = vadd.f32 %v4087, %v4138
        %v4157 = vadd.f32 %v4088, %v4138
        %v4158 = vadd.f32 %v4089, %v4138
        %v4159 = vadd.f32 %v4090, %v4138
        %v4160 = vadd.f32 %v4091, %v4138
        %v4161 = vadd.f32 %v4092, %v4138
        %v4162 = vadd.f32 %v4093, %v4138
        %v4163 = vadd.f32 %v4094, %v4138
        %v4164 = vadd.f32 %v4095, %v4138
        %v4165 = vadd.f32 %v4096, %v4138
        %v4166 = vadd.f32 %v4097, %v4138
        %v4167 = vadd.f32 %v4098, %v4138
        %v4168 = vadd.f32 %v4099, %v4138
        %v4169 = vadd.f32 %v4100, %v4138
        %v4170 = vadd.f32 %v4101, %v4138
        %v4171 = vadd.f32 %v4102, %v4138
        %v4172 = vadd.f32 %v4103, %v4138
        %v4173 = vadd.f32 %v4104, %v4138
        %v4174 = vadd.f32 %v4105, %v4138
        %v4175 = vadd.f32 %v4106, %v4138
        %v4176 = vadd.f32 %v4107, %v4138
        %v4177 = vadd.f32 %v4108, %v4138
        %v4178 = vadd.f32 %v4109, %v4138
        %v4179 = vadd.f32 %v4110, %v4138
        %v4180 = vadd.f32 %v4111, %v4138
        %v4181 = vadd.f32 %v4112, %v4138
        %v4182 = vadd.f32 %v4113, %v4138
        %v4183 = vadd.f32 %v4114, %v4138
        %v4184 = vadd.f32 %v4115, %v4138
        %v4185 = vadd.f32 %v4116, %v4138
        %v4186 = vadd.f32 %v4117, %v4138
        %v4187 = vadd.f32 %v4118, %v4138
        %v4188 = vadd.f32 %v4119, %v4138
        %v4189 = vadd.f32 %v4120, %v4138
        %v4190 = vadd.f32 %v4121, %v4138
        %v4191 = vadd.f32 %v4122, %v4138
        %v4192 = vadd.f32 %v4123, %v4138
        %v4193 = vadd.f32 %v4124, %v4138
        %v4194 = vadd.f32 %v4125, %v4138
        %v4195 = vadd.f32 %v4126, %v4138
        %v4196 = vadd.f32 %v4127, %v4138
        %v4197 = vadd.f32 %v4128, %v4138
        %v4198 = vadd.f32 %v4129, %v4138
        %v4199 = vadd.f32 %v4130, %v4138
        %v4200 = vadd.f32 %v4131, %v4138
        %v4201 = vadd.f32 %v4132, %v4138
        %v4202 = vadd.f32 %v4133, %v4138
        %v4203 = vtanh.pop %v4139
        %v4204 = vtanh.pop %v4140
        %v4205 = vtanh.pop %v4141
        %v4206 = vtanh.pop %v4142
        %v4207 = vtanh.pop %v4143
        %v4208 = vtanh.pop %v4144
        %v4209 = vtanh.pop %v4145
        %v4210 = vtanh.pop %v4146
        %v4211 = vtanh.pop %v4147
        %v4212 = vtanh.pop %v4148
        %v4213 = vtanh.pop %v4149
        %v4214 = vtanh.pop %v4150
        %v4215 = vtanh.pop %v4151
        %v4216 = vtanh.pop %v4152
        %v4217 = vtanh.pop %v4153
        %v4218 = vtanh.pop %v4154
        %v4219 = vtanh.pop %v4155
        %v4220 = vtanh.pop %v4156
        %v4221 = vtanh.pop %v4157
        %v4222 = vtanh.pop %v4158
        %v4223 = vtanh.pop %v4159
        %v4224 = vtanh.pop %v4160
        %v4225 = vtanh.pop %v4161
        %v4226 = vtanh.pop %v4162
        %v4227 = vtanh.pop %v4163
        %v4228 = vtanh.pop %v4164
        %v4229 = vtanh.pop %v4165
        %v4230 = vtanh.pop %v4166
        %v4231 = vtanh.pop %v4167
        %v4232 = vtanh.pop %v4168
        %v4233 = vtanh.pop %v4169
        %v4234 = vtanh.pop %v4170
        %v4235 = vtanh.pop %v4171
        %v4236 = vtanh.pop %v4172
        %v4237 = vtanh.pop %v4173
        %v4238 = vtanh.pop %v4174
        %v4239 = vtanh.pop %v4175
        %v4240 = vtanh.pop %v4176
        %v4241 = vtanh.pop %v4177
        %v4242 = vtanh.pop %v4178
        %v4243 = vtanh.pop %v4179
        %v4244 = vtanh.pop %v4180
        %v4245 = vtanh.pop %v4181
        %v4246 = vtanh.pop %v4182
        %v4247 = vtanh.pop %v4183
        %v4248 = vtanh.pop %v4184
        %v4249 = vtanh.pop %v4185
        %v4250 = vtanh.pop %v4186
        %v4251 = vtanh.pop %v4187
        %v4252 = vtanh.pop %v4188
        %v4253 = vtanh.pop %v4189
        %v4254 = vtanh.pop %v4190
        %v4255 = vtanh.pop %v4191
        %v4256 = vtanh.pop %v4192
        %v4257 = vtanh.pop %v4193
        %v4258 = vtanh.pop %v4194
        %v4259 = vtanh.pop %v4195
        %v4260 = vtanh.pop %v4196
        %v4261 = vtanh.pop %v4197
        %v4262 = vtanh.pop %v4198
        %v4263 = vtanh.pop %v4199
        %v4264 = vtanh.pop %v4200
        %v4265 = vtanh.pop %v4201
        %v4266 = vtanh.pop %v4202
        %s4267 = scalar_lea.vmem [#allocation7], 768
        %v4268 = vld [vmem:[%s4267] sm:$0xff]
        %v4269 = vld [vmem:[%s4267 + $0x8] sm:$0xff]
        %v4270 = vld [vmem:[%s4267 + $0x10] sm:$0xff]
        %v4271 = vld [vmem:[%s4267 + $0x18] sm:$0xff]
        %v4272 = vld [vmem:[%s4267 + $0x20] sm:$0xff]
        %v4273 = vld [vmem:[%s4267 + $0x28] sm:$0xff]
        %v4274 = vld [vmem:[%s4267 + $0x30] sm:$0xff]
        %v4275 = vld [vmem:[%s4267 + $0x38] sm:$0xff]
        %v4276 = vld [vmem:[%s4267 + $0x40] sm:$0xff]
        %v4277 = vld [vmem:[%s4267 + $0x48] sm:$0xff]
        %v4278 = vld [vmem:[%s4267 + $0x50] sm:$0xff]
        %v4279 = vld [vmem:[%s4267 + $0x58] sm:$0xff]
        %v4280 = vld [vmem:[%s4267 + $0x60] sm:$0xff]
        %v4281 = vld [vmem:[%s4267 + $0x68] sm:$0xff]
        %v4282 = vld [vmem:[%s4267 + $0x70] sm:$0xff]
        %v4283 = vld [vmem:[%s4267 + $0x78] sm:$0xff]
        %v4284 = vld [vmem:[#allocation5 + $0x14] sm:$0x1]
        %v4285 = vlaneseq
        %v4286 = vshrl.u32 %v4285, 7
        %v4287 = vsub.s32 0, %v4286
        %v4288 = vrot.slane %v4284, %v4287
        %4289 = vmatprep.subr.mxu0 0.0
        %4290 = vmatpush1.msra.mxu0 %v4283
        %4291 = vmatprep.subr.mxu0 0.0
        %4292 = vmatpush1.msra.mxu0 %v4282
        %4293 = vmatprep.subr.mxu0 0.0
        %4294 = vmatpush1.msra.mxu0 %v4281
        %4295 = vmatprep.subr.mxu0 0.0
        %4296 = vmatpush1.msra.mxu0 %v4280
        %4297 = vmatprep.subr.mxu0 0.0
        %4298 = vmatpush1.msra.mxu0 %v4279
        %4299 = vmatprep.subr.mxu0 0.0
        %4300 = vmatpush1.msra.mxu0 %v4278
        %4301 = vmatprep.subr.mxu0 0.0
        %4302 = vmatpush1.msra.mxu0 %v4277
        %4303 = vmatprep.subr.mxu0 0.0
        %4304 = vmatpush1.msra.mxu0 %v4276
        %4305 = vmatprep.subr.mxu0 0.0
        %4306 = vmatpush1.msra.mxu0 %v4275
        %4307 = vmatprep.subr.mxu0 0.0
        %4308 = vmatpush1.msra.mxu0 %v4274
        %4309 = vmatprep.subr.mxu0 0.0
        %4310 = vmatpush1.msra.mxu0 %v4273
        %4311 = vmatprep.subr.mxu0 0.0
        %4312 = vmatpush1.msra.mxu0 %v4272
        %4313 = vmatprep.subr.mxu0 0.0
        %4314 = vmatpush1.msra.mxu0 %v4271
        %4315 = vmatprep.subr.mxu0 0.0
        %4316 = vmatpush1.msra.mxu0 %v4270
        %4317 = vmatprep.subr.mxu0 0.0
        %4318 = vmatpush1.msra.mxu0 %v4269
        %4319 = vmatprep.subr.mxu0 0.0
        %4320 = vmatpush1.msra.mxu0 %v4268
        %4321 = vmatprep.subr.mxu0 0.0
        %4322 = vmatpush2.msra.mxu0 0.0
        %4323 = vmatprep.subr.mxu0 0.0
        %4324 = vmatpush2.msra.mxu0 0.0
        %4325 = vmatprep.subr.mxu0 0.0
        %4326 = vmatpush2.msra.mxu0 0.0
        %4327 = vmatprep.subr.mxu0 0.0
        %4328 = vmatpush2.msra.mxu0 0.0
        %4329 = vmatprep.subr.mxu0 0.0
        %4330 = vmatpush2.msra.mxu0 0.0
        %4331 = vmatprep.subr.mxu0 0.0
        %4332 = vmatpush2.msra.mxu0 0.0
        %4333 = vmatprep.subr.mxu0 0.0
        %4334 = vmatpush2.msra.mxu0 0.0
        %4335 = vmatprep.subr.mxu0 0.0
        %4336 = vmatpush2.msra.mxu0 0.0
        %4337 = vmatprep.subr.mxu0 0.0
        %4338 = vmatpush2.msra.mxu0 0.0
        %4339 = vmatprep.subr.mxu0 0.0
        %4340 = vmatpush2.msra.mxu0 0.0
        %4341 = vmatprep.subr.mxu0 0.0
        %4342 = vmatpush2.msra.mxu0 0.0
        %4343 = vmatprep.subr.mxu0 0.0
        %4344 = vmatpush2.msra.mxu0 0.0
        %4345 = vmatprep.subr.mxu0 0.0
        %4346 = vmatpush2.msra.mxu0 0.0
        %4347 = vmatprep.subr.mxu0 0.0
        %4348 = vmatpush2.msra.mxu0 0.0
        %4349 = vmatprep.subr.mxu0 0.0
        %4350 = vmatpush2.msra.mxu0 0.0
        %4351 = vmatprep.subr.mxu0 0.0
        %4352 = vmatpush2.msra.mxu0 0.0
        %4353 = vmatprep.mubr.f32.mxu0 0.0
        %4354 = vmatmul.mubr.f32.gmra.mxu0 %v4203
        %v4355 = vpop.f32.mrf.mxu0
        %v4356 = vadd.f32 %v4288, %v4355
        %v4357 = vpop.f32.mrf.mxu0
        %4358 = vmatprep.mubr.f32.mxu0 0.0
        %4359 = vmatmul.mubr.f32.gmra.mxu0 %v4204
        %v4360 = vpop.f32.mrf.mxu0
        %v4361 = vadd.f32 %v4288, %v4360
        %v4362 = vpop.f32.mrf.mxu0
        %4363 = vmatprep.mubr.f32.mxu0 0.0
        %4364 = vmatmul.mubr.f32.gmra.mxu0 %v4205
        %v4365 = vpop.f32.mrf.mxu0
        %v4366 = vadd.f32 %v4288, %v4365
        %v4367 = vpop.f32.mrf.mxu0
        %4368 = vmatprep.mubr.f32.mxu0 0.0
        %4369 = vmatmul.mubr.f32.gmra.mxu0 %v4206
        %v4370 = vpop.f32.mrf.mxu0
        %v4371 = vadd.f32 %v4288, %v4370
        %v4372 = vpop.f32.mrf.mxu0
        %4373 = vmatprep.mubr.f32.mxu0 0.0
        %4374 = vmatmul.mubr.f32.gmra.mxu0 %v4207
        %v4375 = vpop.f32.mrf.mxu0
        %v4376 = vadd.f32 %v4288, %v4375
        %v4377 = vpop.f32.mrf.mxu0
        %4378 = vmatprep.mubr.f32.mxu0 0.0
        %4379 = vmatmul.mubr.f32.gmra.mxu0 %v4208
        %v4380 = vpop.f32.mrf.mxu0
        %v4381 = vadd.f32 %v4288, %v4380
        %v4382 = vpop.f32.mrf.mxu0
        %4383 = vmatprep.mubr.f32.mxu0 0.0
        %4384 = vmatmul.mubr.f32.gmra.mxu0 %v4209
        %v4385 = vpop.f32.mrf.mxu0
        %v4386 = vadd.f32 %v4288, %v4385
        %v4387 = vpop.f32.mrf.mxu0
        %4388 = vmatprep.mubr.f32.mxu0 0.0
        %4389 = vmatmul.mubr.f32.gmra.mxu0 %v4210
        %v4390 = vpop.f32.mrf.mxu0
        %v4391 = vadd.f32 %v4288, %v4390
        %v4392 = vpop.f32.mrf.mxu0
        %4393 = vmatprep.mubr.f32.mxu0 0.0
        %4394 = vmatmul.mubr.f32.gmra.mxu0 %v4211
        %v4395 = vpop.f32.mrf.mxu0
        %v4396 = vadd.f32 %v4288, %v4395
        %v4397 = vpop.f32.mrf.mxu0
        %4398 = vmatprep.mubr.f32.mxu0 0.0
        %4399 = vmatmul.mubr.f32.gmra.mxu0 %v4212
        %v4400 = vpop.f32.mrf.mxu0
        %v4401 = vadd.f32 %v4288, %v4400
        %v4402 = vpop.f32.mrf.mxu0
        %4403 = vmatprep.mubr.f32.mxu0 0.0
        %4404 = vmatmul.mubr.f32.gmra.mxu0 %v4213
        %v4405 = vpop.f32.mrf.mxu0
        %v4406 = vadd.f32 %v4288, %v4405
        %v4407 = vpop.f32.mrf.mxu0
        %4408 = vmatprep.mubr.f32.mxu0 0.0
        %4409 = vmatmul.mubr.f32.gmra.mxu0 %v4214
        %v4410 = vpop.f32.mrf.mxu0
        %v4411 = vadd.f32 %v4288, %v4410
        %v4412 = vpop.f32.mrf.mxu0
        %4413 = vmatprep.mubr.f32.mxu0 0.0
        %4414 = vmatmul.mubr.f32.gmra.mxu0 %v4215
        %v4415 = vpop.f32.mrf.mxu0
        %v4416 = vadd.f32 %v4288, %v4415
        %v4417 = vpop.f32.mrf.mxu0
        %4418 = vmatprep.mubr.f32.mxu0 0.0
        %4419 = vmatmul.mubr.f32.gmra.mxu0 %v4216
        %v4420 = vpop.f32.mrf.mxu0
        %v4421 = vadd.f32 %v4288, %v4420
        %v4422 = vpop.f32.mrf.mxu0
        %4423 = vmatprep.mubr.f32.mxu0 0.0
        %4424 = vmatmul.mubr.f32.gmra.mxu0 %v4217
        %v4425 = vpop.f32.mrf.mxu0
        %v4426 = vadd.f32 %v4288, %v4425
        %v4427 = vpop.f32.mrf.mxu0
        %4428 = vmatprep.mubr.f32.mxu0 0.0
        %4429 = vmatmul.mubr.f32.gmra.mxu0 %v4218
        %v4430 = vpop.f32.mrf.mxu0
        %v4431 = vadd.f32 %v4288, %v4430
        %v4432 = vpop.f32.mrf.mxu0
        %4433 = vmatprep.mubr.f32.mxu0 0.0
        %4434 = vmatmul.mubr.f32.gmra.mxu0 %v4219
        %v4435 = vpop.f32.mrf.mxu0
        %v4436 = vadd.f32 %v4288, %v4435
        %v4437 = vpop.f32.mrf.mxu0
        %4438 = vmatprep.mubr.f32.mxu0 0.0
        %4439 = vmatmul.mubr.f32.gmra.mxu0 %v4220
        %v4440 = vpop.f32.mrf.mxu0
        %v4441 = vadd.f32 %v4288, %v4440
        %v4442 = vpop.f32.mrf.mxu0
        %4443 = vmatprep.mubr.f32.mxu0 0.0
        %4444 = vmatmul.mubr.f32.gmra.mxu0 %v4221
        %v4445 = vpop.f32.mrf.mxu0
        %v4446 = vadd.f32 %v4288, %v4445
        %v4447 = vpop.f32.mrf.mxu0
        %4448 = vmatprep.mubr.f32.mxu0 0.0
        %4449 = vmatmul.mubr.f32.gmra.mxu0 %v4222
        %v4450 = vpop.f32.mrf.mxu0
        %v4451 = vadd.f32 %v4288, %v4450
        %v4452 = vpop.f32.mrf.mxu0
        %4453 = vmatprep.mubr.f32.mxu0 0.0
        %4454 = vmatmul.mubr.f32.gmra.mxu0 %v4223
        %v4455 = vpop.f32.mrf.mxu0
        %v4456 = vadd.f32 %v4288, %v4455
        %v4457 = vpop.f32.mrf.mxu0
        %4458 = vmatprep.mubr.f32.mxu0 0.0
        %4459 = vmatmul.mubr.f32.gmra.mxu0 %v4224
        %v4460 = vpop.f32.mrf.mxu0
        %v4461 = vadd.f32 %v4288, %v4460
        %v4462 = vpop.f32.mrf.mxu0
        %4463 = vmatprep.mubr.f32.mxu0 0.0
        %4464 = vmatmul.mubr.f32.gmra.mxu0 %v4225
        %v4465 = vpop.f32.mrf.mxu0
        %v4466 = vadd.f32 %v4288, %v4465
        %v4467 = vpop.f32.mrf.mxu0
        %4468 = vmatprep.mubr.f32.mxu0 0.0
        %4469 = vmatmul.mubr.f32.gmra.mxu0 %v4226
        %v4470 = vpop.f32.mrf.mxu0
        %v4471 = vadd.f32 %v4288, %v4470
        %v4472 = vpop.f32.mrf.mxu0
        %4473 = vmatprep.mubr.f32.mxu0 0.0
        %4474 = vmatmul.mubr.f32.gmra.mxu0 %v4227
        %v4475 = vpop.f32.mrf.mxu0
        %v4476 = vadd.f32 %v4288, %v4475
        %v4477 = vpop.f32.mrf.mxu0
        %4478 = vmatprep.mubr.f32.mxu0 0.0
        %4479 = vmatmul.mubr.f32.gmra.mxu0 %v4228
        %v4480 = vpop.f32.mrf.mxu0
        %v4481 = vadd.f32 %v4288, %v4480
        %v4482 = vpop.f32.mrf.mxu0
        %4483 = vmatprep.mubr.f32.mxu0 0.0
        %4484 = vmatmul.mubr.f32.gmra.mxu0 %v4229
        %v4485 = vpop.f32.mrf.mxu0
        %v4486 = vadd.f32 %v4288, %v4485
        %v4487 = vpop.f32.mrf.mxu0
        %4488 = vmatprep.mubr.f32.mxu0 0.0
        %4489 = vmatmul.mubr.f32.gmra.mxu0 %v4230
        %v4490 = vpop.f32.mrf.mxu0
        %v4491 = vadd.f32 %v4288, %v4490
        %v4492 = vpop.f32.mrf.mxu0
        %4493 = vmatprep.mubr.f32.mxu0 0.0
        %4494 = vmatmul.mubr.f32.gmra.mxu0 %v4231
        %v4495 = vpop.f32.mrf.mxu0
        %v4496 = vadd.f32 %v4288, %v4495
        %v4497 = vpop.f32.mrf.mxu0
        %4498 = vmatprep.mubr.f32.mxu0 0.0
        %4499 = vmatmul.mubr.f32.gmra.mxu0 %v4232
        %v4500 = vpop.f32.mrf.mxu0
        %v4501 = vadd.f32 %v4288, %v4500
        %v4502 = vpop.f32.mrf.mxu0
        %4503 = vmatprep.mubr.f32.mxu0 0.0
        %4504 = vmatmul.mubr.f32.gmra.mxu0 %v4233
        %v4505 = vpop.f32.mrf.mxu0
        %v4506 = vadd.f32 %v4288, %v4505
        %v4507 = vpop.f32.mrf.mxu0
        %4508 = vmatprep.mubr.f32.mxu0 0.0
        %4509 = vmatmul.mubr.f32.gmra.mxu0 %v4234
        %v4510 = vpop.f32.mrf.mxu0
        %v4511 = vadd.f32 %v4288, %v4510
        %v4512 = vpop.f32.mrf.mxu0
        %4513 = vmatprep.mubr.f32.mxu0 0.0
        %4514 = vmatmul.mubr.f32.gmra.mxu0 %v4235
        %v4515 = vpop.f32.mrf.mxu0
        %v4516 = vadd.f32 %v4288, %v4515
        %v4517 = vpop.f32.mrf.mxu0
        %4518 = vmatprep.mubr.f32.mxu0 0.0
        %4519 = vmatmul.mubr.f32.gmra.mxu0 %v4236
        %v4520 = vpop.f32.mrf.mxu0
        %v4521 = vadd.f32 %v4288, %v4520
        %v4522 = vpop.f32.mrf.mxu0
        %4523 = vmatprep.mubr.f32.mxu0 0.0
        %4524 = vmatmul.mubr.f32.gmra.mxu0 %v4237
        %v4525 = vpop.f32.mrf.mxu0
        %v4526 = vadd.f32 %v4288, %v4525
        %v4527 = vpop.f32.mrf.mxu0
        %4528 = vmatprep.mubr.f32.mxu0 0.0
        %4529 = vmatmul.mubr.f32.gmra.mxu0 %v4238
        %v4530 = vpop.f32.mrf.mxu0
        %v4531 = vadd.f32 %v4288, %v4530
        %v4532 = vpop.f32.mrf.mxu0
        %4533 = vmatprep.mubr.f32.mxu0 0.0
        %4534 = vmatmul.mubr.f32.gmra.mxu0 %v4239
        %v4535 = vpop.f32.mrf.mxu0
        %v4536 = vadd.f32 %v4288, %v4535
        %v4537 = vpop.f32.mrf.mxu0
        %4538 = vmatprep.mubr.f32.mxu0 0.0
        %4539 = vmatmul.mubr.f32.gmra.mxu0 %v4240
        %v4540 = vpop.f32.mrf.mxu0
        %v4541 = vadd.f32 %v4288, %v4540
        %v4542 = vpop.f32.mrf.mxu0
        %4543 = vmatprep.mubr.f32.mxu0 0.0
        %4544 = vmatmul.mubr.f32.gmra.mxu0 %v4241
        %v4545 = vpop.f32.mrf.mxu0
        %v4546 = vadd.f32 %v4288, %v4545
        %v4547 = vpop.f32.mrf.mxu0
        %4548 = vmatprep.mubr.f32.mxu0 0.0
        %4549 = vmatmul.mubr.f32.gmra.mxu0 %v4242
        %v4550 = vpop.f32.mrf.mxu0
        %v4551 = vadd.f32 %v4288, %v4550
        %v4552 = vpop.f32.mrf.mxu0
        %4553 = vmatprep.mubr.f32.mxu0 0.0
        %4554 = vmatmul.mubr.f32.gmra.mxu0 %v4243
        %v4555 = vpop.f32.mrf.mxu0
        %v4556 = vadd.f32 %v4288, %v4555
        %v4557 = vpop.f32.mrf.mxu0
        %4558 = vmatprep.mubr.f32.mxu0 0.0
        %4559 = vmatmul.mubr.f32.gmra.mxu0 %v4244
        %v4560 = vpop.f32.mrf.mxu0
        %v4561 = vadd.f32 %v4288, %v4560
        %v4562 = vpop.f32.mrf.mxu0
        %4563 = vmatprep.mubr.f32.mxu0 0.0
        %4564 = vmatmul.mubr.f32.gmra.mxu0 %v4245
        %v4565 = vpop.f32.mrf.mxu0
        %v4566 = vadd.f32 %v4288, %v4565
        %v4567 = vpop.f32.mrf.mxu0
        %4568 = vmatprep.mubr.f32.mxu0 0.0
        %4569 = vmatmul.mubr.f32.gmra.mxu0 %v4246
        %v4570 = vpop.f32.mrf.mxu0
        %v4571 = vadd.f32 %v4288, %v4570
        %v4572 = vpop.f32.mrf.mxu0
        %4573 = vmatprep.mubr.f32.mxu0 0.0
        %4574 = vmatmul.mubr.f32.gmra.mxu0 %v4247
        %v4575 = vpop.f32.mrf.mxu0
        %v4576 = vadd.f32 %v4288, %v4575
        %v4577 = vpop.f32.mrf.mxu0
        %4578 = vmatprep.mubr.f32.mxu0 0.0
        %4579 = vmatmul.mubr.f32.gmra.mxu0 %v4248
        %v4580 = vpop.f32.mrf.mxu0
        %v4581 = vadd.f32 %v4288, %v4580
        %v4582 = vpop.f32.mrf.mxu0
        %4583 = vmatprep.mubr.f32.mxu0 0.0
        %4584 = vmatmul.mubr.f32.gmra.mxu0 %v4249
        %v4585 = vpop.f32.mrf.mxu0
        %v4586 = vadd.f32 %v4288, %v4585
        %v4587 = vpop.f32.mrf.mxu0
        %4588 = vmatprep.mubr.f32.mxu0 0.0
        %4589 = vmatmul.mubr.f32.gmra.mxu0 %v4250
        %v4590 = vpop.f32.mrf.mxu0
        %v4591 = vadd.f32 %v4288, %v4590
        %v4592 = vpop.f32.mrf.mxu0
        %4593 = vmatprep.mubr.f32.mxu0 0.0
        %4594 = vmatmul.mubr.f32.gmra.mxu0 %v4251
        %v4595 = vpop.f32.mrf.mxu0
        %v4596 = vadd.f32 %v4288, %v4595
        %v4597 = vpop.f32.mrf.mxu0
        %4598 = vmatprep.mubr.f32.mxu0 0.0
        %4599 = vmatmul.mubr.f32.gmra.mxu0 %v4252
        %v4600 = vpop.f32.mrf.mxu0
        %v4601 = vadd.f32 %v4288, %v4600
        %v4602 = vpop.f32.mrf.mxu0
        %4603 = vmatprep.mubr.f32.mxu0 0.0
        %4604 = vmatmul.mubr.f32.gmra.mxu0 %v4253
        %v4605 = vpop.f32.mrf.mxu0
        %v4606 = vadd.f32 %v4288, %v4605
        %v4607 = vpop.f32.mrf.mxu0
        %4608 = vmatprep.mubr.f32.mxu0 0.0
        %4609 = vmatmul.mubr.f32.gmra.mxu0 %v4254
        %v4610 = vpop.f32.mrf.mxu0
        %v4611 = vadd.f32 %v4288, %v4610
        %v4612 = vpop.f32.mrf.mxu0
        %4613 = vmatprep.mubr.f32.mxu0 0.0
        %4614 = vmatmul.mubr.f32.gmra.mxu0 %v4255
        %v4615 = vpop.f32.mrf.mxu0
        %v4616 = vadd.f32 %v4288, %v4615
        %v4617 = vpop.f32.mrf.mxu0
        %4618 = vmatprep.mubr.f32.mxu0 0.0
        %4619 = vmatmul.mubr.f32.gmra.mxu0 %v4256
        %v4620 = vpop.f32.mrf.mxu0
        %v4621 = vadd.f32 %v4288, %v4620
        %v4622 = vpop.f32.mrf.mxu0
        %4623 = vmatprep.mubr.f32.mxu0 0.0
        %4624 = vmatmul.mubr.f32.gmra.mxu0 %v4257
        %v4625 = vpop.f32.mrf.mxu0
        %v4626 = vadd.f32 %v4288, %v4625
        %v4627 = vpop.f32.mrf.mxu0
        %4628 = vmatprep.mubr.f32.mxu0 0.0
        %4629 = vmatmul.mubr.f32.gmra.mxu0 %v4258
        %v4630 = vpop.f32.mrf.mxu0
        %v4631 = vadd.f32 %v4288, %v4630
        %v4632 = vpop.f32.mrf.mxu0
        %4633 = vmatprep.mubr.f32.mxu0 0.0
        %4634 = vmatmul.mubr.f32.gmra.mxu0 %v4259
        %v4635 = vpop.f32.mrf.mxu0
        %v4636 = vadd.f32 %v4288, %v4635
        %v4637 = vpop.f32.mrf.mxu0
        %4638 = vmatprep.mubr.f32.mxu0 0.0
        %4639 = vmatmul.mubr.f32.gmra.mxu0 %v4260
        %v4640 = vpop.f32.mrf.mxu0
        %v4641 = vadd.f32 %v4288, %v4640
        %v4642 = vpop.f32.mrf.mxu0
        %4643 = vmatprep.mubr.f32.mxu0 0.0
        %4644 = vmatmul.mubr.f32.gmra.mxu0 %v4261
        %v4645 = vpop.f32.mrf.mxu0
        %v4646 = vadd.f32 %v4288, %v4645
        %v4647 = vpop.f32.mrf.mxu0
        %4648 = vmatprep.mubr.f32.mxu0 0.0
        %4649 = vmatmul.mubr.f32.gmra.mxu0 %v4262
        %v4650 = vpop.f32.mrf.mxu0
        %v4651 = vadd.f32 %v4288, %v4650
        %v4652 = vpop.f32.mrf.mxu0
        %4653 = vmatprep.mubr.f32.mxu0 0.0
        %4654 = vmatmul.mubr.f32.gmra.mxu0 %v4263
        %v4655 = vpop.f32.mrf.mxu0
        %v4656 = vadd.f32 %v4288, %v4655
        %v4657 = vpop.f32.mrf.mxu0
        %4658 = vmatprep.mubr.f32.mxu0 0.0
        %4659 = vmatmul.mubr.f32.gmra.mxu0 %v4264
        %v4660 = vpop.f32.mrf.mxu0
        %v4661 = vadd.f32 %v4288, %v4660
        %v4662 = vpop.f32.mrf.mxu0
        %4663 = vmatprep.mubr.f32.mxu0 0.0
        %4664 = vmatmul.mubr.f32.gmra.mxu0 %v4265
        %v4665 = vpop.f32.mrf.mxu0
        %v4666 = vadd.f32 %v4288, %v4665
        %v4667 = vpop.f32.mrf.mxu0
        %4668 = vmatprep.mubr.f32.mxu0 0.0
        %4669 = vmatmul.mubr.f32.gmra.mxu0 %v4266
        %v4670 = vpop.f32.mrf.mxu0
        %v4671 = vadd.f32 %v4288, %v4670
        %v4672 = vpop.f32.mrf.mxu0
        %4673 = vdwg.mxu0
        %v4674 = vadd.f32 %v3138, %v4356
        %v4675 = vadd.f32 %v3143, %v4361
        %v4676 = vadd.f32 %v3148, %v4366
        %v4677 = vadd.f32 %v3153, %v4371
        %v4678 = vadd.f32 %v3158, %v4376
        %v4679 = vadd.f32 %v3163, %v4381
        %v4680 = vadd.f32 %v3168, %v4386
        %v4681 = vadd.f32 %v3173, %v4391
        %v4682 = vadd.f32 %v3178, %v4396
        %v4683 = vadd.f32 %v3183, %v4401
        %v4684 = vadd.f32 %v3188, %v4406
        %v4685 = vadd.f32 %v3193, %v4411
        %v4686 = vadd.f32 %v3198, %v4416
        %v4687 = vadd.f32 %v3203, %v4421
        %v4688 = vadd.f32 %v3208, %v4426
        %v4689 = vadd.f32 %v3213, %v4431
        %v4690 = vadd.f32 %v3218, %v4436
        %v4691 = vadd.f32 %v3223, %v4441
        %v4692 = vadd.f32 %v3228, %v4446
        %v4693 = vadd.f32 %v3233, %v4451
        %v4694 = vadd.f32 %v3238, %v4456
        %v4695 = vadd.f32 %v3243, %v4461
        %v4696 = vadd.f32 %v3248, %v4466
        %v4697 = vadd.f32 %v3253, %v4471
        %v4698 = vadd.f32 %v3258, %v4476
        %v4699 = vadd.f32 %v3263, %v4481
        %v4700 = vadd.f32 %v3268, %v4486
        %v4701 = vadd.f32 %v3273, %v4491
        %v4702 = vadd.f32 %v3278, %v4496
        %v4703 = vadd.f32 %v3283, %v4501
        %v4704 = vadd.f32 %v3288, %v4506
        %v4705 = vadd.f32 %v3293, %v4511
        %v4706 = vadd.f32 %v3298, %v4516
        %v4707 = vadd.f32 %v3303, %v4521
        %v4708 = vadd.f32 %v3308, %v4526
        %v4709 = vadd.f32 %v3313, %v4531
        %v4710 = vadd.f32 %v3318, %v4536
        %v4711 = vadd.f32 %v3323, %v4541
        %v4712 = vadd.f32 %v3328, %v4546
        %v4713 = vadd.f32 %v3333, %v4551
        %v4714 = vadd.f32 %v3338, %v4556
        %v4715 = vadd.f32 %v3343, %v4561
        %v4716 = vadd.f32 %v3348, %v4566
        %v4717 = vadd.f32 %v3353, %v4571
        %v4718 = vadd.f32 %v3358, %v4576
        %v4719 = vadd.f32 %v3363, %v4581
        %v4720 = vadd.f32 %v3368, %v4586
        %v4721 = vadd.f32 %v3373, %v4591
        %v4722 = vadd.f32 %v3378, %v4596
        %v4723 = vadd.f32 %v3383, %v4601
        %v4724 = vadd.f32 %v3388, %v4606
        %v4725 = vadd.f32 %v3393, %v4611
        %v4726 = vadd.f32 %v3398, %v4616
        %v4727 = vadd.f32 %v3403, %v4621
        %v4728 = vadd.f32 %v3408, %v4626
        %v4729 = vadd.f32 %v3413, %v4631
        %v4730 = vadd.f32 %v3418, %v4636
        %v4731 = vadd.f32 %v3423, %v4641
        %v4732 = vadd.f32 %v3428, %v4646
        %v4733 = vadd.f32 %v3433, %v4651
        %v4734 = vadd.f32 %v3438, %v4656
        %v4735 = vadd.f32 %v3443, %v4661
        %v4736 = vadd.f32 %v3448, %v4666
        %v4737 = vadd.f32 %v3453, %v4671
        %v4738 = vld [vmem:[#allocation5 + $0x15] sm:$0x1]
        %v4739 = vlaneseq
        %v4740 = vshrl.u32 %v4739, 7
        %v4741 = vsub.s32 0, %v4740
        %v4742 = vrot.slane %v4738, %v4741
        %v4743 = vmul.f32 %v4674, %v4742
        %v4744 = vmul.f32 %v4675, %v4742
        %v4745 = vmul.f32 %v4676, %v4742
        %v4746 = vmul.f32 %v4677, %v4742
        %v4747 = vmul.f32 %v4678, %v4742
        %v4748 = vmul.f32 %v4679, %v4742
        %v4749 = vmul.f32 %v4680, %v4742
        %v4750 = vmul.f32 %v4681, %v4742
        %v4751 = vmul.f32 %v4682, %v4742
        %v4752 = vmul.f32 %v4683, %v4742
        %v4753 = vmul.f32 %v4684, %v4742
        %v4754 = vmul.f32 %v4685, %v4742
        %v4755 = vmul.f32 %v4686, %v4742
        %v4756 = vmul.f32 %v4687, %v4742
        %v4757 = vmul.f32 %v4688, %v4742
        %v4758 = vmul.f32 %v4689, %v4742
        %v4759 = vmul.f32 %v4690, %v4742
        %v4760 = vmul.f32 %v4691, %v4742
        %v4761 = vmul.f32 %v4692, %v4742
        %v4762 = vmul.f32 %v4693, %v4742
        %v4763 = vmul.f32 %v4694, %v4742
        %v4764 = vmul.f32 %v4695, %v4742
        %v4765 = vmul.f32 %v4696, %v4742
        %v4766 = vmul.f32 %v4697, %v4742
        %v4767 = vmul.f32 %v4698, %v4742
        %v4768 = vmul.f32 %v4699, %v4742
        %v4769 = vmul.f32 %v4700, %v4742
        %v4770 = vmul.f32 %v4701, %v4742
        %v4771 = vmul.f32 %v4702, %v4742
        %v4772 = vmul.f32 %v4703, %v4742
        %v4773 = vmul.f32 %v4704, %v4742
        %v4774 = vmul.f32 %v4705, %v4742
        %v4775 = vmul.f32 %v4706, %v4742
        %v4776 = vmul.f32 %v4707, %v4742
        %v4777 = vmul.f32 %v4708, %v4742
        %v4778 = vmul.f32 %v4709, %v4742
        %v4779 = vmul.f32 %v4710, %v4742
        %v4780 = vmul.f32 %v4711, %v4742
        %v4781 = vmul.f32 %v4712, %v4742
        %v4782 = vmul.f32 %v4713, %v4742
        %v4783 = vmul.f32 %v4714, %v4742
        %v4784 = vmul.f32 %v4715, %v4742
        %v4785 = vmul.f32 %v4716, %v4742
        %v4786 = vmul.f32 %v4717, %v4742
        %v4787 = vmul.f32 %v4718, %v4742
        %v4788 = vmul.f32 %v4719, %v4742
        %v4789 = vmul.f32 %v4720, %v4742
        %v4790 = vmul.f32 %v4721, %v4742
        %v4791 = vmul.f32 %v4722, %v4742
        %v4792 = vmul.f32 %v4723, %v4742
        %v4793 = vmul.f32 %v4724, %v4742
        %v4794 = vmul.f32 %v4725, %v4742
        %v4795 = vmul.f32 %v4726, %v4742
        %v4796 = vmul.f32 %v4727, %v4742
        %v4797 = vmul.f32 %v4728, %v4742
        %v4798 = vmul.f32 %v4729, %v4742
        %v4799 = vmul.f32 %v4730, %v4742
        %v4800 = vmul.f32 %v4731, %v4742
        %v4801 = vmul.f32 %v4732, %v4742
        %v4802 = vmul.f32 %v4733, %v4742
        %v4803 = vmul.f32 %v4734, %v4742
        %v4804 = vmul.f32 %v4735, %v4742
        %v4805 = vmul.f32 %v4736, %v4742
        %v4806 = vmul.f32 %v4737, %v4742
        %v4807 = vld [vmem:[#allocation5 + $0x16] sm:$0x1]
        %v4808 = vlaneseq
        %v4809 = vshrl.u32 %v4808, 7
        %v4810 = vsub.s32 0, %v4809
        %v4811 = vrot.slane %v4807, %v4810
        %v4812 = vadd.f32 %v4743, %v4811
        %v4813 = vadd.f32 %v4744, %v4811
        %v4814 = vadd.f32 %v4745, %v4811
        %v4815 = vadd.f32 %v4746, %v4811
        %v4816 = vadd.f32 %v4747, %v4811
        %v4817 = vadd.f32 %v4748, %v4811
        %v4818 = vadd.f32 %v4749, %v4811
        %v4819 = vadd.f32 %v4750, %v4811
        %v4820 = vadd.f32 %v4751, %v4811
        %v4821 = vadd.f32 %v4752, %v4811
        %v4822 = vadd.f32 %v4753, %v4811
        %v4823 = vadd.f32 %v4754, %v4811
        %v4824 = vadd.f32 %v4755, %v4811
        %v4825 = vadd.f32 %v4756, %v4811
        %v4826 = vadd.f32 %v4757, %v4811
        %v4827 = vadd.f32 %v4758, %v4811
        %v4828 = vadd.f32 %v4759, %v4811
        %v4829 = vadd.f32 %v4760, %v4811
        %v4830 = vadd.f32 %v4761, %v4811
        %v4831 = vadd.f32 %v4762, %v4811
        %v4832 = vadd.f32 %v4763, %v4811
        %v4833 = vadd.f32 %v4764, %v4811
        %v4834 = vadd.f32 %v4765, %v4811
        %v4835 = vadd.f32 %v4766, %v4811
        %v4836 = vadd.f32 %v4767, %v4811
        %v4837 = vadd.f32 %v4768, %v4811
        %v4838 = vadd.f32 %v4769, %v4811
        %v4839 = vadd.f32 %v4770, %v4811
        %v4840 = vadd.f32 %v4771, %v4811
        %v4841 = vadd.f32 %v4772, %v4811
        %v4842 = vadd.f32 %v4773, %v4811
        %v4843 = vadd.f32 %v4774, %v4811
        %v4844 = vadd.f32 %v4775, %v4811
        %v4845 = vadd.f32 %v4776, %v4811
        %v4846 = vadd.f32 %v4777, %v4811
        %v4847 = vadd.f32 %v4778, %v4811
        %v4848 = vadd.f32 %v4779, %v4811
        %v4849 = vadd.f32 %v4780, %v4811
        %v4850 = vadd.f32 %v4781, %v4811
        %v4851 = vadd.f32 %v4782, %v4811
        %v4852 = vadd.f32 %v4783, %v4811
        %v4853 = vadd.f32 %v4784, %v4811
        %v4854 = vadd.f32 %v4785, %v4811
        %v4855 = vadd.f32 %v4786, %v4811
        %v4856 = vadd.f32 %v4787, %v4811
        %v4857 = vadd.f32 %v4788, %v4811
        %v4858 = vadd.f32 %v4789, %v4811
        %v4859 = vadd.f32 %v4790, %v4811
        %v4860 = vadd.f32 %v4791, %v4811
        %v4861 = vadd.f32 %v4792, %v4811
        %v4862 = vadd.f32 %v4793, %v4811
        %v4863 = vadd.f32 %v4794, %v4811
        %v4864 = vadd.f32 %v4795, %v4811
        %v4865 = vadd.f32 %v4796, %v4811
        %v4866 = vadd.f32 %v4797, %v4811
        %v4867 = vadd.f32 %v4798, %v4811
        %v4868 = vadd.f32 %v4799, %v4811
        %v4869 = vadd.f32 %v4800, %v4811
        %v4870 = vadd.f32 %v4801, %v4811
        %v4871 = vadd.f32 %v4802, %v4811
        %v4872 = vadd.f32 %v4803, %v4811
        %v4873 = vadd.f32 %v4804, %v4811
        %v4874 = vadd.f32 %v4805, %v4811
        %v4875 = vadd.f32 %v4806, %v4811
        %v4876 = vld [vmem:[#allocation5 + $0x18] sm:$0xff]
        %4877 = vmatprep.subr.mxu0 0.0
        %4878 = vmatpush1.xpose.msra.mxu0 %v4827
        %4879 = vmatprep.subr.mxu0 0.0
        %4880 = vmatpush1.xpose.msra.mxu0 %v4826
        %4881 = vmatprep.subr.mxu0 0.0
        %4882 = vmatpush1.xpose.msra.mxu0 %v4825
        %4883 = vmatprep.subr.mxu0 0.0
        %4884 = vmatpush1.xpose.msra.mxu0 %v4824
        %4885 = vmatprep.subr.mxu0 0.0
        %4886 = vmatpush1.xpose.msra.mxu0 %v4823
        %4887 = vmatprep.subr.mxu0 0.0
        %4888 = vmatpush1.xpose.msra.mxu0 %v4822
        %4889 = vmatprep.subr.mxu0 0.0
        %4890 = vmatpush1.xpose.msra.mxu0 %v4821
        %4891 = vmatprep.subr.mxu0 0.0
        %4892 = vmatpush1.xpose.msra.mxu0 %v4820
        %4893 = vmatprep.subr.mxu0 0.0
        %4894 = vmatpush1.xpose.msra.mxu0 %v4819
        %4895 = vmatprep.subr.mxu0 0.0
        %4896 = vmatpush1.xpose.msra.mxu0 %v4818
        %4897 = vmatprep.subr.mxu0 0.0
        %4898 = vmatpush1.xpose.msra.mxu0 %v4817
        %4899 = vmatprep.subr.mxu0 0.0
        %4900 = vmatpush1.xpose.msra.mxu0 %v4816
        %4901 = vmatprep.subr.mxu0 0.0
        %4902 = vmatpush1.xpose.msra.mxu0 %v4815
        %4903 = vmatprep.subr.mxu0 0.0
        %4904 = vmatpush1.xpose.msra.mxu0 %v4814
        %4905 = vmatprep.subr.mxu0 0.0
        %4906 = vmatpush1.xpose.msra.mxu0 %v4813
        %4907 = vmatprep.subr.mxu0 0.0
        %4908 = vmatpush1.xpose.msra.mxu0 %v4812
        %4909 = vmatprep.subr.mxu0 0.0
        %4910 = vmatpush2.xpose.msra.mxu0 %v4843
        %4911 = vmatprep.subr.mxu0 0.0
        %4912 = vmatpush2.xpose.msra.mxu0 %v4842
        %4913 = vmatprep.subr.mxu0 0.0
        %4914 = vmatpush2.xpose.msra.mxu0 %v4841
        %4915 = vmatprep.subr.mxu0 0.0
        %4916 = vmatpush2.xpose.msra.mxu0 %v4840
        %4917 = vmatprep.subr.mxu0 0.0
        %4918 = vmatpush2.xpose.msra.mxu0 %v4839
        %4919 = vmatprep.subr.mxu0 0.0
        %4920 = vmatpush2.xpose.msra.mxu0 %v4838
        %4921 = vmatprep.subr.mxu0 0.0
        %4922 = vmatpush2.xpose.msra.mxu0 %v4837
        %4923 = vmatprep.subr.mxu0 0.0
        %4924 = vmatpush2.xpose.msra.mxu0 %v4836
        %4925 = vmatprep.subr.mxu0 0.0
        %4926 = vmatpush2.xpose.msra.mxu0 %v4835
        %4927 = vmatprep.subr.mxu0 0.0
        %4928 = vmatpush2.xpose.msra.mxu0 %v4834
        %4929 = vmatprep.subr.mxu0 0.0
        %4930 = vmatpush2.xpose.msra.mxu0 %v4833
        %4931 = vmatprep.subr.mxu0 0.0
        %4932 = vmatpush2.xpose.msra.mxu0 %v4832
        %4933 = vmatprep.subr.mxu0 0.0
        %4934 = vmatpush2.xpose.msra.mxu0 %v4831
        %4935 = vmatprep.subr.mxu0 0.0
        %4936 = vmatpush2.xpose.msra.mxu0 %v4830
        %4937 = vmatprep.subr.mxu0 0.0
        %4938 = vmatpush2.xpose.msra.mxu0 %v4829
        %4939 = vmatprep.subr.mxu0 0.0
        %4940 = vmatpush2.xpose.msra.mxu0 %v4828
        %4941 = vmatprep.mubr.f32.mxu0 0.0
        %4942 = vmatmul.mubr.f32.gmra.mxu0 %v4876
        %v4943 = vpop.f32.mrf.mxu0
        %v4944 = vadd.f32 0.0, %v4943
        %v4945 = vpop.f32.mrf.mxu0
        %v4946 = vadd.f32 0.0, %v4945
        %4947 = vdwg.mxu0
        %4948 = vmatprep.subr.mxu0 0.0
        %4949 = vmatpush1.xpose.msra.mxu0 %v4859
        %4950 = vmatprep.subr.mxu0 0.0
        %4951 = vmatpush1.xpose.msra.mxu0 %v4858
        %4952 = vmatprep.subr.mxu0 0.0
        %4953 = vmatpush1.xpose.msra.mxu0 %v4857
        %4954 = vmatprep.subr.mxu0 0.0
        %4955 = vmatpush1.xpose.msra.mxu0 %v4856
        %4956 = vmatprep.subr.mxu0 0.0
        %4957 = vmatpush1.xpose.msra.mxu0 %v4855
        %4958 = vmatprep.subr.mxu0 0.0
        %4959 = vmatpush1.xpose.msra.mxu0 %v4854
        %4960 = vmatprep.subr.mxu0 0.0
        %4961 = vmatpush1.xpose.msra.mxu0 %v4853
        %4962 = vmatprep.subr.mxu0 0.0
        %4963 = vmatpush1.xpose.msra.mxu0 %v4852
        %4964 = vmatprep.subr.mxu0 0.0
        %4965 = vmatpush1.xpose.msra.mxu0 %v4851
        %4966 = vmatprep.subr.mxu0 0.0
        %4967 = vmatpush1.xpose.msra.mxu0 %v4850
        %4968 = vmatprep.subr.mxu0 0.0
        %4969 = vmatpush1.xpose.msra.mxu0 %v4849
        %4970 = vmatprep.subr.mxu0 0.0
        %4971 = vmatpush1.xpose.msra.mxu0 %v4848
        %4972 = vmatprep.subr.mxu0 0.0
        %4973 = vmatpush1.xpose.msra.mxu0 %v4847
        %4974 = vmatprep.subr.mxu0 0.0
        %4975 = vmatpush1.xpose.msra.mxu0 %v4846
        %4976 = vmatprep.subr.mxu0 0.0
        %4977 = vmatpush1.xpose.msra.mxu0 %v4845
        %4978 = vmatprep.subr.mxu0 0.0
        %4979 = vmatpush1.xpose.msra.mxu0 %v4844
        %4980 = vmatprep.subr.mxu0 0.0
        %4981 = vmatpush2.xpose.msra.mxu0 %v4875
        %4982 = vmatprep.subr.mxu0 0.0
        %4983 = vmatpush2.xpose.msra.mxu0 %v4874
        %4984 = vmatprep.subr.mxu0 0.0
        %4985 = vmatpush2.xpose.msra.mxu0 %v4873
        %4986 = vmatprep.subr.mxu0 0.0
        %4987 = vmatpush2.xpose.msra.mxu0 %v4872
        %4988 = vmatprep.subr.mxu0 0.0
        %4989 = vmatpush2.xpose.msra.mxu0 %v4871
        %4990 = vmatprep.subr.mxu0 0.0
        %4991 = vmatpush2.xpose.msra.mxu0 %v4870
        %4992 = vmatprep.subr.mxu0 0.0
        %4993 = vmatpush2.xpose.msra.mxu0 %v4869
        %4994 = vmatprep.subr.mxu0 0.0
        %4995 = vmatpush2.xpose.msra.mxu0 %v4868
        %4996 = vmatprep.subr.mxu0 0.0
        %4997 = vmatpush2.xpose.msra.mxu0 %v4867
        %4998 = vmatprep.subr.mxu0 0.0
        %4999 = vmatpush2.xpose.msra.mxu0 %v4866
        %5000 = vmatprep.subr.mxu0 0.0
        %5001 = vmatpush2.xpose.msra.mxu0 %v4865
        %5002 = vmatprep.subr.mxu0 0.0
        %5003 = vmatpush2.xpose.msra.mxu0 %v4864
        %5004 = vmatprep.subr.mxu0 0.0
        %5005 = vmatpush2.xpose.msra.mxu0 %v4863
        %5006 = vmatprep.subr.mxu0 0.0
        %5007 = vmatpush2.xpose.msra.mxu0 %v4862
        %5008 = vmatprep.subr.mxu0 0.0
        %5009 = vmatpush2.xpose.msra.mxu0 %v4861
        %5010 = vmatprep.subr.mxu0 0.0
        %5011 = vmatpush2.xpose.msra.mxu0 %v4860
        %5012 = vmatprep.mubr.f32.mxu0 0.0
        %5013 = vmatmul.mubr.f32.gmra.mxu0 %v4876
        %v5014 = vpop.f32.mrf.mxu0
        %v5015 = vadd.f32 0.0, %v5014
        %v5016 = vpop.f32.mrf.mxu0
        %v5017 = vadd.f32 0.0, %v5016
        %5018 = vdwg.mxu0
        %5019 = vst [vmem:[%s217] sm:$0xff] %v4944
        %5020 = vst [vmem:[%s217 + $0x8] sm:$0xff] %v4946
        %5021 = vst [vmem:[%s217 + $0x10] sm:$0xff] %v5015
        %5022 = vst [vmem:[%s217 + $0x18] sm:$0xff] %v5017
        %s5023 = sand.u32 %s97, 1
        %s5024 = scalar_lea.sflag [#allocation4], %s5023
        %s5025 = sand.u32 %s97, 1
        %s5026 = smul.addr %s5025, 32
        %s5027 = scalar_lea.vmem [#allocation8], %s5026
        // Predicated region
        $region45: #{tpu_custom_call.1} parent=31 // pred_check
          %p5028 = pneg %p107
        $region46: #{tpu_custom_call.1} parent=31 // pred_check_branch
          %5030 = sbr.rel (%p5028) target = $region48
        $region47: #{tpu_custom_call.1} parent=31 // pred_region
          %s5031 = smul.u32 4, %s21
          %s5033 = ssub.s32 512, 512
          %5034 = vsyncadd %s5024, %s5033
          %s5035 = smul.addr %s5031, 128
          %s5036 = scalar_lea.hbm %s3, %s5035
          %s5038 = sshll.u32 %s5027, 4
          %s5039 = int_to_ptr.vmem [resolvable:$true] %s5038
          %5041 = dma.vmem_to_hbm [thread:$0]  %s5039, 512, %s5036, %s5024
        $region48: #{tpu_custom_call.1} parent=31 // pred_fallthru
          _
      $region32: #{tpu_custom_call.1} parent=5 // pred_fallthru
        _
      %p5042 = scmp.le.s32.totalorder 2, %s16
      // Predicated region
      $region49: #{tpu_custom_call.1} parent=5 // pred_check
        %p5043 = pneg %p5042
      $region50: #{tpu_custom_call.1} parent=5 // pred_check_branch
        %5045 = sbr.rel (%p5043) target = $region52
      $region51: #{tpu_custom_call.1} parent=5 // pred_region
        %s5046 = ssub.s32 %s16, 2
        // Predicated region
        $region53: #{tpu_custom_call.1} parent=51 // pred_check
          %p5047 = pneg %p113
        $region54: #{tpu_custom_call.1} parent=51 // pred_check_branch
          %5049 = sbr.rel (%p5047) target = $region56
        $region55: #{tpu_custom_call.1} parent=51 // pred_region
          %s5050 = sand.u32 %s98, 1
          %s5051 = scalar_lea.sflag [#allocation4], %s5050
          %s5052 = sand.u32 %s98, 1
          %s5053 = smul.addr %s5052, 32
          %s5054 = scalar_lea.vmem [#allocation8], %s5053
          %5055 = dma.done %s5051, 512
        $region56: #{tpu_custom_call.1} parent=51 // pred_fallthru
          _
      $region52: #{tpu_custom_call.1} parent=5 // pred_fallthru
        _
    $region6: #{tpu_custom_call.1} parent=1 // loop_footer
      %s20 = sadd.s32 1, %s16
    $region7: #{tpu_custom_call.1} parent=1 // loop_footer_branch
      %15 = sbr.rel target = $region3
    $region8: #{tpu_custom_call.1} parent=1 // loop_exit
      _
    %5056 = vsyncpa [#allocation3], 1
    %s5057 = scalar_lea.sflag [#allocation3], 1
    %5058 = vsyncpa %s5057, 1
    %5059 = vsyncpa [#allocation6], 1
    %5060 = vsyncpa [#allocation4], 1
    %s5061 = scalar_lea.sflag [#allocation4], 1
    %5062 = vsyncpa %s5061, 1

</llo_original>
